<compile_context>
chip_gen: v5e
topology: v5e:2x2
jax: 0.10.0
libtpu: 0.0.40
codegen_flags: <defaults>
</compile_context>

<pallas_src>
import functools

import jax
import jax.numpy as jnp
import numpy as np
from jax import lax
from jax.experimental import pallas as pl
from jax.experimental.pallas import tpu as pltpu

EPS = 1e-5


def _round_up(x, m):
    return (x + m - 1) // m * m


def _device_kind():
    try:
        return jax.devices()[0].device_kind.lower()
    except Exception:
        return ""


_KIND = _device_kind()
# v5e MXU is 4x(128x128) -> 128-aligned output channels are enough; v6e/v7x
# MXUs are 2x(256x256) -> pad the matmul N dim to 256.  v7x has only 64 MiB
# of VMEM per TensorCore, so keep the scoped limit at 32 MiB there.
_LANE_MULT = 128 if "v5" in _KIND else 256
_VMEM_LIMIT = (32 if "v7" in _KIND else 64) * 1024 * 1024


def _cparams(n_axes=1):
    return pltpu.CompilerParams(
        dimension_semantics=("parallel",) * n_axes,
        vmem_limit_bytes=_VMEM_LIMIT,
    )


# ------------------------------ Pallas kernels ------------------------------

def maxpool_kernel(x_ref, o_ref, *, c):
    # x_ref: (tr, 2, wo, 2*c) bf16 rows of an NHWC image; dim 1 pairs the 2x2
    # window in H, the last-dim halves pair it in W.
    x = x_ref[...]
    m = jnp.maximum(x[:, 0], x[:, 1])                    # max over the H pair
    o_ref[...] = jnp.maximum(m[..., :c], m[..., c:])     # max over the W pair


def conv_stats_kernel(xflat_ref, w_ref, o_ref, sum_ref, sq_ref, *,
                      w_img, wp, row_chunks):
    """3x3 conv (padding=1) as 9 shifted MXU matmuls on a flattened padded
    image resident in VMEM, plus exact per-image BN statistics.

    xflat_ref : (1, (H+3)*wp, Cin) bf16  flattened zero-padded NHWC image
    w_ref     : (9, Cin, Cpad)     bf16  3x3 taps, k = 3*di + dj
    o_ref     : (H*wp, Cpad)       bf16  conv output on the (H, wp) grid;
                                         columns je >= w_img are junk
    sum/sq    : (1, 1, Cpad)       f32   junk-masked per-image sum / sum-sq
    Conv bias is intentionally omitted (cancels in training-mode BatchNorm).
    """
    c_pad = o_ref.shape[-1]
    ssum = jnp.zeros((1, c_pad), jnp.float32)
    ssq = jnp.zeros((1, c_pad), jnp.float32)
    masks = {}
    for r0, nr in row_chunks:                        # static (unrolled) loop
        mq = nr * wp
        base = r0 * wp
        acc = jnp.zeros((mq, c_pad), jnp.float32)
        for di in range(3):
            for dj in range(3):
                lhs = xflat_ref[0, pl.ds(base + di * wp + dj, mq), :]
                acc = acc + jnp.dot(lhs, w_ref[3 * di + dj],
                                    preferred_element_type=jnp.float32)
        o_ref[pl.ds(base, mq), :] = acc.astype(o_ref.dtype)
        if mq not in masks:
            masks[mq] = (lax.broadcasted_iota(jnp.int32, (mq, 1), 0)
                         % wp) < w_img
        accm = jnp.where(masks[mq], acc, 0.0)
        ssum = ssum + jnp.sum(accm, axis=0, keepdims=True)
        ssq = ssq + jnp.sum(accm * accm, axis=0, keepdims=True)
    sum_ref[...] = ssum[None]
    sq_ref[...] = ssq[None]


def bn_relu_kernel(x_ref, sc_ref, sh_ref, o_ref, *, w_img, wp, zero_junk):
    # f32 math, cast only at the store (v5e-friendly); optionally zero the
    # junk columns so they double as the W zero-padding of the next conv.
    y = x_ref[...].astype(jnp.float32) * sc_ref[...] + sh_ref[...]
    y = jnp.maximum(y, 0.0)
    if zero_junk:
        rows = y.shape[0]
        mask = (lax.broadcasted_iota(jnp.int32, (rows, 1), 0) % wp) < w_img
        y = jnp.where(mask, y, 0.0)
    o_ref[...] = y.astype(o_ref.dtype)


# ------------------------------ Kernel wrappers ------------------------------

def _pick_row_tile(rows, bytes_per_row, budget=4 * 1024 * 1024):
    cap = max(1, min(rows, budget // max(1, bytes_per_row)))
    for t in range(cap, 0, -1):
        if rows % t == 0:
            return t
    return rows


def pallas_maxpool2x2(x_nhwc):
    n, h, w, c = x_nhwc.shape
    ho, wo = h // 2, w // 2
    rows = n * ho
    xv = x_nhwc.reshape(rows, 2, wo, 2 * c)          # pure (free) reshape
    itemsize = jnp.dtype(x_nhwc.dtype).itemsize
    tr = _pick_row_tile(rows, (2 * wo * 2 * c + wo * c) * itemsize)
    out = pl.pallas_call(
        functools.partial(maxpool_kernel, c=c),
        out_shape=jax.ShapeDtypeStruct((rows, wo, c), x_nhwc.dtype),
        grid=(rows // tr,),
        in_specs=[pl.BlockSpec((tr, 2, wo, 2 * c), lambda i: (i, 0, 0, 0))],
        out_specs=pl.BlockSpec((tr, wo, c), lambda i: (i, 0, 0)),
        compiler_params=_cparams(1),
    )(xv)
    return out.reshape(n, ho, wo, c)


def _make_row_chunks(h, wp, c_pad, acc_budget=4 * 1024 * 1024, max_chunks=16):
    # Image rows per in-kernel chunk so the f32 accumulator (rows*wp, c_pad)
    # stays ~acc_budget, with a bounded static unroll depth.
    th = max(1, acc_budget // (wp * c_pad * 4))
    th = max(th, -(-h // max_chunks))
    th = min(th, h)
    chunks, r = [], 0
    while r < h:
        nr = min(th, h - r)
        chunks.append((r, nr))
        r += nr
    return tuple(chunks)


def pallas_conv3x3_stats(xflat, wmat, h, w_img):
    n, rows_in, c_in = xflat.shape
    _, _, c_pad = wmat.shape
    wp = w_img + 2
    row_chunks = _make_row_chunks(h, wp, c_pad)
    kernel = functools.partial(conv_stats_kernel, w_img=w_img, wp=wp,
                               row_chunks=row_chunks)
    return pl.pallas_call(
        kernel,
        out_shape=(jax.ShapeDtypeStruct((n * h * wp, c_pad), jnp.bfloat16),
                   jax.ShapeDtypeStruct((n, 1, c_pad), jnp.float32),
                   jax.ShapeDtypeStruct((n, 1, c_pad), jnp.float32)),
        grid=(n,),
        in_specs=[pl.BlockSpec((1, rows_in, c_in), lambda i: (i, 0, 0)),
                  # Constant-index weight block (fetched once per batch walk).
                  pl.BlockSpec((9, c_in, c_pad), lambda i: (0, 0, 0))],
        out_specs=(pl.BlockSpec((h * wp, c_pad), lambda i: (i, 0)),
                   pl.BlockSpec((1, 1, c_pad), lambda i: (i, 0, 0)),
                   pl.BlockSpec((1, 1, c_pad), lambda i: (i, 0, 0))),
        compiler_params=_cparams(1),
    )(xflat, wmat)


def pallas_bn_relu(x, scale, shift, rows_per_image, w_img, wp, zero_junk,
                   out_dtype):
    tot_rows, c_pad = x.shape
    n = tot_rows // rows_per_image
    kernel = functools.partial(bn_relu_kernel, w_img=w_img, wp=wp,
                               zero_junk=zero_junk)
    return pl.pallas_call(
        kernel,
        out_shape=jax.ShapeDtypeStruct((tot_rows, c_pad), out_dtype),
        grid=(n,),
        in_specs=[pl.BlockSpec((rows_per_image, c_pad), lambda i: (i, 0)),
                  pl.BlockSpec((1, c_pad), lambda i: (0, 0)),
                  pl.BlockSpec((1, c_pad), lambda i: (0, 0))],
        out_specs=pl.BlockSpec((rows_per_image, c_pad), lambda i: (i, 0)),
        compiler_params=_cparams(1),
    )(x, scale, shift)


# ---------------------------------- Glue ------------------------------------

def _pad_flatten_image(a_nhwc, c_to):
    # (N,H,W,C) -> (N, (H+3)*(W+2), c_to): zero-pad H by (1,2) (conv pad rows
    # plus one margin row covering the flat-slice overrun), W by (1,1) and
    # channels to c_to, then flatten (H, W) — a free reshape in HBM.
    n, h, w, c = a_nhwc.shape
    ap = jnp.pad(a_nhwc, ((0, 0), (1, 2), (1, 1), (0, c_to - c)))
    return ap.reshape(n, (h + 3) * (w + 2), c_to)


def _pack_conv_weight(conv_w, c_in_to, c_out_to):
    # (Cout, Cin, 3, 3) -> (9, c_in_to, c_out_to) bf16 with k = 3*di + dj.
    cout, cin = conv_w.shape[0], conv_w.shape[1]
    wm = jnp.transpose(conv_w, (2, 3, 1, 0)).reshape(9, cin, cout)
    wm = wm.astype(jnp.bfloat16)
    return jnp.pad(wm, ((0, 0), (0, c_in_to - cin), (0, c_out_to - cout)))


def _conv_bn_relu(xflat, n, h, w_img, conv_w, gamma, beta, out_dtype,
                  zero_junk):
    wp = w_img + 2
    c_in_x = xflat.shape[-1]
    cout = conv_w.shape[0]
    c_pad = _round_up(cout, _LANE_MULT)
    wmat = _pack_conv_weight(conv_w, c_in_x, c_pad)

    conv_out, ssum, ssq = pallas_conv3x3_stats(xflat, wmat, h, w_img)

    # Reduce per-image stats (tiny) and build BN scale/shift.  Junk columns
    # were masked inside the kernel, so dividing by the true count is exact.
    m_count = n * h * w_img
    tot_sum = jnp.sum(ssum, axis=(0, 1))
    tot_sq = jnp.sum(ssq, axis=(0, 1))
    mean = tot_sum / m_count
    var = jnp.maximum(tot_sq / m_count - mean * mean, 0.0)
    inv = lax.rsqrt(var + EPS)
    gamma_p = jnp.pad(gamma, (0, c_pad - cout))
    beta_p = jnp.pad(beta, (0, c_pad - cout))
    scale = (gamma_p * inv).reshape(1, c_pad)
    shift = (beta_p - mean * gamma_p * inv).reshape(1, c_pad)

    return pallas_bn_relu(conv_out, scale, shift, h * wp, w_img, wp,
                          zero_junk, out_dtype)


def down_forward(params, x_nchw):
    # NCHW -> NHWC once, in bf16 (reads the f32 input once, writes a
    # half-size bf16 copy; conv operands are bf16 anyway; max() commutes with
    # the monotone bf16 rounding so pooling in bf16 is exact vs. the ref).
    # TODO(synk): fold this layout change into the pooling kernel.
    x = jnp.transpose(x_nchw.astype(jnp.bfloat16), (0, 2, 3, 1))
    x = pallas_maxpool2x2(x)                         # (N, H, W, Cin) bf16
    n, h, w_img, c_in = x.shape
    wp = w_img + 2
    cout1 = params["conv1_w"].shape[0]
    cout2 = params["conv2_w"].shape[0]

    # ---- conv1 + BN1 + ReLU ----
    x1 = _pad_flatten_image(x, _round_up(c_in, 16))
    y1 = _conv_bn_relu(x1, n, h, w_img, params["conv1_w"], params["bn1_g"],
                       params["bn1_b"], jnp.bfloat16, zero_junk=True)

    # ---- conv2 + BN2 + ReLU ----
    # Re-embed the layer-1 activation as the zero-padded flattened input of
    # the second conv: a uniform flat shift of (wp + 1) rows plus zero
    # margins (the zeroed junk columns double as the left/right conv pad).
    cin2 = _round_up(cout1, 16)
    x2 = jnp.pad(y1[:, :cin2].reshape(n, h * wp, cin2),
                 ((0, 0), (wp + 1, 2 * wp - 1), (0, 0)))
    y2 = _conv_bn_relu(x2, n, h, w_img, params["conv2_w"], params["bn2_g"],
                       params["bn2_b"], jnp.float32, zero_junk=False)

    out = y2[:, :cout2].reshape(n, h, wp, cout2)[:, :, :w_img, :]
    return jnp.transpose(out, (0, 3, 1, 2))          # back to NCHW


# -------------------- Pure-JAX reference (NCHW, like torch) ------------------

def down_reference(params, x, matmul_dtype=None, cast_conv_out=False,
                   use_bias=True, eps=EPS):
    n, c, h, w = x.shape
    x = x.reshape(n, c, h // 2, 2, w // 2, 2).max(axis=(3, 5))  # MaxPool2d(2,2)
    for i in (1, 2):
        lhs, rhs = x, params[f"conv{i}_w"]
        if matmul_dtype is not None:
            lhs = lhs.astype(matmul_dtype)
            rhs = rhs.astype(matmul_dtype)
        x = lax.conv_general_dilated(
            lhs, rhs, (1, 1), ((1, 1), (1, 1)),
            dimension_numbers=("NCHW", "OIHW", "NCHW"),
            preferred_element_type=jnp.float32)
        if use_bias:
            x = x + params[f"conv{i}_b"][None, :, None, None]
        if cast_conv_out:
            x = x.astype(jnp.bfloat16).astype(jnp.float32)
        mean = jnp.mean(x, axis=(0, 2, 3), keepdims=True)
        var = jnp.mean((x - mean) ** 2, axis=(0, 2, 3), keepdims=True)
        x = ((x - mean) * lax.rsqrt(var + eps)
             * params[f"bn{i}_g"][None, :, None, None]
             + params[f"bn{i}_b"][None, :, None, None])
        x = jnp.maximum(x, 0.0)
    return x


# ---------------------------------- Main -------------------------------------

if __name__ == "__main__":
    key = jax.random.PRNGKey(0)
    N, in_ch, out_ch, H, W = 2, 4, 8, 16, 16

    keys = jax.random.split(key, 9)
    x = jax.random.normal(keys[0], (N, in_ch, H, W), jnp.float32)
    params = {
        "conv1_w": 0.1 * jax.random.normal(keys[1], (out_ch, in_ch, 3, 3), jnp.float32),
        "conv1_b": 0.1 * jax.random.normal(keys[2], (out_ch,), jnp.float32),
        "bn1_g": 1.0 + 0.1 * jax.random.normal(keys[3], (out_ch,), jnp.float32),
        "bn1_b": 0.1 * jax.random.normal(keys[4], (out_ch,), jnp.float32),
        "conv2_w": 0.1 * jax.random.normal(keys[5], (out_ch, out_ch, 3, 3), jnp.float32),
        "conv2_b": 0.1 * jax.random.normal(keys[6], (out_ch,), jnp.float32),
        "bn2_g": 1.0 + 0.1 * jax.random.normal(keys[7], (out_ch,), jnp.float32),
        "bn2_b": 0.1 * jax.random.normal(keys[8], (out_ch,), jnp.float32),
    }

    out = jax.jit(down_forward)(params, x)
    out = jax.block_until_ready(out)
    assert out.shape == (N, out_ch, H // 2, W // 2)

    # Tight check vs a reference mirroring the kernel's numerics (bf16 MXU
    # operands, bf16 conv intermediates, bias dropped — it cancels under BN).
    ref_mirror = down_reference(params, x, matmul_dtype=jnp.bfloat16,
                                cast_conv_out=True, use_bias=False)
    np.testing.assert_allclose(np.asarray(out), np.asarray(ref_mirror),
                               rtol=2e-2, atol=2e-2)

    # Looser check vs the pure-f32 PyTorch-equivalent semantics (slack covers
    # the bf16 matmul operands and bf16 intermediate activations only).
    ref_f32 = down_reference(params, x)
    np.testing.assert_allclose(np.asarray(out), np.asarray(ref_f32),
                               rtol=1.5e-1, atol=1.5e-1)

    print("KERNEL_OK")
</pallas_src>

<mosaic_0001>
module attributes {stable_mosaic.version = 11 : i64} {
  func.func @maxpool_kernel(%arg0: i32, %arg1: memref<16x2x8x8xbf16, #tpu.memory_space<vmem>>, %arg2: memref<16x8x4xbf16, #tpu.memory_space<vmem>>) attributes {dimension_semantics = [#tpu.dimension_semantics<parallel>], iteration_bounds = array<i64: 1>, scalar_prefetch = 0 : i64, scratch_operands = 0 : i64, tpu.core_type = #tpu.core_type<tc>, window_params = [{transform_indices = @transform_0, window_bounds = array<i64: 16, 2, 8, 8>}, {transform_indices = @transform_1, window_bounds = array<i64: 16, 8, 4>}]} {
    %c0 = arith.constant 0 : index
    %c0_0 = arith.constant 0 : index
    %c0_1 = arith.constant 0 : index
    %c0_2 = arith.constant 0 : index
    %0 = vector.load %arg1[%c0, %c0_0, %c0_1, %c0_2] : memref<16x2x8x8xbf16, #tpu.memory_space<vmem>>, vector<16x2x8x8xbf16>
    %1 = vector.extract_strided_slice %0 {offsets = [0, 0, 0, 0], sizes = [16, 1, 8, 8], strides = [1, 1, 1, 1]} : vector<16x2x8x8xbf16> to vector<16x1x8x8xbf16>
    %2 = vector.shape_cast %1 : vector<16x1x8x8xbf16> to vector<16x8x8xbf16>
    %3 = vector.extract_strided_slice %0 {offsets = [0, 1, 0, 0], sizes = [16, 1, 8, 8], strides = [1, 1, 1, 1]} : vector<16x2x8x8xbf16> to vector<16x1x8x8xbf16>
    %4 = vector.shape_cast %3 : vector<16x1x8x8xbf16> to vector<16x8x8xbf16>
    %5 = arith.maximumf %2, %4 : vector<16x8x8xbf16>
    %6 = vector.extract_strided_slice %5 {offsets = [0, 0, 0], sizes = [16, 8, 4], strides = [1, 1, 1]} : vector<16x8x8xbf16> to vector<16x8x4xbf16>
    %7 = vector.extract_strided_slice %5 {offsets = [0, 0, 4], sizes = [16, 8, 4], strides = [1, 1, 1]} : vector<16x8x8xbf16> to vector<16x8x4xbf16>
    %8 = arith.maximumf %6, %7 : vector<16x8x4xbf16>
    %c0_3 = arith.constant 0 : index
    %c0_4 = arith.constant 0 : index
    %c0_5 = arith.constant 0 : index
    %9 = vector.load %arg2[%c0_3, %c0_4, %c0_5] : memref<16x8x4xbf16, #tpu.memory_space<vmem>>, vector<16x8x4xbf16>
    tpu.vector_store %arg2[%c0_3, %c0_4, %c0_5], %8 {strides = array<i32>} : memref<16x8x4xbf16, #tpu.memory_space<vmem>>, vector<16x8x4xbf16>,
    return
  }
  func.func @transform_0(%arg0: i32) -> (i32, i32, i32, i32) {
    %c0_i32 = arith.constant 0 : i32
    %c0_i32_0 = arith.constant 0 : i32
    %c0_i32_1 = arith.constant 0 : i32
    %c0_i32_2 = arith.constant 0 : i32
    return %arg0, %c0_i32, %c0_i32_0, %c0_i32_1 : i32, i32, i32, i32
  }
  func.func @transform_1(%arg0: i32) -> (i32, i32, i32) {
    %c0_i32 = arith.constant 0 : i32
    %c0_i32_0 = arith.constant 0 : i32
    %c0_i32_1 = arith.constant 0 : i32
    return %arg0, %c0_i32, %c0_i32_0 : i32, i32, i32
  }
}

module attributes {stable_mosaic.version = 11 : i64} {
  func.func @conv_stats_kernel(%arg0: i32, %arg1: memref<1x110x16xbf16, #tpu.memory_space<vmem>>, %arg2: memref<9x16x256xbf16, #tpu.memory_space<vmem>>, %arg3: memref<80x256xbf16, #tpu.memory_space<vmem>>, %arg4: memref<1x1x256xf32, #tpu.memory_space<vmem>>, %arg5: memref<1x1x256xf32, #tpu.memory_space<vmem>>) attributes {dimension_semantics = [#tpu.dimension_semantics<parallel>], iteration_bounds = array<i64: 2>, scalar_prefetch = 0 : i64, scratch_operands = 0 : i64, tpu.core_type = #tpu.core_type<tc>, window_params = [{transform_indices = @transform_0, window_bounds = array<i64: 1, 110, 16>}, {pipeline_mode = #tpu.pipeline_mode<synchronous>, transform_indices = @transform_1, window_bounds = array<i64: 9, 16, 256>}, {transform_indices = @transform_2, window_bounds = array<i64: 80, 256>}, {transform_indices = @transform_3, window_bounds = array<i64: 1, 1, 256>}, {transform_indices = @transform_4, window_bounds = array<i64: 1, 1, 256>}]} {
    %cst = arith.constant 0.000000e+00 : f32
    %0 = vector.broadcast %cst : f32 to vector<1x256xf32>
    %cst_0 = arith.constant 0.000000e+00 : f32
    %1 = vector.broadcast %cst_0 : f32 to vector<1x256xf32>
    %cst_1 = arith.constant 0.000000e+00 : f32
    %2 = vector.broadcast %cst_1 : f32 to vector<80x256xf32>
    %c0 = arith.constant 0 : index
    %c0_2 = arith.constant 0 : index
    %c0_3 = arith.constant 0 : index
    %3 = vector.load %arg1[%c0, %c0_2, %c0_3] : memref<1x110x16xbf16, #tpu.memory_space<vmem>>, vector<1x80x16xbf16>
    %4 = vector.shape_cast %3 : vector<1x80x16xbf16> to vector<80x16xbf16>
    %c0_4 = arith.constant 0 : index
    %c0_5 = arith.constant 0 : index
    %c0_6 = arith.constant 0 : index
    %5 = vector.load %arg2[%c0_4, %c0_5, %c0_6] : memref<9x16x256xbf16, #tpu.memory_space<vmem>>, vector<1x16x256xbf16>
    %6 = vector.shape_cast %5 : vector<1x16x256xbf16> to vector<16x256xbf16>
    %cst_7 = arith.constant dense<0.000000e+00> : vector<80x256xf32>
    %7 = tpu.matmul %4, %6, %cst_7 {dimension_numbers = #tpu.dot_dimension_numbers<[1], [0], [0], [1], [0, 0, 1, 1], [], []>} : vector<80x16xbf16>, vector<16x256xbf16>, vector<80x256xf32> -> vector<80x256xf32>
    %8 = arith.addf %2, %7 : vector<80x256xf32>
    %c0_8 = arith.constant 0 : index
    %c1 = arith.constant 1 : index
    %c0_9 = arith.constant 0 : index
    %9 = vector.load %arg1[%c0_8, %c1, %c0_9] : memref<1x110x16xbf16, #tpu.memory_space<vmem>>, vector<1x80x16xbf16>
    %10 = vector.shape_cast %9 : vector<1x80x16xbf16> to vector<80x16xbf16>
    %c1_10 = arith.constant 1 : index
    %c0_11 = arith.constant 0 : index
    %c0_12 = arith.constant 0 : index
    %11 = vector.load %arg2[%c1_10, %c0_11, %c0_12] : memref<9x16x256xbf16, #tpu.memory_space<vmem>>, vector<1x16x256xbf16>
    %12 = vector.shape_cast %11 : vector<1x16x256xbf16> to vector<16x256xbf16>
    %cst_13 = arith.constant dense<0.000000e+00> : vector<80x256xf32>
    %13 = tpu.matmul %10, %12, %cst_13 {dimension_numbers = #tpu.dot_dimension_numbers<[1], [0], [0], [1], [0, 0, 1, 1], [], []>} : vector<80x16xbf16>, vector<16x256xbf16>, vector<80x256xf32> -> vector<80x256xf32>
    %14 = arith.addf %8, %13 : vector<80x256xf32>
    %c0_14 = arith.constant 0 : index
    %c2 = arith.constant 2 : index
    %c0_15 = arith.constant 0 : index
    %15 = vector.load %arg1[%c0_14, %c2, %c0_15] : memref<1x110x16xbf16, #tpu.memory_space<vmem>>, vector<1x80x16xbf16>
    %16 = vector.shape_cast %15 : vector<1x80x16xbf16> to vector<80x16xbf16>
    %c2_16 = arith.constant 2 : index
    %c0_17 = arith.constant 0 : index
    %c0_18 = arith.constant 0 : index
    %17 = vector.load %arg2[%c2_16, %c0_17, %c0_18] : memref<9x16x256xbf16, #tpu.memory_space<vmem>>, vector<1x16x256xbf16>
    %18 = vector.shape_cast %17 : vector<1x16x256xbf16> to vector<16x256xbf16>
    %cst_19 = arith.constant dense<0.000000e+00> : vector<80x256xf32>
    %19 = tpu.matmul %16, %18, %cst_19 {dimension_numbers = #tpu.dot_dimension_numbers<[1], [0], [0], [1], [0, 0, 1, 1], [], []>} : vector<80x16xbf16>, vector<16x256xbf16>, vector<80x256xf32> -> vector<80x256xf32>
    %20 = arith.addf %14, %19 : vector<80x256xf32>
    %c0_20 = arith.constant 0 : index
    %c10 = arith.constant 10 : index
    %c0_21 = arith.constant 0 : index
    %21 = vector.load %arg1[%c0_20, %c10, %c0_21] : memref<1x110x16xbf16, #tpu.memory_space<vmem>>, vector<1x80x16xbf16>
    %22 = vector.shape_cast %21 : vector<1x80x16xbf16> to vector<80x16xbf16>
    %c3 = arith.constant 3 : index
    %c0_22 = arith.constant 0 : index
    %c0_23 = arith.constant 0 : index
    %23 = vector.load %arg2[%c3, %c0_22, %c0_23] : memref<9x16x256xbf16, #tpu.memory_space<vmem>>, vector<1x16x256xbf16>
    %24 = vector.shape_cast %23 : vector<1x16x256xbf16> to vector<16x256xbf16>
    %cst_24 = arith.constant dense<0.000000e+00> : vector<80x256xf32>
    %25 = tpu.matmul %22, %24, %cst_24 {dimension_numbers = #tpu.dot_dimension_numbers<[1], [0], [0], [1], [0, 0, 1, 1], [], []>} : vector<80x16xbf16>, vector<16x256xbf16>, vector<80x256xf32> -> vector<80x256xf32>
    %26 = arith.addf %20, %25 : vector<80x256xf32>
    %c0_25 = arith.constant 0 : index
    %c11 = arith.constant 11 : index
    %c0_26 = arith.constant 0 : index
    %27 = vector.load %arg1[%c0_25, %c11, %c0_26] : memref<1x110x16xbf16, #tpu.memory_space<vmem>>, vector<1x80x16xbf16>
    %28 = vector.shape_cast %27 : vector<1x80x16xbf16> to vector<80x16xbf16>
    %c4 = arith.constant 4 : index
    %c0_27 = arith.constant 0 : index
    %c0_28 = arith.constant 0 : index
    %29 = vector.load %arg2[%c4, %c0_27, %c0_28] : memref<9x16x256xbf16, #tpu.memory_space<vmem>>, vector<1x16x256xbf16>
    %30 = vector.shape_cast %29 : vector<1x16x256xbf16> to vector<16x256xbf16>
    %cst_29 = arith.constant dense<0.000000e+00> : vector<80x256xf32>
    %31 = tpu.matmul %28, %30, %cst_29 {dimension_numbers = #tpu.dot_dimension_numbers<[1], [0], [0], [1], [0, 0, 1, 1], [], []>} : vector<80x16xbf16>, vector<16x256xbf16>, vector<80x256xf32> -> vector<80x256xf32>
    %32 = arith.addf %26, %31 : vector<80x256xf32>
    %c0_30 = arith.constant 0 : index
    %c12 = arith.constant 12 : index
    %c0_31 = arith.constant 0 : index
    %33 = vector.load %arg1[%c0_30, %c12, %c0_31] : memref<1x110x16xbf16, #tpu.memory_space<vmem>>, vector<1x80x16xbf16>
    %34 = vector.shape_cast %33 : vector<1x80x16xbf16> to vector<80x16xbf16>
    %c5 = arith.constant 5 : index
    %c0_32 = arith.constant 0 : index
    %c0_33 = arith.constant 0 : index
    %35 = vector.load %arg2[%c5, %c0_32, %c0_33] : memref<9x16x256xbf16, #tpu.memory_space<vmem>>, vector<1x16x256xbf16>
    %36 = vector.shape_cast %35 : vector<1x16x256xbf16> to vector<16x256xbf16>
    %cst_34 = arith.constant dense<0.000000e+00> : vector<80x256xf32>
    %37 = tpu.matmul %34, %36, %cst_34 {dimension_numbers = #tpu.dot_dimension_numbers<[1], [0], [0], [1], [0, 0, 1, 1], [], []>} : vector<80x16xbf16>, vector<16x256xbf16>, vector<80x256xf32> -> vector<80x256xf32>
    %38 = arith.addf %32, %37 : vector<80x256xf32>
    %c0_35 = arith.constant 0 : index
    %c20 = arith.constant 20 : index
    %c0_36 = arith.constant 0 : index
    %39 = vector.load %arg1[%c0_35, %c20, %c0_36] : memref<1x110x16xbf16, #tpu.memory_space<vmem>>, vector<1x80x16xbf16>
    %40 = vector.shape_cast %39 : vector<1x80x16xbf16> to vector<80x16xbf16>
    %c6 = arith.constant 6 : index
    %c0_37 = arith.constant 0 : index
    %c0_38 = arith.constant 0 : index
    %41 = vector.load %arg2[%c6, %c0_37, %c0_38] : memref<9x16x256xbf16, #tpu.memory_space<vmem>>, vector<1x16x256xbf16>
    %42 = vector.shape_cast %41 : vector<1x16x256xbf16> to vector<16x256xbf16>
    %cst_39 = arith.constant dense<0.000000e+00> : vector<80x256xf32>
    %43 = tpu.matmul %40, %42, %cst_39 {dimension_numbers = #tpu.dot_dimension_numbers<[1], [0], [0], [1], [0, 0, 1, 1], [], []>} : vector<80x16xbf16>, vector<16x256xbf16>, vector<80x256xf32> -> vector<80x256xf32>
    %44 = arith.addf %38, %43 : vector<80x256xf32>
    %c0_40 = arith.constant 0 : index
    %c21 = arith.constant 21 : index
    %c0_41 = arith.constant 0 : index
    %45 = vector.load %arg1[%c0_40, %c21, %c0_41] : memref<1x110x16xbf16, #tpu.memory_space<vmem>>, vector<1x80x16xbf16>
    %46 = vector.shape_cast %45 : vector<1x80x16xbf16> to vector<80x16xbf16>
    %c7 = arith.constant 7 : index
    %c0_42 = arith.constant 0 : index
    %c0_43 = arith.constant 0 : index
    %47 = vector.load %arg2[%c7, %c0_42, %c0_43] : memref<9x16x256xbf16, #tpu.memory_space<vmem>>, vector<1x16x256xbf16>
    %48 = vector.shape_cast %47 : vector<1x16x256xbf16> to vector<16x256xbf16>
    %cst_44 = arith.constant dense<0.000000e+00> : vector<80x256xf32>
    %49 = tpu.matmul %46, %48, %cst_44 {dimension_numbers = #tpu.dot_dimension_numbers<[1], [0], [0], [1], [0, 0, 1, 1], [], []>} : vector<80x16xbf16>, vector<16x256xbf16>, vector<80x256xf32> -> vector<80x256xf32>
    %50 = arith.addf %44, %49 : vector<80x256xf32>
    %c0_45 = arith.constant 0 : index
    %c22 = arith.constant 22 : index
    %c0_46 = arith.constant 0 : index
    %51 = vector.load %arg1[%c0_45, %c22, %c0_46] : memref<1x110x16xbf16, #tpu.memory_space<vmem>>, vector<1x80x16xbf16>
    %52 = vector.shape_cast %51 : vector<1x80x16xbf16> to vector<80x16xbf16>
    %c8 = arith.constant 8 : index
    %c0_47 = arith.constant 0 : index
    %c0_48 = arith.constant 0 : index
    %53 = vector.load %arg2[%c8, %c0_47, %c0_48] : memref<9x16x256xbf16, #tpu.memory_space<vmem>>, vector<1x16x256xbf16>
    %54 = vector.shape_cast %53 : vector<1x16x256xbf16> to vector<16x256xbf16>
    %cst_49 = arith.constant dense<0.000000e+00> : vector<80x256xf32>
    %55 = tpu.matmul %52, %54, %cst_49 {dimension_numbers = #tpu.dot_dimension_numbers<[1], [0], [0], [1], [0, 0, 1, 1], [], []>} : vector<80x16xbf16>, vector<16x256xbf16>, vector<80x256xf32> -> vector<80x256xf32>
    %56 = arith.addf %50, %55 : vector<80x256xf32>
    %57 = arith.truncf %56 : vector<80x256xf32> to vector<80x256xbf16>
    %c0_50 = arith.constant 0 : index
    %c0_51 = arith.constant 0 : index
    %58 = vector.load %arg3[%c0_50, %c0_51] : memref<80x256xbf16, #tpu.memory_space<vmem>>, vector<80x256xbf16>
    tpu.vector_store %arg3[%c0_50, %c0_51], %57 {strides = array<i32>} : memref<80x256xbf16, #tpu.memory_space<vmem>>, vector<80x256xbf16>,
    %59 = tpu.iota {dimensions = array<i32: 0>} : vector<80x1xi32>
    %c10_i32 = arith.constant 10 : i32
    %c0_i32 = arith.constant 0 : i32
    %60 = arith.cmpi eq, %c10_i32, %c0_i32 : i32
    %c1_i32 = arith.constant 1 : i32
    %61 = arith.select %60, %c1_i32, %c10_i32 : i32
    %62 = vector.broadcast %61 : i32 to vector<80x1xi32>
    %63 = arith.remsi %59, %62 : vector<80x1xi32>
    %c0_i32_52 = arith.constant 0 : i32
    %64 = vector.broadcast %c0_i32_52 : i32 to vector<80x1xi32>
    %65 = arith.cmpi ne, %63, %64 : vector<80x1xi32>
    %c0_i32_53 = arith.constant 0 : i32
    %66 = vector.broadcast %c0_i32_53 : i32 to vector<80x1xi32>
    %67 = arith.cmpi slt, %63, %66 : vector<80x1xi32>
    %c0_i32_54 = arith.constant 0 : i32
    %68 = arith.cmpi slt, %61, %c0_i32_54 : i32
    %69 = vector.broadcast %68 : i1 to vector<80x1xi1>
    %70 = vector.broadcast %69 : vector<80x1xi1> to vector<80x1xi1>
    %71 = arith.xori %67, %70 : vector<80x1xi1>
    %72 = arith.andi %71, %65 : vector<80x1xi1>
    %73 = vector.broadcast %61 : i32 to vector<80x1xi32>
    %74 = arith.addi %63, %73 : vector<80x1xi32>
    %75 = arith.select %72, %74, %63 : vector<80x1xi1>, vector<80x1xi32>
    %c8_i32 = arith.constant 8 : i32
    %76 = vector.broadcast %c8_i32 : i32 to vector<80x1xi32>
    %77 = arith.cmpi slt, %75, %76 : vector<80x1xi32>
    %cst_55 = arith.constant 0.000000e+00 : f32
    %78 = vector.shape_cast %77 : vector<80x1xi1> to vector<80x1xi1>
    %79 = vector.broadcast %78 : vector<80x1xi1> to vector<80x256xi1>
    %80 = vector.broadcast %cst_55 : f32 to vector<80x256xf32>
    %81 = arith.select %79, %56, %80 : vector<80x256xi1>, vector<80x256xf32>
    %cst_56 = arith.constant dense<0.000000e+00> : vector<256xf32>
    %82 = vector.multi_reduction <add>, %81, %cst_56 [0] : vector<80x256xf32> to vector<256xf32>
    %83 = vector.shape_cast %82 : vector<256xf32> to vector<1x256xf32>
    %84 = arith.addf %0, %83 : vector<1x256xf32>
    %85 = arith.mulf %81, %81 : vector<80x256xf32>
    %cst_57 = arith.constant dense<0.000000e+00> : vector<256xf32>
    %86 = vector.multi_reduction <add>, %85, %cst_57 [0] : vector<80x256xf32> to vector<256xf32>
    %87 = vector.shape_cast %86 : vector<256xf32> to vector<1x256xf32>
    %88 = arith.addf %1, %87 : vector<1x256xf32>
    %89 = vector.shape_cast %84 : vector<1x256xf32> to vector<1x1x256xf32>
    %c0_58 = arith.constant 0 : index
    %c0_59 = arith.constant 0 : index
    %c0_60 = arith.constant 0 : index
    %90 = vector.load %arg4[%c0_58, %c0_59, %c0_60] : memref<1x1x256xf32, #tpu.memory_space<vmem>>, vector<1x1x256xf32>
    tpu.vector_store %arg4[%c0_58, %c0_59, %c0_60], %89 {strides = array<i32>} : memref<1x1x256xf32, #tpu.memory_space<vmem>>, vector<1x1x256xf32>,
    %91 = vector.shape_cast %88 : vector<1x256xf32> to vector<1x1x256xf32>
    %c0_61 = arith.constant 0 : index
    %c0_62 = arith.constant 0 : index
    %c0_63 = arith.constant 0 : index
    %92 = vector.load %arg5[%c0_61, %c0_62, %c0_63] : memref<1x1x256xf32, #tpu.memory_space<vmem>>, vector<1x1x256xf32>
    tpu.vector_store %arg5[%c0_61, %c0_62, %c0_63], %91 {strides = array<i32>} : memref<1x1x256xf32, #tpu.memory_space<vmem>>, vector<1x1x256xf32>,
    return
  }
  func.func @transform_0(%arg0: i32) -> (i32, i32, i32) {
    %c0_i32 = arith.constant 0 : i32
    %c0_i32_0 = arith.constant 0 : i32
    %c0_i32_1 = arith.constant 0 : i32
    return %arg0, %c0_i32, %c0_i32_0 : i32, i32, i32
  }
  func.func @transform_1(%arg0: i32) -> (i32, i32, i32) {
    %c0_i32 = arith.constant 0 : i32
    %c0_i32_0 = arith.constant 0 : i32
    %c0_i32_1 = arith.constant 0 : i32
    %c0_i32_2 = arith.constant 0 : i32
    return %c0_i32, %c0_i32_0, %c0_i32_1 : i32, i32, i32
  }
  func.func @transform_2(%arg0: i32) -> (i32, i32) {
    %c0_i32 = arith.constant 0 : i32
    %c0_i32_0 = arith.constant 0 : i32
    return %arg0, %c0_i32 : i32, i32
  }
  func.func @transform_3(%arg0: i32) -> (i32, i32, i32) {
    %c0_i32 = arith.constant 0 : i32
    %c0_i32_0 = arith.constant 0 : i32
    %c0_i32_1 = arith.constant 0 : i32
    return %arg0, %c0_i32, %c0_i32_0 : i32, i32, i32
  }
  func.func @transform_4(%arg0: i32) -> (i32, i32, i32) {
    %c0_i32 = arith.constant 0 : i32
    %c0_i32_0 = arith.constant 0 : i32
    %c0_i32_1 = arith.constant 0 : i32
    return %arg0, %c0_i32, %c0_i32_0 : i32, i32, i32
  }
}

module attributes {stable_mosaic.version = 11 : i64} {
  func.func @bn_relu_kernel(%arg0: i32, %arg1: memref<80x256xbf16, #tpu.memory_space<vmem>>, %arg2: memref<1x256xf32, #tpu.memory_space<vmem>>, %arg3: memref<1x256xf32, #tpu.memory_space<vmem>>, %arg4: memref<80x256xbf16, #tpu.memory_space<vmem>>) attributes {dimension_semantics = [#tpu.dimension_semantics<parallel>], iteration_bounds = array<i64: 2>, scalar_prefetch = 0 : i64, scratch_operands = 0 : i64, tpu.core_type = #tpu.core_type<tc>, window_params = [{transform_indices = @transform_0, window_bounds = array<i64: 80, 256>}, {pipeline_mode = #tpu.pipeline_mode<synchronous>, transform_indices = @transform_1, window_bounds = array<i64: 1, 256>}, {pipeline_mode = #tpu.pipeline_mode<synchronous>, transform_indices = @transform_2, window_bounds = array<i64: 1, 256>}, {transform_indices = @transform_3, window_bounds = array<i64: 80, 256>}]} {
    %c0 = arith.constant 0 : index
    %c0_0 = arith.constant 0 : index
    %0 = vector.load %arg1[%c0, %c0_0] : memref<80x256xbf16, #tpu.memory_space<vmem>>, vector<80x256xbf16>
    %1 = arith.extf %0 : vector<80x256xbf16> to vector<80x256xf32>
    %c0_1 = arith.constant 0 : index
    %c0_2 = arith.constant 0 : index
    %2 = vector.load %arg2[%c0_1, %c0_2] : memref<1x256xf32, #tpu.memory_space<vmem>>, vector<1x256xf32>
    %3 = vector.broadcast %2 : vector<1x256xf32> to vector<80x256xf32>
    %4 = arith.mulf %1, %3 : vector<80x256xf32>
    %c0_3 = arith.constant 0 : index
    %c0_4 = arith.constant 0 : index
    %5 = vector.load %arg3[%c0_3, %c0_4] : memref<1x256xf32, #tpu.memory_space<vmem>>, vector<1x256xf32>
    %6 = vector.broadcast %5 : vector<1x256xf32> to vector<80x256xf32>
    %7 = arith.addf %4, %6 : vector<80x256xf32>
    %cst = arith.constant 0.000000e+00 : f32
    %8 = vector.broadcast %cst : f32 to vector<80x256xf32>
    %9 = arith.maximumf %7, %8 : vector<80x256xf32>
    %10 = tpu.iota {dimensions = array<i32: 0>} : vector<80x1xi32>
    %c10_i32 = arith.constant 10 : i32
    %c0_i32 = arith.constant 0 : i32
    %11 = arith.cmpi eq, %c10_i32, %c0_i32 : i32
    %c1_i32 = arith.constant 1 : i32
    %12 = arith.select %11, %c1_i32, %c10_i32 : i32
    %13 = vector.broadcast %12 : i32 to vector<80x1xi32>
    %14 = arith.remsi %10, %13 : vector<80x1xi32>
    %c0_i32_5 = arith.constant 0 : i32
    %15 = vector.broadcast %c0_i32_5 : i32 to vector<80x1xi32>
    %16 = arith.cmpi ne, %14, %15 : vector<80x1xi32>
    %c0_i32_6 = arith.constant 0 : i32
    %17 = vector.broadcast %c0_i32_6 : i32 to vector<80x1xi32>
    %18 = arith.cmpi slt, %14, %17 : vector<80x1xi32>
    %c0_i32_7 = arith.constant 0 : i32
    %19 = arith.cmpi slt, %12, %c0_i32_7 : i32
    %20 = vector.broadcast %19 : i1 to vector<80x1xi1>
    %21 = vector.broadcast %20 : vector<80x1xi1> to vector<80x1xi1>
    %22 = arith.xori %18, %21 : vector<80x1xi1>
    %23 = arith.andi %22, %16 : vector<80x1xi1>
    %24 = vector.broadcast %12 : i32 to vector<80x1xi32>
    %25 = arith.addi %14, %24 : vector<80x1xi32>
    %26 = arith.select %23, %25, %14 : vector<80x1xi1>, vector<80x1xi32>
    %c8_i32 = arith.constant 8 : i32
    %27 = vector.broadcast %c8_i32 : i32 to vector<80x1xi32>
    %28 = arith.cmpi slt, %26, %27 : vector<80x1xi32>
    %cst_8 = arith.constant 0.000000e+00 : f32
    %29 = vector.shape_cast %28 : vector<80x1xi1> to vector<80x1xi1>
    %30 = vector.broadcast %29 : vector<80x1xi1> to vector<80x256xi1>
    %31 = vector.broadcast %cst_8 : f32 to vector<80x256xf32>
    %32 = arith.select %30, %9, %31 : vector<80x256xi1>, vector<80x256xf32>
    %33 = arith.truncf %32 : vector<80x256xf32> to vector<80x256xbf16>
    %c0_9 = arith.constant 0 : index
    %c0_10 = arith.constant 0 : index
    %34 = vector.load %arg4[%c0_9, %c0_10] : memref<80x256xbf16, #tpu.memory_space<vmem>>, vector<80x256xbf16>
    tpu.vector_store %arg4[%c0_9, %c0_10], %33 {strides = array<i32>} : memref<80x256xbf16, #tpu.memory_space<vmem>>, vector<80x256xbf16>,
    return
  }
  func.func @transform_0(%arg0: i32) -> (i32, i32) {
    %c0_i32 = arith.constant 0 : i32
    %c0_i32_0 = arith.constant 0 : i32
    return %arg0, %c0_i32 : i32, i32
  }
  func.func @transform_1(%arg0: i32) -> (i32, i32) {
    %c0_i32 = arith.constant 0 : i32
    %c0_i32_0 = arith.constant 0 : i32
    %c0_i32_1 = arith.constant 0 : i32
    return %c0_i32, %c0_i32_0 : i32, i32
  }
  func.func @transform_2(%arg0: i32) -> (i32, i32) {
    %c0_i32 = arith.constant 0 : i32
    %c0_i32_0 = arith.constant 0 : i32
    %c0_i32_1 = arith.constant 0 : i32
    return %c0_i32, %c0_i32_0 : i32, i32
  }
  func.func @transform_3(%arg0: i32) -> (i32, i32) {
    %c0_i32 = arith.constant 0 : i32
    %c0_i32_0 = arith.constant 0 : i32
    return %arg0, %c0_i32 : i32, i32
  }
}

module attributes {stable_mosaic.version = 11 : i64} {
  func.func @bn_relu_kernel(%arg0: i32, %arg1: memref<80x256xbf16, #tpu.memory_space<vmem>>, %arg2: memref<1x256xf32, #tpu.memory_space<vmem>>, %arg3: memref<1x256xf32, #tpu.memory_space<vmem>>, %arg4: memref<80x256xf32, #tpu.memory_space<vmem>>) attributes {dimension_semantics = [#tpu.dimension_semantics<parallel>], iteration_bounds = array<i64: 2>, scalar_prefetch = 0 : i64, scratch_operands = 0 : i64, tpu.core_type = #tpu.core_type<tc>, window_params = [{transform_indices = @transform_0, window_bounds = array<i64: 80, 256>}, {pipeline_mode = #tpu.pipeline_mode<synchronous>, transform_indices = @transform_1, window_bounds = array<i64: 1, 256>}, {pipeline_mode = #tpu.pipeline_mode<synchronous>, transform_indices = @transform_2, window_bounds = array<i64: 1, 256>}, {transform_indices = @transform_3, window_bounds = array<i64: 80, 256>}]} {
    %c0 = arith.constant 0 : index
    %c0_0 = arith.constant 0 : index
    %0 = vector.load %arg1[%c0, %c0_0] : memref<80x256xbf16, #tpu.memory_space<vmem>>, vector<80x256xbf16>
    %1 = arith.extf %0 : vector<80x256xbf16> to vector<80x256xf32>
    %c0_1 = arith.constant 0 : index
    %c0_2 = arith.constant 0 : index
    %2 = vector.load %arg2[%c0_1, %c0_2] : memref<1x256xf32, #tpu.memory_space<vmem>>, vector<1x256xf32>
    %3 = vector.broadcast %2 : vector<1x256xf32> to vector<80x256xf32>
    %4 = arith.mulf %1, %3 : vector<80x256xf32>
    %c0_3 = arith.constant 0 : index
    %c0_4 = arith.constant 0 : index
    %5 = vector.load %arg3[%c0_3, %c0_4] : memref<1x256xf32, #tpu.memory_space<vmem>>, vector<1x256xf32>
    %6 = vector.broadcast %5 : vector<1x256xf32> to vector<80x256xf32>
    %7 = arith.addf %4, %6 : vector<80x256xf32>
    %cst = arith.constant 0.000000e+00 : f32
    %8 = vector.broadcast %cst : f32 to vector<80x256xf32>
    %9 = arith.maximumf %7, %8 : vector<80x256xf32>
    %c0_5 = arith.constant 0 : index
    %c0_6 = arith.constant 0 : index
    %10 = vector.load %arg4[%c0_5, %c0_6] : memref<80x256xf32, #tpu.memory_space<vmem>>, vector<80x256xf32>
    tpu.vector_store %arg4[%c0_5, %c0_6], %9 {strides = array<i32>} : memref<80x256xf32, #tpu.memory_space<vmem>>, vector<80x256xf32>,
    return
  }
  func.func @transform_0(%arg0: i32) -> (i32, i32) {
    %c0_i32 = arith.constant 0 : i32
    %c0_i32_0 = arith.constant 0 : i32
    return %arg0, %c0_i32 : i32, i32
  }
  func.func @transform_1(%arg0: i32) -> (i32, i32) {
    %c0_i32 = arith.constant 0 : i32
    %c0_i32_0 = arith.constant 0 : i32
    %c0_i32_1 = arith.constant 0 : i32
    return %c0_i32, %c0_i32_0 : i32, i32
  }
  func.func @transform_2(%arg0: i32) -> (i32, i32) {
    %c0_i32 = arith.constant 0 : i32
    %c0_i32_0 = arith.constant 0 : i32
    %c0_i32_1 = arith.constant 0 : i32
    return %c0_i32, %c0_i32_0 : i32, i32
  }
  func.func @transform_3(%arg0: i32) -> (i32, i32) {
    %c0_i32 = arith.constant 0 : i32
    %c0_i32_0 = arith.constant 0 : i32
    return %arg0, %c0_i32 : i32, i32
  }
}

</mosaic_0001>

<llo_original>
// kernel: down_forward.5
$region0: #{down_forward.5}
  #allocation0 [shape = 'u32[]', space=smem, size = 0x4, offset = 0x4, fixed_abs, tag = 'smem constant byte address 0x4 - core index']
  #allocation1 [shape = 'u32[72,128]{1,0:T(1,128)}', space=vmem, size = 0x9000, scoped, tag = 'internal scratch']
  %s0 = inlined_call_operand.vmem [shape: bf16[16,2,8,8], index: 0, kind: input, shape index: {}]
  %s1 = inlined_call_operand.vmem [shape: bf16[16,8,4], index: 1, kind: output, shape index: {}]
  %s2 = sld [smem:[#allocation0]]
  $region14: #{down_forward.5} parent=0
    _
  %s4 = ssub.s32 1, %s2
  %s5 = scalar_select 0, %s4, %s2
  // Predicated region
  $region2: #{down_forward.5} parent=0 // pred_check
    _
  $region3: #{down_forward.5} parent=0 // pred_check_branch
    %7 = sbr.rel (0) target = $region5
  $region4: #{down_forward.5} parent=0 // pred_region
    _
  $region5: #{down_forward.5} parent=0 // pred_fallthru
    _
  %v8 = vld [vmem:[%s0] sm:$0xf]
  %v9 = vld [vmem:[%s0 + $0x4] sm:$0xf]
  %v10 = vld [vmem:[%s0 + $0x8] sm:$0xf]
  %v11 = vld [vmem:[%s0 + $0xc] sm:$0xf]
  %v12 = vld [vmem:[%s0 + $0x10] sm:$0xf]
  %v13 = vld [vmem:[%s0 + $0x14] sm:$0xf]
  %v14 = vld [vmem:[%s0 + $0x18] sm:$0xf]
  %v15 = vld [vmem:[%s0 + $0x1c] sm:$0xf]
  %v16 = vld [vmem:[%s0 + $0x20] sm:$0xf]
  %v17 = vld [vmem:[%s0 + $0x24] sm:$0xf]
  %v18 = vld [vmem:[%s0 + $0x28] sm:$0xf]
  %v19 = vld [vmem:[%s0 + $0x2c] sm:$0xf]
  %v20 = vld [vmem:[%s0 + $0x30] sm:$0xf]
  %v21 = vld [vmem:[%s0 + $0x34] sm:$0xf]
  %v22 = vld [vmem:[%s0 + $0x38] sm:$0xf]
  %v23 = vld [vmem:[%s0 + $0x3c] sm:$0xf]
  %v24 = vld [vmem:[%s0 + $0x40] sm:$0xf]
  %v25 = vld [vmem:[%s0 + $0x44] sm:$0xf]
  %v26 = vld [vmem:[%s0 + $0x48] sm:$0xf]
  %v27 = vld [vmem:[%s0 + $0x4c] sm:$0xf]
  %v28 = vld [vmem:[%s0 + $0x50] sm:$0xf]
  %v29 = vld [vmem:[%s0 + $0x54] sm:$0xf]
  %v30 = vld [vmem:[%s0 + $0x58] sm:$0xf]
  %v31 = vld [vmem:[%s0 + $0x5c] sm:$0xf]
  %v32 = vld [vmem:[%s0 + $0x60] sm:$0xf]
  %v33 = vld [vmem:[%s0 + $0x64] sm:$0xf]
  %v34 = vld [vmem:[%s0 + $0x68] sm:$0xf]
  %v35 = vld [vmem:[%s0 + $0x6c] sm:$0xf]
  %v36 = vld [vmem:[%s0 + $0x70] sm:$0xf]
  %v37 = vld [vmem:[%s0 + $0x74] sm:$0xf]
  %v38 = vld [vmem:[%s0 + $0x78] sm:$0xf]
  %v39 = vld [vmem:[%s0 + $0x7c] sm:$0xf]
  %v40 = vunpack.c.l.bf16 %v8
  %v41 = vunpack.c.l.bf16 %v10
  %v42 = vunpack.c.l.bf16 %v12
  %v43 = vunpack.c.l.bf16 %v14
  %v44 = vunpack.c.l.bf16 %v16
  %v45 = vunpack.c.l.bf16 %v18
  %v46 = vunpack.c.l.bf16 %v20
  %v47 = vunpack.c.l.bf16 %v22
  %v48 = vunpack.c.l.bf16 %v24
  %v49 = vunpack.c.l.bf16 %v26
  %v50 = vunpack.c.l.bf16 %v28
  %v51 = vunpack.c.l.bf16 %v30
  %v52 = vunpack.c.l.bf16 %v32
  %v53 = vunpack.c.l.bf16 %v34
  %v54 = vunpack.c.l.bf16 %v36
  %v55 = vunpack.c.l.bf16 %v38
  %v56 = vunpack.c.l.bf16 %v9
  %v57 = vunpack.c.l.bf16 %v11
  %v58 = vunpack.c.l.bf16 %v13
  %v59 = vunpack.c.l.bf16 %v15
  %v60 = vunpack.c.l.bf16 %v17
  %v61 = vunpack.c.l.bf16 %v19
  %v62 = vunpack.c.l.bf16 %v21
  %v63 = vunpack.c.l.bf16 %v23
  %v64 = vunpack.c.l.bf16 %v25
  %v65 = vunpack.c.l.bf16 %v27
  %v66 = vunpack.c.l.bf16 %v29
  %v67 = vunpack.c.l.bf16 %v31
  %v68 = vunpack.c.l.bf16 %v33
  %v69 = vunpack.c.l.bf16 %v35
  %v70 = vunpack.c.l.bf16 %v37
  %v71 = vunpack.c.l.bf16 %v39
  %v72 = vmax.f32 %v40, %v56
  %v73 = vmax.f32 %v41, %v57
  %v74 = vmax.f32 %v42, %v58
  %v75 = vmax.f32 %v43, %v59
  %v76 = vmax.f32 %v44, %v60
  %v77 = vmax.f32 %v45, %v61
  %v78 = vmax.f32 %v46, %v62
  %v79 = vmax.f32 %v47, %v63
  %v80 = vmax.f32 %v48, %v64
  %v81 = vmax.f32 %v49, %v65
  %v82 = vmax.f32 %v50, %v66
  %v83 = vmax.f32 %v51, %v67
  %v84 = vmax.f32 %v52, %v68
  %v85 = vmax.f32 %v53, %v69
  %v86 = vmax.f32 %v54, %v70
  %v87 = vmax.f32 %v55, %v71
  %v88 = vpack.c.bf16 %v72, %v72
  %v89 = vpack.c.bf16 %v73, %v73
  %v90 = vpack.c.bf16 %v74, %v74
  %v91 = vpack.c.bf16 %v75, %v75
  %v92 = vpack.c.bf16 %v76, %v76
  %v93 = vpack.c.bf16 %v77, %v77
  %v94 = vpack.c.bf16 %v78, %v78
  %v95 = vpack.c.bf16 %v79, %v79
  %v96 = vpack.c.bf16 %v80, %v80
  %v97 = vpack.c.bf16 %v81, %v81
  %v98 = vpack.c.bf16 %v82, %v82
  %v99 = vpack.c.bf16 %v83, %v83
  %v100 = vpack.c.bf16 %v84, %v84
  %v101 = vpack.c.bf16 %v85, %v85
  %v102 = vpack.c.bf16 %v86, %v86
  %v103 = vpack.c.bf16 %v87, %v87
  %v104 = vunpack.c.l.bf16 %v88
  %v105 = vunpack.c.l.bf16 %v89
  %v106 = vunpack.c.l.bf16 %v90
  %v107 = vunpack.c.l.bf16 %v91
  %v108 = vunpack.c.l.bf16 %v92
  %v109 = vunpack.c.l.bf16 %v93
  %v110 = vunpack.c.l.bf16 %v94
  %v111 = vunpack.c.l.bf16 %v95
  %v112 = vunpack.c.l.bf16 %v96
  %v113 = vunpack.c.l.bf16 %v97
  %v114 = vunpack.c.l.bf16 %v98
  %v115 = vunpack.c.l.bf16 %v99
  %v116 = vunpack.c.l.bf16 %v100
  %v117 = vunpack.c.l.bf16 %v101
  %v118 = vunpack.c.l.bf16 %v102
  %v119 = vunpack.c.l.bf16 %v103
  %136 = vrot.lane.b32.xlu0 %v104, 124
  %v137 = vpop.permute.xlu0 %136
  %138 = vrot.lane.b32.xlu0 %v105, 124
  %v139 = vpop.permute.xlu0 %138
  %140 = vrot.lane.b32.xlu0 %v106, 124
  %v141 = vpop.permute.xlu0 %140
  %142 = vrot.lane.b32.xlu0 %v107, 124
  %v143 = vpop.permute.xlu0 %142
  %144 = vrot.lane.b32.xlu0 %v108, 124
  %v145 = vpop.permute.xlu0 %144
  %146 = vrot.lane.b32.xlu0 %v109, 124
  %v147 = vpop.permute.xlu0 %146
  %148 = vrot.lane.b32.xlu0 %v110, 124
  %v149 = vpop.permute.xlu0 %148
  %150 = vrot.lane.b32.xlu0 %v111, 124
  %v151 = vpop.permute.xlu0 %150
  %152 = vrot.lane.b32.xlu0 %v112, 124
  %v153 = vpop.permute.xlu0 %152
  %154 = vrot.lane.b32.xlu0 %v113, 124
  %v155 = vpop.permute.xlu0 %154
  %156 = vrot.lane.b32.xlu0 %v114, 124
  %v157 = vpop.permute.xlu0 %156
  %158 = vrot.lane.b32.xlu0 %v115, 124
  %v159 = vpop.permute.xlu0 %158
  %160 = vrot.lane.b32.xlu0 %v116, 124
  %v161 = vpop.permute.xlu0 %160
  %162 = vrot.lane.b32.xlu0 %v117, 124
  %v163 = vpop.permute.xlu0 %162
  %164 = vrot.lane.b32.xlu0 %v118, 124
  %v165 = vpop.permute.xlu0 %164
  %166 = vrot.lane.b32.xlu0 %v119, 124
  %v167 = vpop.permute.xlu0 %166
  %v184 = vmax.f32 %v104, %v137
  %v185 = vmax.f32 %v105, %v139
  %v186 = vmax.f32 %v106, %v141
  %v187 = vmax.f32 %v107, %v143
  %v188 = vmax.f32 %v108, %v145
  %v189 = vmax.f32 %v109, %v147
  %v190 = vmax.f32 %v110, %v149
  %v191 = vmax.f32 %v111, %v151
  %v192 = vmax.f32 %v112, %v153
  %v193 = vmax.f32 %v113, %v155
  %v194 = vmax.f32 %v114, %v157
  %v195 = vmax.f32 %v115, %v159
  %v196 = vmax.f32 %v116, %v161
  %v197 = vmax.f32 %v117, %v163
  %v198 = vmax.f32 %v118, %v165
  %v199 = vmax.f32 %v119, %v167
  %v200 = vpack.c.bf16 %v184, %v184
  %v201 = vpack.c.bf16 %v185, %v185
  %v202 = vpack.c.bf16 %v186, %v186
  %v203 = vpack.c.bf16 %v187, %v187
  %v204 = vpack.c.bf16 %v188, %v188
  %v205 = vpack.c.bf16 %v189, %v189
  %v206 = vpack.c.bf16 %v190, %v190
  %v207 = vpack.c.bf16 %v191, %v191
  %v208 = vpack.c.bf16 %v192, %v192
  %v209 = vpack.c.bf16 %v193, %v193
  %v210 = vpack.c.bf16 %v194, %v194
  %v211 = vpack.c.bf16 %v195, %v195
  %v212 = vpack.c.bf16 %v196, %v196
  %v213 = vpack.c.bf16 %v197, %v197
  %v214 = vpack.c.bf16 %v198, %v198
  %v215 = vpack.c.bf16 %v199, %v199
  %vm216 = vcmask 27648
  %217 = vst.msk [vmem:[%s1] sm:$0xf] %vm216, %v200
  %218 = vst.msk [vmem:[%s1 + $0x4] sm:$0xf] %vm216, %v201
  %219 = vst.msk [vmem:[%s1 + $0x8] sm:$0xf] %vm216, %v202
  %220 = vst.msk [vmem:[%s1 + $0xc] sm:$0xf] %vm216, %v203
  %221 = vst.msk [vmem:[%s1 + $0x10] sm:$0xf] %vm216, %v204
  %222 = vst.msk [vmem:[%s1 + $0x14] sm:$0xf] %vm216, %v205
  %223 = vst.msk [vmem:[%s1 + $0x18] sm:$0xf] %vm216, %v206
  %224 = vst.msk [vmem:[%s1 + $0x1c] sm:$0xf] %vm216, %v207
  %225 = vst.msk [vmem:[%s1 + $0x20] sm:$0xf] %vm216, %v208
  %226 = vst.msk [vmem:[%s1 + $0x24] sm:$0xf] %vm216, %v209
  %227 = vst.msk [vmem:[%s1 + $0x28] sm:$0xf] %vm216, %v210
  %228 = vst.msk [vmem:[%s1 + $0x2c] sm:$0xf] %vm216, %v211
  %229 = vst.msk [vmem:[%s1 + $0x30] sm:$0xf] %vm216, %v212
  %230 = vst.msk [vmem:[%s1 + $0x34] sm:$0xf] %vm216, %v213
  %231 = vst.msk [vmem:[%s1 + $0x38] sm:$0xf] %vm216, %v214
  %232 = vst.msk [vmem:[%s1 + $0x3c] sm:$0xf] %vm216, %v215
  // Predicated region
  $region6: #{down_forward.5} parent=0 // pred_check
    _
  $region7: #{down_forward.5} parent=0 // pred_check_branch
    %234 = sbr.rel (0) target = $region9
  $region8: #{down_forward.5} parent=0 // pred_region
    _
  $region9: #{down_forward.5} parent=0 // pred_fallthru
    _
  // Predicated region
  $region10: #{down_forward.5} parent=0 // pred_check
    _
  $region11: #{down_forward.5} parent=0 // pred_check_branch
    %236 = sbr.rel (0) target = $region13
  $region12: #{down_forward.5} parent=0 // pred_region
    _
  $region13: #{down_forward.5} parent=0 // pred_fallthru
    _

// kernel: down_forward.7
$region0: #{down_forward.7}
  #allocation0 [shape = 'u32[]', space=smem, size = 0x4, offset = 0x4, fixed_abs, tag = 'smem constant byte address 0x4 - core index']
  #allocation1 [shape = 'u32[72,128]{1,0:T(1,128)}', space=vmem, size = 0x9000, scoped, tag = 'internal scratch']
  %s0 = inlined_call_operand.vmem [shape: bf16[160,256], index: 0, kind: input, shape index: {}]
  %s1 = inlined_call_operand.vmem [shape: f32[1,256], index: 1, kind: input, shape index: {}]
  %s2 = inlined_call_operand.vmem [shape: f32[1,256], index: 2, kind: input, shape index: {}]
  %s3 = inlined_call_operand.vmem [shape: bf16[160,256], index: 3, kind: output, shape index: {}]
  %s4 = sld [smem:[#allocation0]]
  $region45: #{down_forward.7} parent=0
    _
  %s6 = ssub.s32 1, %s4
  %s7 = scalar_select 0, %s6, %s4
  loop: start=0, step=1, limit=4
  $region2: #{down_forward.7} parent=0 // loop_pre_header
    _
  $region3: #{down_forward.7} parent=0 // loop_header
    %s9 = sphi 0, %s13
    %p10 = scmp.ge.s32.totalorder %s9, 4
    %s19 = sphi 0, %s21
    %s22 = sphi 0, %s19
    %s23 = sphi 0, %s22
    %s39 = sphi 0, %s23
    %s43 = sphi 0, %s43
    %s45 = sphi 0, %s43
    %s46 = sphi 0, %s45
    %s60 = sphi 0, %s46
    %s64 = sphi 0, %s64
    %s66 = sphi 0, %s64
    %s67 = sphi 0, %s66
    %s81 = sphi 0, %s67
    %s87 = sphi 0, %s89
    %s90 = sphi 0, %s87
    %s91 = sphi 0, %s90
    %s107 = sphi 0, %s91
  $region4: #{down_forward.7} parent=0 // loop_header_branch
    %12 = sbr.rel (%p10) target = $region8
  $region5: #{down_forward.7} parent=0 // loop_body
    %s14 = ssub.s32 %s9, 1
    %s15 = ssub.s32 %s9, 2
    %s16 = sadd.s32 %s9, 1
    %s17 = ssub.s32 %s9, %s16
    %p18 = scmp.eq.s32.totalorder %s17, 0
    %s20 = sadd.s32 %s19, 1
    %s21 = scalar_select %p18, %s19, %s20
    %p24 = pneg %p18
    %p25 = scmp.eq.s32.totalorder %s9, 1
    %p26 = por %p24, %p25
    %p27 = scmp.ne.s32.totalorder %s19, %s22
    %p28 = scmp.eq.s32.totalorder %s9, 0
    %p29 = por %p27, %p28
    %p30 = scmp.ne.s32.totalorder %s19, %s22
    %p31 = scmp.eq.s32.totalorder %s14, 1
    %p32 = por %p30, %p31
    %p33 = scmp.ne.s32.totalorder %s22, %s23
    %p34 = scmp.eq.s32.totalorder %s14, 0
    %p35 = por %p33, %p34
    %p36 = scmp.ne.s32.totalorder %s22, %s23
    %p37 = scmp.eq.s32.totalorder %s15, 1
    %p38 = por %p36, %p37
    %p40 = scmp.ne.s32.totalorder %s23, %s39
    %p41 = scmp.eq.s32.totalorder %s15, 0
    %p42 = por %p40, %p41
    %s44 = sadd.s32 %s43, 1
    %p47 = scmp.eq.s32.totalorder %s9, 1
    %p48 = scmp.ne.s32.totalorder %s43, %s45
    %p49 = scmp.eq.s32.totalorder %s9, 0
    %p50 = por %p48, %p49
    %p51 = scmp.ne.s32.totalorder %s43, %s45
    %p52 = scmp.eq.s32.totalorder %s14, 1
    %p53 = por %p51, %p52
    %p54 = scmp.ne.s32.totalorder %s45, %s46
    %p55 = scmp.eq.s32.totalorder %s14, 0
    %p56 = por %p54, %p55
    %p57 = scmp.ne.s32.totalorder %s45, %s46
    %p58 = scmp.eq.s32.totalorder %s15, 1
    %p59 = por %p57, %p58
    %p61 = scmp.ne.s32.totalorder %s46, %s60
    %p62 = scmp.eq.s32.totalorder %s15, 0
    %p63 = por %p61, %p62
    %s65 = sadd.s32 %s64, 1
    %p68 = scmp.eq.s32.totalorder %s9, 1
    %p69 = scmp.ne.s32.totalorder %s64, %s66
    %p70 = scmp.eq.s32.totalorder %s9, 0
    %p71 = por %p69, %p70
    %p72 = scmp.ne.s32.totalorder %s64, %s66
    %p73 = scmp.eq.s32.totalorder %s14, 1
    %p74 = por %p72, %p73
    %p75 = scmp.ne.s32.totalorder %s66, %s67
    %p76 = scmp.eq.s32.totalorder %s14, 0
    %p77 = por %p75, %p76
    %p78 = scmp.ne.s32.totalorder %s66, %s67
    %p79 = scmp.eq.s32.totalorder %s15, 1
    %p80 = por %p78, %p79
    %p82 = scmp.ne.s32.totalorder %s67, %s81
    %p83 = scmp.eq.s32.totalorder %s15, 0
    %p84 = por %p82, %p83
    %s85 = ssub.s32 %s9, %s16
    %p86 = scmp.eq.s32.totalorder %s85, 0
    %s88 = sadd.s32 %s87, 1
    %s89 = scalar_select %p86, %s87, %s88
    %p92 = pneg %p86
    %p93 = scmp.eq.s32.totalorder %s9, 1
    %p94 = por %p92, %p93
    %p95 = scmp.ne.s32.totalorder %s87, %s90
    %p96 = scmp.eq.s32.totalorder %s9, 0
    %p97 = por %p95, %p96
    %p98 = scmp.ne.s32.totalorder %s87, %s90
    %p99 = scmp.eq.s32.totalorder %s14, 1
    %p100 = por %p98, %p99
    %p101 = scmp.ne.s32.totalorder %s90, %s91
    %p102 = scmp.eq.s32.totalorder %s14, 0
    %p103 = por %p101, %p102
    %p104 = scmp.ne.s32.totalorder %s90, %s91
    %p105 = scmp.eq.s32.totalorder %s15, 1
    %p106 = por %p104, %p105
    %p108 = scmp.ne.s32.totalorder %s91, %s107
    %p109 = scmp.eq.s32.totalorder %s15, 0
    %p110 = por %p108, %p109
    %p111 = scmp.le.s32.totalorder 1, %s9
    %p112 = scmp.lt.s32.totalorder %s9, 3
    %p113 = pnand %p111, %p112
    %p114 = pneg %p113
    // Predicated region
    $region9: #{down_forward.7} parent=5 // pred_check
      _
    $region10: #{down_forward.7} parent=5 // pred_check_branch
      %116 = sbr.rel (%p113) target = $region12
    $region11: #{down_forward.7} parent=5 // pred_region
      %s117 = ssub.s32 %s9, 1
      // Predicated region
      $region13: #{down_forward.7} parent=11 // pred_check
        %p118 = pneg %p56
      $region14: #{down_forward.7} parent=11 // pred_check_branch
        %120 = sbr.rel (%p118) target = $region16
      $region15: #{down_forward.7} parent=11 // pred_region
        _
      $region16: #{down_forward.7} parent=11 // pred_fallthru
        _
      // Predicated region
      $region17: #{down_forward.7} parent=11 // pred_check
        %p121 = pneg %p77
      $region18: #{down_forward.7} parent=11 // pred_check_branch
        %123 = sbr.rel (%p121) target = $region20
      $region19: #{down_forward.7} parent=11 // pred_region
        _
      $region20: #{down_forward.7} parent=11 // pred_fallthru
        _
    $region12: #{down_forward.7} parent=5 // pred_fallthru
      _
    %p124 = scmp.lt.s32.totalorder %s9, 2
    // Predicated region
    $region21: #{down_forward.7} parent=5 // pred_check
      %p125 = pneg %p124
    $region22: #{down_forward.7} parent=5 // pred_check_branch
      %127 = sbr.rel (%p125) target = $region24
    $region23: #{down_forward.7} parent=5 // pred_region
      // Predicated region
      $region25: #{down_forward.7} parent=23 // pred_check
        %p128 = pneg %p29
      $region26: #{down_forward.7} parent=23 // pred_check_branch
        %130 = sbr.rel (%p128) target = $region28
      $region27: #{down_forward.7} parent=23 // pred_region
        %s131 = smul.u32 10, %s9
        %p132 = scmp.lt.s32.totalorder %s131, 19
        %s133 = scalar_select %p132, %s131, 19
        %s134 = smul.addr %s133, 2
        %s135 = smul.addr %s134, 4
        %s136 = scalar_lea.vmem %s0, %s135
        %s137 = smul.u32 10, %s9
      $region28: #{down_forward.7} parent=23 // pred_fallthru
        _
    $region24: #{down_forward.7} parent=5 // pred_fallthru
      _
    %p138 = scmp.le.s32.totalorder 1, %s9
    %p139 = scmp.lt.s32.totalorder %s9, 3
    %p140 = pnand %p138, %p139
    %p141 = pneg %p140
    // Predicated region
    $region29: #{down_forward.7} parent=5 // pred_check
      _
    $region30: #{down_forward.7} parent=5 // pred_check_branch
      %143 = sbr.rel (%p140) target = $region32
    $region31: #{down_forward.7} parent=5 // pred_region
      %s144 = ssub.s32 %s9, 1
      %s145 = smul.u32 10, %s14
      %p146 = scmp.lt.s32.totalorder %s145, 19
      %s147 = scalar_select %p146, %s145, 19
      %s148 = smul.addr %s147, 2
      %s149 = smul.addr %s148, 4
      %s150 = scalar_lea.vmem %s0, %s149
      %p151 = pneg %p35
      %p152 = pneg %p32
      %p153 = pneg %p56
      %p154 = pneg %p53
      %p155 = pneg %p77
      %p156 = pneg %p74
      %p157 = pneg %p103
      %p158 = pneg %p100
      %s159 = smul.u32 10, %s14
      %p160 = scmp.lt.s32.totalorder %s159, 19
      %s161 = scalar_select %p160, %s159, 19
      %s162 = smul.addr %s161, 2
      %s163 = smul.addr %s162, 4
      %s164 = scalar_lea.vmem %s3, %s163
      %s165 = smul.u32 10, %s14
      %p166 = scmp.lt.s32.totalorder %s165, 19
      %s167 = scalar_select %p166, %s165, 19
      %s168 = smul.addr %s167, 2
      %s169 = smul.addr %s168, 4
      %s170 = scalar_lea.vmem %s0, %s169
      %s171 = smul.u32 10, %s14
      %s172 = smul.u32 10, %s14
      %p173 = scmp.lt.s32.totalorder %s172, 19
      %s174 = scalar_select %p173, %s172, 19
      %s175 = smul.addr %s174, 2
      %s176 = smul.addr %s175, 4
      %s177 = scalar_lea.vmem %s3, %s176
      %s178 = smul.u32 10, %s14
      %v179 = vld [vmem:[%s170] sm:$0xff]
      %v180 = vld [vmem:[%s170 + $0x8] sm:$0xff]
      %v181 = vld [vmem:[%s170 + $0x10] sm:$0xff]
      %v182 = vld [vmem:[%s170 + $0x18] sm:$0xff]
      %v183 = vld [vmem:[%s170 + $0x20] sm:$0xff]
      %v184 = vld [vmem:[%s170 + $0x28] sm:$0xff]
      %v185 = vld [vmem:[%s170 + $0x30] sm:$0xff]
      %v186 = vld [vmem:[%s170 + $0x38] sm:$0xff]
      %v187 = vld [vmem:[%s170 + $0x40] sm:$0xff]
      %v188 = vld [vmem:[%s170 + $0x48] sm:$0xff]
      %v189 = vunpack.c.l.bf16 %v179
      %v190 = vunpack.c.h.bf16 %v179
      %v191 = vunpack.c.l.bf16 %v180
      %v192 = vunpack.c.h.bf16 %v180
      %v193 = vunpack.c.l.bf16 %v181
      %v194 = vunpack.c.h.bf16 %v181
      %v195 = vunpack.c.l.bf16 %v182
      %v196 = vunpack.c.h.bf16 %v182
      %v197 = vunpack.c.l.bf16 %v183
      %v198 = vunpack.c.h.bf16 %v183
      %v199 = vunpack.c.l.bf16 %v184
      %v200 = vunpack.c.h.bf16 %v184
      %v201 = vunpack.c.l.bf16 %v185
      %v202 = vunpack.c.h.bf16 %v185
      %v203 = vunpack.c.l.bf16 %v186
      %v204 = vunpack.c.h.bf16 %v186
      %v205 = vunpack.c.l.bf16 %v187
      %v206 = vunpack.c.h.bf16 %v187
      %v207 = vunpack.c.l.bf16 %v188
      %v208 = vunpack.c.h.bf16 %v188
      %v209 = vld [vmem:[%s1] sm:$0x3]
      %v211 = vperm.slane %v209, 0
      %v212 = vperm.slane %v209, 1
      %v215 = vmul.f32 %v189, %v211
      %v216 = vmul.f32 %v190, %v212
      %v217 = vmul.f32 %v191, %v211
      %v218 = vmul.f32 %v192, %v212
      %v219 = vmul.f32 %v193, %v211
      %v220 = vmul.f32 %v194, %v212
      %v221 = vmul.f32 %v195, %v211
      %v222 = vmul.f32 %v196, %v212
      %v223 = vmul.f32 %v197, %v211
      %v224 = vmul.f32 %v198, %v212
      %v225 = vmul.f32 %v199, %v211
      %v226 = vmul.f32 %v200, %v212
      %v227 = vmul.f32 %v201, %v211
      %v228 = vmul.f32 %v202, %v212
      %v229 = vmul.f32 %v203, %v211
      %v230 = vmul.f32 %v204, %v212
      %v231 = vmul.f32 %v205, %v211
      %v232 = vmul.f32 %v206, %v212
      %v233 = vmul.f32 %v207, %v211
      %v234 = vmul.f32 %v208, %v212
      %v235 = vld [vmem:[%s2] sm:$0x3]
      %v237 = vperm.slane %v235, 0
      %v238 = vperm.slane %v235, 1
      %v241 = vadd.f32 %v215, %v237
      %v242 = vadd.f32 %v216, %v238
      %v243 = vadd.f32 %v217, %v237
      %v244 = vadd.f32 %v218, %v238
      %v245 = vadd.f32 %v219, %v237
      %v246 = vadd.f32 %v220, %v238
      %v247 = vadd.f32 %v221, %v237
      %v248 = vadd.f32 %v222, %v238
      %v249 = vadd.f32 %v223, %v237
      %v250 = vadd.f32 %v224, %v238
      %v251 = vadd.f32 %v225, %v237
      %v252 = vadd.f32 %v226, %v238
      %v253 = vadd.f32 %v227, %v237
      %v254 = vadd.f32 %v228, %v238
      %v255 = vadd.f32 %v229, %v237
      %v256 = vadd.f32 %v230, %v238
      %v257 = vadd.f32 %v231, %v237
      %v258 = vadd.f32 %v232, %v238
      %v259 = vadd.f32 %v233, %v237
      %v260 = vadd.f32 %v234, %v238
      %v261 = vmax.f32 %v241, 0.0
      %v262 = vmax.f32 %v242, 0.0
      %v263 = vmax.f32 %v243, 0.0
      %v264 = vmax.f32 %v244, 0.0
      %v265 = vmax.f32 %v245, 0.0
      %v266 = vmax.f32 %v246, 0.0
      %v267 = vmax.f32 %v247, 0.0
      %v268 = vmax.f32 %v248, 0.0
      %v269 = vmax.f32 %v249, 0.0
      %v270 = vmax.f32 %v250, 0.0
      %v271 = vmax.f32 %v251, 0.0
      %v272 = vmax.f32 %v252, 0.0
      %v273 = vmax.f32 %v253, 0.0
      %v274 = vmax.f32 %v254, 0.0
      %v275 = vmax.f32 %v255, 0.0
      %v276 = vmax.f32 %v256, 0.0
      %v277 = vmax.f32 %v257, 0.0
      %v278 = vmax.f32 %v258, 0.0
      %v279 = vmax.f32 %v259, 0.0
      %v280 = vmax.f32 %v260, 0.0
      %v281 = vlaneseq
      %v282 = vshrl.u32 %v281, 7
      %v283 = vadd.s32 %v282, 8
      %v284 = vadd.s32 %v282, 16
      %v285 = vadd.s32 %v282, 24
      %v286 = vadd.s32 %v282, 32
      %v287 = vadd.s32 %v282, 40
      %v288 = vadd.s32 %v282, 48
      %v289 = vadd.s32 %v282, 56
      %v290 = vadd.s32 %v282, 64
      %v291 = vadd.s32 %v282, 72
      %vm292 = vcmp.lt.s32.totalorder %v282, 0
      %v293 = vsub.s32 0, %v282
      %v294 = vsel %vm292, %v293, %v282
      %v295 = vand.u32 %v294, 65535
      %v296 = vshrl.u32 %v294, 16
      %v298 = vmul.u32 %v295, 52429
      %v299 = vmul.u32 %v295, 52428
      %v300 = vmul.u32 %v296, 52429
      %v301 = vmul.u32 %v296, 52428
      %v302 = vshll.u32 %v299, 16
      %v303 = vshrl.u32 %v299, 16
      %v304 = vshll.u32 %v300, 16
      %v305 = vshrl.u32 %v300, 16
      %vm306 = vc.u32 %v298, %v302
      %v307 = vsel %vm306, 1, 0
      %v308 = vadd.s32 %v298, %v302
      %v309 = vadd.s32 %v301, %v307
      %vm310 = vc.u32 %v308, %v304
      %v311 = vsel %vm310, 1, 0
      %v312 = vadd.s32 %v308, %v304
      %v313 = vadd.s32 %v309, %v311
      %v314 = vadd.s32 %v313, %v303
      %v315 = vadd.s32 %v314, %v305
      %v316 = vshrl.u32 %v315, 3
      %v317 = vmul.u32 %v316, 10
      %v318 = vsub.s32 %v294, %v317
      %v319 = vsub.s32 0, %v318
      %v320 = vsel %vm292, %v319, %v318
      %vm321 = vcmp.lt.s32.totalorder %v283, 0
      %v322 = vsub.s32 0, %v283
      %v323 = vsel %vm321, %v322, %v283
      %v324 = vand.u32 %v323, 65535
      %v325 = vshrl.u32 %v323, 16
      %v327 = vmul.u32 %v324, 52429
      %v328 = vmul.u32 %v324, 52428
      %v329 = vmul.u32 %v325, 52429
      %v330 = vmul.u32 %v325, 52428
      %v331 = vshll.u32 %v328, 16
      %v332 = vshrl.u32 %v328, 16
      %v333 = vshll.u32 %v329, 16
      %v334 = vshrl.u32 %v329, 16
      %vm335 = vc.u32 %v327, %v331
      %v336 = vsel %vm335, 1, 0
      %v337 = vadd.s32 %v327, %v331
      %v338 = vadd.s32 %v330, %v336
      %vm339 = vc.u32 %v337, %v333
      %v340 = vsel %vm339, 1, 0
      %v341 = vadd.s32 %v337, %v333
      %v342 = vadd.s32 %v338, %v340
      %v343 = vadd.s32 %v342, %v332
      %v344 = vadd.s32 %v343, %v334
      %v345 = vshrl.u32 %v344, 3
      %v346 = vmul.u32 %v345, 10
      %v347 = vsub.s32 %v323, %v346
      %v348 = vsub.s32 0, %v347
      %v349 = vsel %vm321, %v348, %v347
      %vm350 = vcmp.lt.s32.totalorder %v284, 0
      %v351 = vsub.s32 0, %v284
      %v352 = vsel %vm350, %v351, %v284
      %v353 = vand.u32 %v352, 65535
      %v354 = vshrl.u32 %v352, 16
      %v356 = vmul.u32 %v353, 52429
      %v357 = vmul.u32 %v353, 52428
      %v358 = vmul.u32 %v354, 52429
      %v359 = vmul.u32 %v354, 52428
      %v360 = vshll.u32 %v357, 16
      %v361 = vshrl.u32 %v357, 16
      %v362 = vshll.u32 %v358, 16
      %v363 = vshrl.u32 %v358, 16
      %vm364 = vc.u32 %v356, %v360
      %v365 = vsel %vm364, 1, 0
      %v366 = vadd.s32 %v356, %v360
      %v367 = vadd.s32 %v359, %v365
      %vm368 = vc.u32 %v366, %v362
      %v369 = vsel %vm368, 1, 0
      %v370 = vadd.s32 %v366, %v362
      %v371 = vadd.s32 %v367, %v369
      %v372 = vadd.s32 %v371, %v361
      %v373 = vadd.s32 %v372, %v363
      %v374 = vshrl.u32 %v373, 3
      %v375 = vmul.u32 %v374, 10
      %v376 = vsub.s32 %v352, %v375
      %v377 = vsub.s32 0, %v376
      %v378 = vsel %vm350, %v377, %v376
      %vm379 = vcmp.lt.s32.totalorder %v285, 0
      %v380 = vsub.s32 0, %v285
      %v381 = vsel %vm379, %v380, %v285
      %v382 = vand.u32 %v381, 65535
      %v383 = vshrl.u32 %v381, 16
      %v385 = vmul.u32 %v382, 52429
      %v386 = vmul.u32 %v382, 52428
      %v387 = vmul.u32 %v383, 52429
      %v388 = vmul.u32 %v383, 52428
      %v389 = vshll.u32 %v386, 16
      %v390 = vshrl.u32 %v386, 16
      %v391 = vshll.u32 %v387, 16
      %v392 = vshrl.u32 %v387, 16
      %vm393 = vc.u32 %v385, %v389
      %v394 = vsel %vm393, 1, 0
      %v395 = vadd.s32 %v385, %v389
      %v396 = vadd.s32 %v388, %v394
      %vm397 = vc.u32 %v395, %v391
      %v398 = vsel %vm397, 1, 0
      %v399 = vadd.s32 %v395, %v391
      %v400 = vadd.s32 %v396, %v398
      %v401 = vadd.s32 %v400, %v390
      %v402 = vadd.s32 %v401, %v392
      %v403 = vshrl.u32 %v402, 3
      %v404 = vmul.u32 %v403, 10
      %v405 = vsub.s32 %v381, %v404
      %v406 = vsub.s32 0, %v405
      %v407 = vsel %vm379, %v406, %v405
      %vm408 = vcmp.lt.s32.totalorder %v286, 0
      %v409 = vsub.s32 0, %v286
      %v410 = vsel %vm408, %v409, %v286
      %v411 = vand.u32 %v410, 65535
      %v412 = vshrl.u32 %v410, 16
      %v414 = vmul.u32 %v411, 52429
      %v415 = vmul.u32 %v411, 52428
      %v416 = vmul.u32 %v412, 52429
      %v417 = vmul.u32 %v412, 52428
      %v418 = vshll.u32 %v415, 16
      %v419 = vshrl.u32 %v415, 16
      %v420 = vshll.u32 %v416, 16
      %v421 = vshrl.u32 %v416, 16
      %vm422 = vc.u32 %v414, %v418
      %v423 = vsel %vm422, 1, 0
      %v424 = vadd.s32 %v414, %v418
      %v425 = vadd.s32 %v417, %v423
      %vm426 = vc.u32 %v424, %v420
      %v427 = vsel %vm426, 1, 0
      %v428 = vadd.s32 %v424, %v420
      %v429 = vadd.s32 %v425, %v427
      %v430 = vadd.s32 %v429, %v419
      %v431 = vadd.s32 %v430, %v421
      %v432 = vshrl.u32 %v431, 3
      %v433 = vmul.u32 %v432, 10
      %v434 = vsub.s32 %v410, %v433
      %v435 = vsub.s32 0, %v434
      %v436 = vsel %vm408, %v435, %v434
      %vm437 = vcmp.lt.s32.totalorder %v287, 0
      %v438 = vsub.s32 0, %v287
      %v439 = vsel %vm437, %v438, %v287
      %v440 = vand.u32 %v439, 65535
      %v441 = vshrl.u32 %v439, 16
      %v443 = vmul.u32 %v440, 52429
      %v444 = vmul.u32 %v440, 52428
      %v445 = vmul.u32 %v441, 52429
      %v446 = vmul.u32 %v441, 52428
      %v447 = vshll.u32 %v444, 16
      %v448 = vshrl.u32 %v444, 16
      %v449 = vshll.u32 %v445, 16
      %v450 = vshrl.u32 %v445, 16
      %vm451 = vc.u32 %v443, %v447
      %v452 = vsel %vm451, 1, 0
      %v453 = vadd.s32 %v443, %v447
      %v454 = vadd.s32 %v446, %v452
      %vm455 = vc.u32 %v453, %v449
      %v456 = vsel %vm455, 1, 0
      %v457 = vadd.s32 %v453, %v449
      %v458 = vadd.s32 %v454, %v456
      %v459 = vadd.s32 %v458, %v448
      %v460 = vadd.s32 %v459, %v450
      %v461 = vshrl.u32 %v460, 3
      %v462 = vmul.u32 %v461, 10
      %v463 = vsub.s32 %v439, %v462
      %v464 = vsub.s32 0, %v463
      %v465 = vsel %vm437, %v464, %v463
      %vm466 = vcmp.lt.s32.totalorder %v288, 0
      %v467 = vsub.s32 0, %v288
      %v468 = vsel %vm466, %v467, %v288
      %v469 = vand.u32 %v468, 65535
      %v470 = vshrl.u32 %v468, 16
      %v472 = vmul.u32 %v469, 52429
      %v473 = vmul.u32 %v469, 52428
      %v474 = vmul.u32 %v470, 52429
      %v475 = vmul.u32 %v470, 52428
      %v476 = vshll.u32 %v473, 16
      %v477 = vshrl.u32 %v473, 16
      %v478 = vshll.u32 %v474, 16
      %v479 = vshrl.u32 %v474, 16
      %vm480 = vc.u32 %v472, %v476
      %v481 = vsel %vm480, 1, 0
      %v482 = vadd.s32 %v472, %v476
      %v483 = vadd.s32 %v475, %v481
      %vm484 = vc.u32 %v482, %v478
      %v485 = vsel %vm484, 1, 0
      %v486 = vadd.s32 %v482, %v478
      %v487 = vadd.s32 %v483, %v485
      %v488 = vadd.s32 %v487, %v477
      %v489 = vadd.s32 %v488, %v479
      %v490 = vshrl.u32 %v489, 3
      %v491 = vmul.u32 %v490, 10
      %v492 = vsub.s32 %v468, %v491
      %v493 = vsub.s32 0, %v492
      %v494 = vsel %vm466, %v493, %v492
      %vm495 = vcmp.lt.s32.totalorder %v289, 0
      %v496 = vsub.s32 0, %v289
      %v497 = vsel %vm495, %v496, %v289
      %v498 = vand.u32 %v497, 65535
      %v499 = vshrl.u32 %v497, 16
      %v501 = vmul.u32 %v498, 52429
      %v502 = vmul.u32 %v498, 52428
      %v503 = vmul.u32 %v499, 52429
      %v504 = vmul.u32 %v499, 52428
      %v505 = vshll.u32 %v502, 16
      %v506 = vshrl.u32 %v502, 16
      %v507 = vshll.u32 %v503, 16
      %v508 = vshrl.u32 %v503, 16
      %vm509 = vc.u32 %v501, %v505
      %v510 = vsel %vm509, 1, 0
      %v511 = vadd.s32 %v501, %v505
      %v512 = vadd.s32 %v504, %v510
      %vm513 = vc.u32 %v511, %v507
      %v514 = vsel %vm513, 1, 0
      %v515 = vadd.s32 %v511, %v507
      %v516 = vadd.s32 %v512, %v514
      %v517 = vadd.s32 %v516, %v506
      %v518 = vadd.s32 %v517, %v508
      %v519 = vshrl.u32 %v518, 3
      %v520 = vmul.u32 %v519, 10
      %v521 = vsub.s32 %v497, %v520
      %v522 = vsub.s32 0, %v521
      %v523 = vsel %vm495, %v522, %v521
      %vm524 = vcmp.lt.s32.totalorder %v290, 0
      %v525 = vsub.s32 0, %v290
      %v526 = vsel %vm524, %v525, %v290
      %v527 = vand.u32 %v526, 65535
      %v528 = vshrl.u32 %v526, 16
      %v530 = vmul.u32 %v527, 52429
      %v531 = vmul.u32 %v527, 52428
      %v532 = vmul.u32 %v528, 52429
      %v533 = vmul.u32 %v528, 52428
      %v534 = vshll.u32 %v531, 16
      %v535 = vshrl.u32 %v531, 16
      %v536 = vshll.u32 %v532, 16
      %v537 = vshrl.u32 %v532, 16
      %vm538 = vc.u32 %v530, %v534
      %v539 = vsel %vm538, 1, 0
      %v540 = vadd.s32 %v530, %v534
      %v541 = vadd.s32 %v533, %v539
      %vm542 = vc.u32 %v540, %v536
      %v543 = vsel %vm542, 1, 0
      %v544 = vadd.s32 %v540, %v536
      %v545 = vadd.s32 %v541, %v543
      %v546 = vadd.s32 %v545, %v535
      %v547 = vadd.s32 %v546, %v537
      %v548 = vshrl.u32 %v547, 3
      %v549 = vmul.u32 %v548, 10
      %v550 = vsub.s32 %v526, %v549
      %v551 = vsub.s32 0, %v550
      %v552 = vsel %vm524, %v551, %v550
      %vm553 = vcmp.lt.s32.totalorder %v291, 0
      %v554 = vsub.s32 0, %v291
      %v555 = vsel %vm553, %v554, %v291
      %v556 = vand.u32 %v555, 65535
      %v557 = vshrl.u32 %v555, 16
      %v559 = vmul.u32 %v556, 52429
      %v560 = vmul.u32 %v556, 52428
      %v561 = vmul.u32 %v557, 52429
      %v562 = vmul.u32 %v557, 52428
      %v563 = vshll.u32 %v560, 16
      %v564 = vshrl.u32 %v560, 16
      %v565 = vshll.u32 %v561, 16
      %v566 = vshrl.u32 %v561, 16
      %vm567 = vc.u32 %v559, %v563
      %v568 = vsel %vm567, 1, 0
      %v569 = vadd.s32 %v559, %v563
      %v570 = vadd.s32 %v562, %v568
      %vm571 = vc.u32 %v569, %v565
      %v572 = vsel %vm571, 1, 0
      %v573 = vadd.s32 %v569, %v565
      %v574 = vadd.s32 %v570, %v572
      %v575 = vadd.s32 %v574, %v564
      %v576 = vadd.s32 %v575, %v566
      %v577 = vshrl.u32 %v576, 3
      %v578 = vmul.u32 %v577, 10
      %v579 = vsub.s32 %v555, %v578
      %v580 = vsub.s32 0, %v579
      %v581 = vsel %vm553, %v580, %v579
      %vm582 = vcmp.ne.s32.totalorder %v320, 0
      %vm583 = vcmp.ne.s32.totalorder %v349, 0
      %vm584 = vcmp.ne.s32.totalorder %v378, 0
      %vm585 = vcmp.ne.s32.totalorder %v407, 0
      %vm586 = vcmp.ne.s32.totalorder %v436, 0
      %vm587 = vcmp.ne.s32.totalorder %v465, 0
      %vm588 = vcmp.ne.s32.totalorder %v494, 0
      %vm589 = vcmp.ne.s32.totalorder %v523, 0
      %vm590 = vcmp.ne.s32.totalorder %v552, 0
      %vm591 = vcmp.ne.s32.totalorder %v581, 0
      %vm592 = vcmp.lt.s32.totalorder %v320, 0
      %vm593 = vcmp.lt.s32.totalorder %v349, 0
      %vm594 = vcmp.lt.s32.totalorder %v378, 0
      %vm595 = vcmp.lt.s32.totalorder %v407, 0
      %vm596 = vcmp.lt.s32.totalorder %v436, 0
      %vm597 = vcmp.lt.s32.totalorder %v465, 0
      %vm598 = vcmp.lt.s32.totalorder %v494, 0
      %vm599 = vcmp.lt.s32.totalorder %v523, 0
      %vm600 = vcmp.lt.s32.totalorder %v552, 0
      %vm601 = vcmp.lt.s32.totalorder %v581, 0
      %vm602 = vmand %vm592, %vm582
      %vm603 = vmand %vm593, %vm583
      %vm604 = vmand %vm594, %vm584
      %vm605 = vmand %vm595, %vm585
      %vm606 = vmand %vm596, %vm586
      %vm607 = vmand %vm597, %vm587
      %vm608 = vmand %vm598, %vm588
      %vm609 = vmand %vm599, %vm589
      %vm610 = vmand %vm600, %vm590
      %vm611 = vmand %vm601, %vm591
      %v612 = vadd.s32 %v320, 10
      %v613 = vadd.s32 %v349, 10
      %v614 = vadd.s32 %v378, 10
      %v615 = vadd.s32 %v407, 10
      %v616 = vadd.s32 %v436, 10
      %v617 = vadd.s32 %v465, 10
      %v618 = vadd.s32 %v494, 10
      %v619 = vadd.s32 %v523, 10
      %v620 = vadd.s32 %v552, 10
      %v621 = vadd.s32 %v581, 10
      %v622 = vsel %vm602, %v612, %v320
      %v623 = vsel %vm603, %v613, %v349
      %v624 = vsel %vm604, %v614, %v378
      %v625 = vsel %vm605, %v615, %v407
      %v626 = vsel %vm606, %v616, %v436
      %v627 = vsel %vm607, %v617, %v465
      %v628 = vsel %vm608, %v618, %v494
      %v629 = vsel %vm609, %v619, %v523
      %v630 = vsel %vm610, %v620, %v552
      %v631 = vsel %vm611, %v621, %v581
      %vm632 = vcmp.lt.s32.totalorder %v622, 8
      %vm633 = vcmp.lt.s32.totalorder %v623, 8
      %vm634 = vcmp.lt.s32.totalorder %v624, 8
      %vm635 = vcmp.lt.s32.totalorder %v625, 8
      %vm636 = vcmp.lt.s32.totalorder %v626, 8
      %vm637 = vcmp.lt.s32.totalorder %v627, 8
      %vm638 = vcmp.lt.s32.totalorder %v628, 8
      %vm639 = vcmp.lt.s32.totalorder %v629, 8
      %vm640 = vcmp.lt.s32.totalorder %v630, 8
      %vm641 = vcmp.lt.s32.totalorder %v631, 8
      %v642 = vsel %vm632, 1, 0
      %v643 = vsel %vm633, 1, 0
      %v644 = vsel %vm634, 1, 0
      %v645 = vsel %vm635, 1, 0
      %v646 = vsel %vm636, 1, 0
      %v647 = vsel %vm637, 1, 0
      %v648 = vsel %vm638, 1, 0
      %v649 = vsel %vm639, 1, 0
      %v650 = vsel %vm640, 1, 0
      %v651 = vsel %vm641, 1, 0
      %vm652 = vcmp.eq.s32.totalorder %v642, 1
      %vm653 = vcmp.eq.s32.totalorder %v643, 1
      %vm654 = vcmp.eq.s32.totalorder %v644, 1
      %vm655 = vcmp.eq.s32.totalorder %v645, 1
      %vm656 = vcmp.eq.s32.totalorder %v646, 1
      %vm657 = vcmp.eq.s32.totalorder %v647, 1
      %vm658 = vcmp.eq.s32.totalorder %v648, 1
      %vm659 = vcmp.eq.s32.totalorder %v649, 1
      %vm660 = vcmp.eq.s32.totalorder %v650, 1
      %vm661 = vcmp.eq.s32.totalorder %v651, 1
      %v662 = vsel %vm652, %v261, 0.0
      %v663 = vsel %vm652, %v262, 0.0
      %v664 = vsel %vm653, %v263, 0.0
      %v665 = vsel %vm653, %v264, 0.0
      %v666 = vsel %vm654, %v265, 0.0
      %v667 = vsel %vm654, %v266, 0.0
      %v668 = vsel %vm655, %v267, 0.0
      %v669 = vsel %vm655, %v268, 0.0
      %v670 = vsel %vm656, %v269, 0.0
      %v671 = vsel %vm656, %v270, 0.0
      %v672 = vsel %vm657, %v271, 0.0
      %v673 = vsel %vm657, %v272, 0.0
      %v674 = vsel %vm658, %v273, 0.0
      %v675 = vsel %vm658, %v274, 0.0
      %v676 = vsel %vm659, %v275, 0.0
      %v677 = vsel %vm659, %v276, 0.0
      %v678 = vsel %vm660, %v277, 0.0
      %v679 = vsel %vm660, %v278, 0.0
      %v680 = vsel %vm661, %v279, 0.0
      %v681 = vsel %vm661, %v280, 0.0
      %v682 = vpack.c.bf16 %v663, %v662
      %v683 = vpack.c.bf16 %v665, %v664
      %v684 = vpack.c.bf16 %v667, %v666
      %v685 = vpack.c.bf16 %v669, %v668
      %v686 = vpack.c.bf16 %v671, %v670
      %v687 = vpack.c.bf16 %v673, %v672
      %v688 = vpack.c.bf16 %v675, %v674
      %v689 = vpack.c.bf16 %v677, %v676
      %v690 = vpack.c.bf16 %v679, %v678
      %v691 = vpack.c.bf16 %v681, %v680
      %692 = vst [vmem:[%s177] sm:$0xff] %v682
      %693 = vst [vmem:[%s177 + $0x8] sm:$0xff] %v683
      %694 = vst [vmem:[%s177 + $0x10] sm:$0xff] %v684
      %695 = vst [vmem:[%s177 + $0x18] sm:$0xff] %v685
      %696 = vst [vmem:[%s177 + $0x20] sm:$0xff] %v686
      %697 = vst [vmem:[%s177 + $0x28] sm:$0xff] %v687
      %698 = vst [vmem:[%s177 + $0x30] sm:$0xff] %v688
      %699 = vst [vmem:[%s177 + $0x38] sm:$0xff] %v689
      %700 = vst [vmem:[%s177 + $0x40] sm:$0xff] %v690
      %701 = vst [vmem:[%s177 + $0x48] sm:$0xff] %v691
      %s702 = smul.u32 10, %s14
      %p703 = scmp.lt.s32.totalorder %s702, 19
      %s704 = scalar_select %p703, %s702, 19
      %s705 = smul.addr %s704, 2
      %s706 = smul.addr %s705, 4
      %s707 = scalar_lea.vmem %s3, %s706
      // Predicated region
      $region33: #{down_forward.7} parent=31 // pred_check
        %p708 = pneg %p100
      $region34: #{down_forward.7} parent=31 // pred_check_branch
        %710 = sbr.rel (%p708) target = $region36
      $region35: #{down_forward.7} parent=31 // pred_region
        %s711 = smul.u32 10, %s14
      $region36: #{down_forward.7} parent=31 // pred_fallthru
        _
    $region32: #{down_forward.7} parent=5 // pred_fallthru
      _
    %p712 = scmp.le.s32.totalorder 2, %s9
    // Predicated region
    $region37: #{down_forward.7} parent=5 // pred_check
      %p713 = pneg %p712
    $region38: #{down_forward.7} parent=5 // pred_check_branch
      %715 = sbr.rel (%p713) target = $region40
    $region39: #{down_forward.7} parent=5 // pred_region
      %s716 = ssub.s32 %s9, 2
      // Predicated region
      $region41: #{down_forward.7} parent=39 // pred_check
        %p717 = pneg %p106
      $region42: #{down_forward.7} parent=39 // pred_check_branch
        %719 = sbr.rel (%p717) target = $region44
      $region43: #{down_forward.7} parent=39 // pred_region
        %s720 = smul.u32 10, %s15
        %p721 = scmp.lt.s32.totalorder %s720, 19
        %s722 = scalar_select %p721, %s720, 19
        %s723 = smul.addr %s722, 2
        %s724 = smul.addr %s723, 4
        %s725 = scalar_lea.vmem %s3, %s724
      $region44: #{down_forward.7} parent=39 // pred_fallthru
        _
    $region40: #{down_forward.7} parent=5 // pred_fallthru
      _
  $region6: #{down_forward.7} parent=0 // loop_footer
    %s13 = sadd.s32 1, %s9
  $region7: #{down_forward.7} parent=0 // loop_footer_branch
    %8 = sbr.rel target = $region3
  $region8: #{down_forward.7} parent=0 // loop_exit
    _

// kernel: down_forward.9
$region0: #{down_forward.9}
  #allocation0 [shape = 'u32[]', space=smem, size = 0x4, offset = 0x4, fixed_abs, tag = 'smem constant byte address 0x4 - core index']
  #allocation1 [shape = 'u32[72,128]{1,0:T(1,128)}', space=vmem, size = 0x9000, scoped, tag = 'internal scratch']
  %s0 = inlined_call_operand.vmem [shape: bf16[160,256], index: 0, kind: input, shape index: {}]
  %s1 = inlined_call_operand.vmem [shape: f32[1,256], index: 1, kind: input, shape index: {}]
  %s2 = inlined_call_operand.vmem [shape: f32[1,256], index: 2, kind: input, shape index: {}]
  %s3 = inlined_call_operand.vmem [shape: f32[160,256], index: 3, kind: output, shape index: {}]
  %s4 = sld [smem:[#allocation0]]
  $region45: #{down_forward.9} parent=0
    _
  %s6 = ssub.s32 1, %s4
  %s7 = scalar_select 0, %s6, %s4
  loop: start=0, step=1, limit=4
  $region2: #{down_forward.9} parent=0 // loop_pre_header
    _
  $region3: #{down_forward.9} parent=0 // loop_header
    %s9 = sphi 0, %s13
    %p10 = scmp.ge.s32.totalorder %s9, 4
    %s19 = sphi 0, %s21
    %s22 = sphi 0, %s19
    %s23 = sphi 0, %s22
    %s39 = sphi 0, %s23
    %s43 = sphi 0, %s43
    %s45 = sphi 0, %s43
    %s46 = sphi 0, %s45
    %s60 = sphi 0, %s46
    %s64 = sphi 0, %s64
    %s66 = sphi 0, %s64
    %s67 = sphi 0, %s66
    %s81 = sphi 0, %s67
    %s87 = sphi 0, %s89
    %s90 = sphi 0, %s87
    %s91 = sphi 0, %s90
    %s107 = sphi 0, %s91
  $region4: #{down_forward.9} parent=0 // loop_header_branch
    %12 = sbr.rel (%p10) target = $region8
  $region5: #{down_forward.9} parent=0 // loop_body
    %s14 = ssub.s32 %s9, 1
    %s15 = ssub.s32 %s9, 2
    %s16 = sadd.s32 %s9, 1
    %s17 = ssub.s32 %s9, %s16
    %p18 = scmp.eq.s32.totalorder %s17, 0
    %s20 = sadd.s32 %s19, 1
    %s21 = scalar_select %p18, %s19, %s20
    %p24 = pneg %p18
    %p25 = scmp.eq.s32.totalorder %s9, 1
    %p26 = por %p24, %p25
    %p27 = scmp.ne.s32.totalorder %s19, %s22
    %p28 = scmp.eq.s32.totalorder %s9, 0
    %p29 = por %p27, %p28
    %p30 = scmp.ne.s32.totalorder %s19, %s22
    %p31 = scmp.eq.s32.totalorder %s14, 1
    %p32 = por %p30, %p31
    %p33 = scmp.ne.s32.totalorder %s22, %s23
    %p34 = scmp.eq.s32.totalorder %s14, 0
    %p35 = por %p33, %p34
    %p36 = scmp.ne.s32.totalorder %s22, %s23
    %p37 = scmp.eq.s32.totalorder %s15, 1
    %p38 = por %p36, %p37
    %p40 = scmp.ne.s32.totalorder %s23, %s39
    %p41 = scmp.eq.s32.totalorder %s15, 0
    %p42 = por %p40, %p41
    %s44 = sadd.s32 %s43, 1
    %p47 = scmp.eq.s32.totalorder %s9, 1
    %p48 = scmp.ne.s32.totalorder %s43, %s45
    %p49 = scmp.eq.s32.totalorder %s9, 0
    %p50 = por %p48, %p49
    %p51 = scmp.ne.s32.totalorder %s43, %s45
    %p52 = scmp.eq.s32.totalorder %s14, 1
    %p53 = por %p51, %p52
    %p54 = scmp.ne.s32.totalorder %s45, %s46
    %p55 = scmp.eq.s32.totalorder %s14, 0
    %p56 = por %p54, %p55
    %p57 = scmp.ne.s32.totalorder %s45, %s46
    %p58 = scmp.eq.s32.totalorder %s15, 1
    %p59 = por %p57, %p58
    %p61 = scmp.ne.s32.totalorder %s46, %s60
    %p62 = scmp.eq.s32.totalorder %s15, 0
    %p63 = por %p61, %p62
    %s65 = sadd.s32 %s64, 1
    %p68 = scmp.eq.s32.totalorder %s9, 1
    %p69 = scmp.ne.s32.totalorder %s64, %s66
    %p70 = scmp.eq.s32.totalorder %s9, 0
    %p71 = por %p69, %p70
    %p72 = scmp.ne.s32.totalorder %s64, %s66
    %p73 = scmp.eq.s32.totalorder %s14, 1
    %p74 = por %p72, %p73
    %p75 = scmp.ne.s32.totalorder %s66, %s67
    %p76 = scmp.eq.s32.totalorder %s14, 0
    %p77 = por %p75, %p76
    %p78 = scmp.ne.s32.totalorder %s66, %s67
    %p79 = scmp.eq.s32.totalorder %s15, 1
    %p80 = por %p78, %p79
    %p82 = scmp.ne.s32.totalorder %s67, %s81
    %p83 = scmp.eq.s32.totalorder %s15, 0
    %p84 = por %p82, %p83
    %s85 = ssub.s32 %s9, %s16
    %p86 = scmp.eq.s32.totalorder %s85, 0
    %s88 = sadd.s32 %s87, 1
    %s89 = scalar_select %p86, %s87, %s88
    %p92 = pneg %p86
    %p93 = scmp.eq.s32.totalorder %s9, 1
    %p94 = por %p92, %p93
    %p95 = scmp.ne.s32.totalorder %s87, %s90
    %p96 = scmp.eq.s32.totalorder %s9, 0
    %p97 = por %p95, %p96
    %p98 = scmp.ne.s32.totalorder %s87, %s90
    %p99 = scmp.eq.s32.totalorder %s14, 1
    %p100 = por %p98, %p99
    %p101 = scmp.ne.s32.totalorder %s90, %s91
    %p102 = scmp.eq.s32.totalorder %s14, 0
    %p103 = por %p101, %p102
    %p104 = scmp.ne.s32.totalorder %s90, %s91
    %p105 = scmp.eq.s32.totalorder %s15, 1
    %p106 = por %p104, %p105
    %p108 = scmp.ne.s32.totalorder %s91, %s107
    %p109 = scmp.eq.s32.totalorder %s15, 0
    %p110 = por %p108, %p109
    %p111 = scmp.le.s32.totalorder 1, %s9
    %p112 = scmp.lt.s32.totalorder %s9, 3
    %p113 = pnand %p111, %p112
    %p114 = pneg %p113
    // Predicated region
    $region9: #{down_forward.9} parent=5 // pred_check
      _
    $region10: #{down_forward.9} parent=5 // pred_check_branch
      %116 = sbr.rel (%p113) target = $region12
    $region11: #{down_forward.9} parent=5 // pred_region
      %s117 = ssub.s32 %s9, 1
      // Predicated region
      $region13: #{down_forward.9} parent=11 // pred_check
        %p118 = pneg %p56
      $region14: #{down_forward.9} parent=11 // pred_check_branch
        %120 = sbr.rel (%p118) target = $region16
      $region15: #{down_forward.9} parent=11 // pred_region
        _
      $region16: #{down_forward.9} parent=11 // pred_fallthru
        _
      // Predicated region
      $region17: #{down_forward.9} parent=11 // pred_check
        %p121 = pneg %p77
      $region18: #{down_forward.9} parent=11 // pred_check_branch
        %123 = sbr.rel (%p121) target = $region20
      $region19: #{down_forward.9} parent=11 // pred_region
        _
      $region20: #{down_forward.9} parent=11 // pred_fallthru
        _
    $region12: #{down_forward.9} parent=5 // pred_fallthru
      _
    %p124 = scmp.lt.s32.totalorder %s9, 2
    // Predicated region
    $region21: #{down_forward.9} parent=5 // pred_check
      %p125 = pneg %p124
    $region22: #{down_forward.9} parent=5 // pred_check_branch
      %127 = sbr.rel (%p125) target = $region24
    $region23: #{down_forward.9} parent=5 // pred_region
      // Predicated region
      $region25: #{down_forward.9} parent=23 // pred_check
        %p128 = pneg %p29
      $region26: #{down_forward.9} parent=23 // pred_check_branch
        %130 = sbr.rel (%p128) target = $region28
      $region27: #{down_forward.9} parent=23 // pred_region
        %s131 = smul.u32 10, %s9
        %p132 = scmp.lt.s32.totalorder %s131, 19
        %s133 = scalar_select %p132, %s131, 19
        %s134 = smul.addr %s133, 2
        %s135 = smul.addr %s134, 4
        %s136 = scalar_lea.vmem %s0, %s135
        %s137 = smul.u32 10, %s9
      $region28: #{down_forward.9} parent=23 // pred_fallthru
        _
    $region24: #{down_forward.9} parent=5 // pred_fallthru
      _
    %p138 = scmp.le.s32.totalorder 1, %s9
    %p139 = scmp.lt.s32.totalorder %s9, 3
    %p140 = pnand %p138, %p139
    %p141 = pneg %p140
    // Predicated region
    $region29: #{down_forward.9} parent=5 // pred_check
      _
    $region30: #{down_forward.9} parent=5 // pred_check_branch
      %143 = sbr.rel (%p140) target = $region32
    $region31: #{down_forward.9} parent=5 // pred_region
      %s144 = ssub.s32 %s9, 1
      %s145 = smul.u32 10, %s14
      %p146 = scmp.lt.s32.totalorder %s145, 19
      %s147 = scalar_select %p146, %s145, 19
      %s148 = smul.addr %s147, 2
      %s149 = smul.addr %s148, 4
      %s150 = scalar_lea.vmem %s0, %s149
      %p151 = pneg %p35
      %p152 = pneg %p32
      %p153 = pneg %p56
      %p154 = pneg %p53
      %p155 = pneg %p77
      %p156 = pneg %p74
      %p157 = pneg %p103
      %p158 = pneg %p100
      %s159 = smul.u32 10, %s14
      %p160 = scmp.lt.s32.totalorder %s159, 19
      %s161 = scalar_select %p160, %s159, 19
      %s162 = smul.addr %s161, 2
      %s163 = smul.addr %s162, 8
      %s164 = scalar_lea.vmem %s3, %s163
      %s165 = smul.u32 10, %s14
      %p166 = scmp.lt.s32.totalorder %s165, 19
      %s167 = scalar_select %p166, %s165, 19
      %s168 = smul.addr %s167, 2
      %s169 = smul.addr %s168, 4
      %s170 = scalar_lea.vmem %s0, %s169
      %s171 = smul.u32 10, %s14
      %s172 = smul.u32 10, %s14
      %p173 = scmp.lt.s32.totalorder %s172, 19
      %s174 = scalar_select %p173, %s172, 19
      %s175 = smul.addr %s174, 2
      %s176 = smul.addr %s175, 8
      %s177 = scalar_lea.vmem %s3, %s176
      %s178 = smul.u32 10, %s14
      %v179 = vld [vmem:[%s170] sm:$0xff]
      %v180 = vld [vmem:[%s170 + $0x8] sm:$0xff]
      %v181 = vld [vmem:[%s170 + $0x10] sm:$0xff]
      %v182 = vld [vmem:[%s170 + $0x18] sm:$0xff]
      %v183 = vld [vmem:[%s170 + $0x20] sm:$0xff]
      %v184 = vld [vmem:[%s170 + $0x28] sm:$0xff]
      %v185 = vld [vmem:[%s170 + $0x30] sm:$0xff]
      %v186 = vld [vmem:[%s170 + $0x38] sm:$0xff]
      %v187 = vld [vmem:[%s170 + $0x40] sm:$0xff]
      %v188 = vld [vmem:[%s170 + $0x48] sm:$0xff]
      %v189 = vunpack.c.l.bf16 %v179
      %v190 = vunpack.c.h.bf16 %v179
      %v191 = vunpack.c.l.bf16 %v180
      %v192 = vunpack.c.h.bf16 %v180
      %v193 = vunpack.c.l.bf16 %v181
      %v194 = vunpack.c.h.bf16 %v181
      %v195 = vunpack.c.l.bf16 %v182
      %v196 = vunpack.c.h.bf16 %v182
      %v197 = vunpack.c.l.bf16 %v183
      %v198 = vunpack.c.h.bf16 %v183
      %v199 = vunpack.c.l.bf16 %v184
      %v200 = vunpack.c.h.bf16 %v184
      %v201 = vunpack.c.l.bf16 %v185
      %v202 = vunpack.c.h.bf16 %v185
      %v203 = vunpack.c.l.bf16 %v186
      %v204 = vunpack.c.h.bf16 %v186
      %v205 = vunpack.c.l.bf16 %v187
      %v206 = vunpack.c.h.bf16 %v187
      %v207 = vunpack.c.l.bf16 %v188
      %v208 = vunpack.c.h.bf16 %v188
      %v209 = vld [vmem:[%s1] sm:$0x3]
      %v211 = vperm.slane %v209, 0
      %v212 = vperm.slane %v209, 1
      %v215 = vmul.f32 %v189, %v211
      %v216 = vmul.f32 %v190, %v212
      %v217 = vmul.f32 %v191, %v211
      %v218 = vmul.f32 %v192, %v212
      %v219 = vmul.f32 %v193, %v211
      %v220 = vmul.f32 %v194, %v212
      %v221 = vmul.f32 %v195, %v211
      %v222 = vmul.f32 %v196, %v212
      %v223 = vmul.f32 %v197, %v211
      %v224 = vmul.f32 %v198, %v212
      %v225 = vmul.f32 %v199, %v211
      %v226 = vmul.f32 %v200, %v212
      %v227 = vmul.f32 %v201, %v211
      %v228 = vmul.f32 %v202, %v212
      %v229 = vmul.f32 %v203, %v211
      %v230 = vmul.f32 %v204, %v212
      %v231 = vmul.f32 %v205, %v211
      %v232 = vmul.f32 %v206, %v212
      %v233 = vmul.f32 %v207, %v211
      %v234 = vmul.f32 %v208, %v212
      %v235 = vld [vmem:[%s2] sm:$0x3]
      %v237 = vperm.slane %v235, 0
      %v238 = vperm.slane %v235, 1
      %v241 = vadd.f32 %v215, %v237
      %v242 = vadd.f32 %v216, %v238
      %v243 = vadd.f32 %v217, %v237
      %v244 = vadd.f32 %v218, %v238
      %v245 = vadd.f32 %v219, %v237
      %v246 = vadd.f32 %v220, %v238
      %v247 = vadd.f32 %v221, %v237
      %v248 = vadd.f32 %v222, %v238
      %v249 = vadd.f32 %v223, %v237
      %v250 = vadd.f32 %v224, %v238
      %v251 = vadd.f32 %v225, %v237
      %v252 = vadd.f32 %v226, %v238
      %v253 = vadd.f32 %v227, %v237
      %v254 = vadd.f32 %v228, %v238
      %v255 = vadd.f32 %v229, %v237
      %v256 = vadd.f32 %v230, %v238
      %v257 = vadd.f32 %v231, %v237
      %v258 = vadd.f32 %v232, %v238
      %v259 = vadd.f32 %v233, %v237
      %v260 = vadd.f32 %v234, %v238
      %v261 = vmax.f32 %v241, 0.0
      %v262 = vmax.f32 %v242, 0.0
      %v263 = vmax.f32 %v243, 0.0
      %v264 = vmax.f32 %v244, 0.0
      %v265 = vmax.f32 %v245, 0.0
      %v266 = vmax.f32 %v246, 0.0
      %v267 = vmax.f32 %v247, 0.0
      %v268 = vmax.f32 %v248, 0.0
      %v269 = vmax.f32 %v249, 0.0
      %v270 = vmax.f32 %v250, 0.0
      %v271 = vmax.f32 %v251, 0.0
      %v272 = vmax.f32 %v252, 0.0
      %v273 = vmax.f32 %v253, 0.0
      %v274 = vmax.f32 %v254, 0.0
      %v275 = vmax.f32 %v255, 0.0
      %v276 = vmax.f32 %v256, 0.0
      %v277 = vmax.f32 %v257, 0.0
      %v278 = vmax.f32 %v258, 0.0
      %v279 = vmax.f32 %v259, 0.0
      %v280 = vmax.f32 %v260, 0.0
      %281 = vst [vmem:[%s177] sm:$0xff] %v261
      %282 = vst [vmem:[%s177 + $0x8] sm:$0xff] %v262
      %283 = vst [vmem:[%s177 + $0x10] sm:$0xff] %v263
      %284 = vst [vmem:[%s177 + $0x18] sm:$0xff] %v264
      %285 = vst [vmem:[%s177 + $0x20] sm:$0xff] %v265
      %286 = vst [vmem:[%s177 + $0x28] sm:$0xff] %v266
      %287 = vst [vmem:[%s177 + $0x30] sm:$0xff] %v267
      %288 = vst [vmem:[%s177 + $0x38] sm:$0xff] %v268
      %289 = vst [vmem:[%s177 + $0x40] sm:$0xff] %v269
      %290 = vst [vmem:[%s177 + $0x48] sm:$0xff] %v270
      %291 = vst [vmem:[%s177 + $0x50] sm:$0xff] %v271
      %292 = vst [vmem:[%s177 + $0x58] sm:$0xff] %v272
      %293 = vst [vmem:[%s177 + $0x60] sm:$0xff] %v273
      %294 = vst [vmem:[%s177 + $0x68] sm:$0xff] %v274
      %295 = vst [vmem:[%s177 + $0x70] sm:$0xff] %v275
      %296 = vst [vmem:[%s177 + $0x78] sm:$0xff] %v276
      %297 = vst [vmem:[%s177 + $0x80] sm:$0xff] %v277
      %298 = vst [vmem:[%s177 + $0x88] sm:$0xff] %v278
      %299 = vst [vmem:[%s177 + $0x90] sm:$0xff] %v279
      %300 = vst [vmem:[%s177 + $0x98] sm:$0xff] %v280
      %s301 = smul.u32 10, %s14
      %p302 = scmp.lt.s32.totalorder %s301, 19
      %s303 = scalar_select %p302, %s301, 19
      %s304 = smul.addr %s303, 2
      %s305 = smul.addr %s304, 8
      %s306 = scalar_lea.vmem %s3, %s305
      // Predicated region
      $region33: #{down_forward.9} parent=31 // pred_check
        %p307 = pneg %p100
      $region34: #{down_forward.9} parent=31 // pred_check_branch
        %309 = sbr.rel (%p307) target = $region36
      $region35: #{down_forward.9} parent=31 // pred_region
        %s310 = smul.u32 10, %s14
      $region36: #{down_forward.9} parent=31 // pred_fallthru
        _
    $region32: #{down_forward.9} parent=5 // pred_fallthru
      _
    %p311 = scmp.le.s32.totalorder 2, %s9
    // Predicated region
    $region37: #{down_forward.9} parent=5 // pred_check
      %p312 = pneg %p311
    $region38: #{down_forward.9} parent=5 // pred_check_branch
      %314 = sbr.rel (%p312) target = $region40
    $region39: #{down_forward.9} parent=5 // pred_region
      %s315 = ssub.s32 %s9, 2
      // Predicated region
      $region41: #{down_forward.9} parent=39 // pred_check
        %p316 = pneg %p106
      $region42: #{down_forward.9} parent=39 // pred_check_branch
        %318 = sbr.rel (%p316) target = $region44
      $region43: #{down_forward.9} parent=39 // pred_region
        %s319 = smul.u32 10, %s15
        %p320 = scmp.lt.s32.totalorder %s319, 19
        %s321 = scalar_select %p320, %s319, 19
        %s322 = smul.addr %s321, 2
        %s323 = smul.addr %s322, 8
        %s324 = scalar_lea.vmem %s3, %s323
      $region44: #{down_forward.9} parent=39 // pred_fallthru
        _
    $region40: #{down_forward.9} parent=5 // pred_fallthru
      _
  $region6: #{down_forward.9} parent=0 // loop_footer
    %s13 = sadd.s32 1, %s9
  $region7: #{down_forward.9} parent=0 // loop_footer_branch
    %8 = sbr.rel target = $region3
  $region8: #{down_forward.9} parent=0 // loop_exit
    _

// kernel: down_forward.6
$region0: #{down_forward.6}
  #allocation0 [shape = 'u32[]', space=smem, size = 0x4, offset = 0x4, fixed_abs, tag = 'smem constant byte address 0x4 - core index']
  #allocation1 [shape = 'u32[72,128]{1,0:T(1,128)}', space=vmem, size = 0x9000, scoped, tag = 'internal scratch']
  %s0 = inlined_call_operand.vmem [shape: bf16[2,110,16], index: 0, kind: input, shape index: {}]
  %s1 = inlined_call_operand.vmem [shape: bf16[9,16,256], index: 1, kind: input, shape index: {}]
  %s2 = inlined_call_operand.vmem [shape: bf16[160,256], index: 2, kind: output, shape index: {0}]
  %s3 = inlined_call_operand.vmem [shape: f32[2,1,256], index: 3, kind: output, shape index: {1}]
  %s4 = inlined_call_operand.vmem [shape: f32[2,1,256], index: 4, kind: output, shape index: {2}]
  %5 = xla_tuple %s2, %s3, %s4
  %s6 = sld [smem:[#allocation0]]
  $region57: #{down_forward.6} parent=0
    _
  %s8 = ssub.s32 1, %s6
  %s9 = scalar_select 0, %s8, %s6
  loop: start=0, step=1, limit=4
  $region2: #{down_forward.6} parent=0 // loop_pre_header
    _
  $region3: #{down_forward.6} parent=0 // loop_header
    %s11 = sphi 0, %s15
    %p12 = scmp.ge.s32.totalorder %s11, 4
    %s21 = sphi 0, %s23
    %s24 = sphi 0, %s21
    %s25 = sphi 0, %s24
    %s41 = sphi 0, %s25
    %s45 = sphi 0, %s45
    %s47 = sphi 0, %s45
    %s48 = sphi 0, %s47
    %s62 = sphi 0, %s48
    %s68 = sphi 0, %s70
    %s71 = sphi 0, %s68
    %s72 = sphi 0, %s71
    %s88 = sphi 0, %s72
    %s94 = sphi 0, %s96
    %s97 = sphi 0, %s94
    %s98 = sphi 0, %s97
    %s114 = sphi 0, %s98
    %s120 = sphi 0, %s122
    %s123 = sphi 0, %s120
    %s124 = sphi 0, %s123
    %s140 = sphi 0, %s124
  $region4: #{down_forward.6} parent=0 // loop_header_branch
    %14 = sbr.rel (%p12) target = $region8
  $region5: #{down_forward.6} parent=0 // loop_body
    %s16 = ssub.s32 %s11, 1
    %s17 = ssub.s32 %s11, 2
    %s18 = sadd.s32 %s11, 1
    %s19 = ssub.s32 %s11, %s18
    %p20 = scmp.eq.s32.totalorder %s19, 0
    %s22 = sadd.s32 %s21, 1
    %s23 = scalar_select %p20, %s21, %s22
    %p26 = pneg %p20
    %p27 = scmp.eq.s32.totalorder %s11, 1
    %p28 = por %p26, %p27
    %p29 = scmp.ne.s32.totalorder %s21, %s24
    %p30 = scmp.eq.s32.totalorder %s11, 0
    %p31 = por %p29, %p30
    %p32 = scmp.ne.s32.totalorder %s21, %s24
    %p33 = scmp.eq.s32.totalorder %s16, 1
    %p34 = por %p32, %p33
    %p35 = scmp.ne.s32.totalorder %s24, %s25
    %p36 = scmp.eq.s32.totalorder %s16, 0
    %p37 = por %p35, %p36
    %p38 = scmp.ne.s32.totalorder %s24, %s25
    %p39 = scmp.eq.s32.totalorder %s17, 1
    %p40 = por %p38, %p39
    %p42 = scmp.ne.s32.totalorder %s25, %s41
    %p43 = scmp.eq.s32.totalorder %s17, 0
    %p44 = por %p42, %p43
    %s46 = sadd.s32 %s45, 1
    %p49 = scmp.eq.s32.totalorder %s11, 1
    %p50 = scmp.ne.s32.totalorder %s45, %s47
    %p51 = scmp.eq.s32.totalorder %s11, 0
    %p52 = por %p50, %p51
    %p53 = scmp.ne.s32.totalorder %s45, %s47
    %p54 = scmp.eq.s32.totalorder %s16, 1
    %p55 = por %p53, %p54
    %p56 = scmp.ne.s32.totalorder %s47, %s48
    %p57 = scmp.eq.s32.totalorder %s16, 0
    %p58 = por %p56, %p57
    %p59 = scmp.ne.s32.totalorder %s47, %s48
    %p60 = scmp.eq.s32.totalorder %s17, 1
    %p61 = por %p59, %p60
    %p63 = scmp.ne.s32.totalorder %s48, %s62
    %p64 = scmp.eq.s32.totalorder %s17, 0
    %p65 = por %p63, %p64
    %s66 = ssub.s32 %s11, %s18
    %p67 = scmp.eq.s32.totalorder %s66, 0
    %s69 = sadd.s32 %s68, 1
    %s70 = scalar_select %p67, %s68, %s69
    %p73 = pneg %p67
    %p74 = scmp.eq.s32.totalorder %s11, 1
    %p75 = por %p73, %p74
    %p76 = scmp.ne.s32.totalorder %s68, %s71
    %p77 = scmp.eq.s32.totalorder %s11, 0
    %p78 = por %p76, %p77
    %p79 = scmp.ne.s32.totalorder %s68, %s71
    %p80 = scmp.eq.s32.totalorder %s16, 1
    %p81 = por %p79, %p80
    %p82 = scmp.ne.s32.totalorder %s71, %s72
    %p83 = scmp.eq.s32.totalorder %s16, 0
    %p84 = por %p82, %p83
    %p85 = scmp.ne.s32.totalorder %s71, %s72
    %p86 = scmp.eq.s32.totalorder %s17, 1
    %p87 = por %p85, %p86
    %p89 = scmp.ne.s32.totalorder %s72, %s88
    %p90 = scmp.eq.s32.totalorder %s17, 0
    %p91 = por %p89, %p90
    %s92 = ssub.s32 %s11, %s18
    %p93 = scmp.eq.s32.totalorder %s92, 0
    %s95 = sadd.s32 %s94, 1
    %s96 = scalar_select %p93, %s94, %s95
    %p99 = pneg %p93
    %p100 = scmp.eq.s32.totalorder %s11, 1
    %p101 = por %p99, %p100
    %p102 = scmp.ne.s32.totalorder %s94, %s97
    %p103 = scmp.eq.s32.totalorder %s11, 0
    %p104 = por %p102, %p103
    %p105 = scmp.ne.s32.totalorder %s94, %s97
    %p106 = scmp.eq.s32.totalorder %s16, 1
    %p107 = por %p105, %p106
    %p108 = scmp.ne.s32.totalorder %s97, %s98
    %p109 = scmp.eq.s32.totalorder %s16, 0
    %p110 = por %p108, %p109
    %p111 = scmp.ne.s32.totalorder %s97, %s98
    %p112 = scmp.eq.s32.totalorder %s17, 1
    %p113 = por %p111, %p112
    %p115 = scmp.ne.s32.totalorder %s98, %s114
    %p116 = scmp.eq.s32.totalorder %s17, 0
    %p117 = por %p115, %p116
    %s118 = ssub.s32 %s11, %s18
    %p119 = scmp.eq.s32.totalorder %s118, 0
    %s121 = sadd.s32 %s120, 1
    %s122 = scalar_select %p119, %s120, %s121
    %p125 = pneg %p119
    %p126 = scmp.eq.s32.totalorder %s11, 1
    %p127 = por %p125, %p126
    %p128 = scmp.ne.s32.totalorder %s120, %s123
    %p129 = scmp.eq.s32.totalorder %s11, 0
    %p130 = por %p128, %p129
    %p131 = scmp.ne.s32.totalorder %s120, %s123
    %p132 = scmp.eq.s32.totalorder %s16, 1
    %p133 = por %p131, %p132
    %p134 = scmp.ne.s32.totalorder %s123, %s124
    %p135 = scmp.eq.s32.totalorder %s16, 0
    %p136 = por %p134, %p135
    %p137 = scmp.ne.s32.totalorder %s123, %s124
    %p138 = scmp.eq.s32.totalorder %s17, 1
    %p139 = por %p137, %p138
    %p141 = scmp.ne.s32.totalorder %s124, %s140
    %p142 = scmp.eq.s32.totalorder %s17, 0
    %p143 = por %p141, %p142
    %p144 = scmp.le.s32.totalorder 1, %s11
    %p145 = scmp.lt.s32.totalorder %s11, 3
    %p146 = pnand %p144, %p145
    %p147 = pneg %p146
    // Predicated region
    $region9: #{down_forward.6} parent=5 // pred_check
      _
    $region10: #{down_forward.6} parent=5 // pred_check_branch
      %149 = sbr.rel (%p146) target = $region12
    $region11: #{down_forward.6} parent=5 // pred_region
      %s150 = ssub.s32 %s11, 1
      // Predicated region
      $region13: #{down_forward.6} parent=11 // pred_check
        %p151 = pneg %p58
      $region14: #{down_forward.6} parent=11 // pred_check_branch
        %153 = sbr.rel (%p151) target = $region16
      $region15: #{down_forward.6} parent=11 // pred_region
        _
      $region16: #{down_forward.6} parent=11 // pred_fallthru
        _
    $region12: #{down_forward.6} parent=5 // pred_fallthru
      _
    %p154 = scmp.lt.s32.totalorder %s11, 2
    // Predicated region
    $region17: #{down_forward.6} parent=5 // pred_check
      %p155 = pneg %p154
    $region18: #{down_forward.6} parent=5 // pred_check_branch
      %157 = sbr.rel (%p155) target = $region20
    $region19: #{down_forward.6} parent=5 // pred_region
      // Predicated region
      $region21: #{down_forward.6} parent=19 // pred_check
        %p158 = pneg %p31
      $region22: #{down_forward.6} parent=19 // pred_check_branch
        %160 = sbr.rel (%p158) target = $region24
      $region23: #{down_forward.6} parent=19 // pred_region
        %p161 = scmp.lt.s32.totalorder %s11, 1
        %s162 = scalar_select %p161, %s11, 1
        %s163 = smul.addr %s162, 14
        %s164 = smul.addr %s163, 4
        %s165 = scalar_lea.vmem %s0, %s164
      $region24: #{down_forward.6} parent=19 // pred_fallthru
        _
    $region20: #{down_forward.6} parent=5 // pred_fallthru
      _
    %p166 = scmp.le.s32.totalorder 1, %s11
    %p167 = scmp.lt.s32.totalorder %s11, 3
    %p168 = pnand %p166, %p167
    %p169 = pneg %p168
    // Predicated region
    $region25: #{down_forward.6} parent=5 // pred_check
      _
    $region26: #{down_forward.6} parent=5 // pred_check_branch
      %171 = sbr.rel (%p168) target = $region28
    $region27: #{down_forward.6} parent=5 // pred_region
      %s172 = ssub.s32 %s11, 1
      %p173 = scmp.lt.s32.totalorder %s16, 1
      %s174 = scalar_select %p173, %s16, 1
      %s175 = smul.addr %s174, 14
      %s176 = smul.addr %s175, 4
      %s177 = scalar_lea.vmem %s0, %s176
      %p178 = pneg %p37
      %p179 = pneg %p34
      %p180 = pneg %p58
      %p181 = pneg %p55
      %p182 = pneg %p84
      %p183 = pneg %p81
      %s184 = smul.u32 10, %s16
      %p185 = scmp.lt.s32.totalorder %s184, 19
      %s186 = scalar_select %p185, %s184, 19
      %s187 = smul.addr %s186, 2
      %s188 = smul.addr %s187, 4
      %s189 = scalar_lea.vmem %s2, %s188
      %p190 = pneg %p110
      %p191 = pneg %p107
      %p192 = scmp.lt.s32.totalorder %s16, 1
      %s193 = scalar_select %p192, %s16, 1
      %s194 = smul.addr %s193, 2
      %s195 = scalar_lea.vmem %s3, %s194
      %p196 = pneg %p136
      %p197 = pneg %p133
      %p198 = scmp.lt.s32.totalorder %s16, 1
      %s199 = scalar_select %p198, %s16, 1
      %s200 = smul.addr %s199, 2
      %s201 = scalar_lea.vmem %s4, %s200
      %p202 = scmp.lt.s32.totalorder %s16, 1
      %s203 = scalar_select %p202, %s16, 1
      %s204 = smul.addr %s203, 14
      %s205 = smul.addr %s204, 4
      %s206 = scalar_lea.vmem %s0, %s205
      %s207 = smul.u32 10, %s16
      %p208 = scmp.lt.s32.totalorder %s207, 19
      %s209 = scalar_select %p208, %s207, 19
      %s210 = smul.addr %s209, 2
      %s211 = smul.addr %s210, 4
      %s212 = scalar_lea.vmem %s2, %s211
      %s213 = smul.u32 10, %s16
      %p214 = scmp.lt.s32.totalorder %s16, 1
      %s215 = scalar_select %p214, %s16, 1
      %s216 = smul.addr %s215, 2
      %s217 = scalar_lea.vmem %s3, %s216
      %p218 = scmp.lt.s32.totalorder %s16, 1
      %s219 = scalar_select %p218, %s16, 1
      %s220 = smul.addr %s219, 2
      %s221 = scalar_lea.vmem %s4, %s220
      %v223 = vld [vmem:[%s206] sm:$0xf]
      %v224 = vld [vmem:[%s206 + $0x4] sm:$0xf]
      %v225 = vld [vmem:[%s206 + $0x8] sm:$0xf]
      %v226 = vld [vmem:[%s206 + $0xc] sm:$0xf]
      %v227 = vld [vmem:[%s206 + $0x10] sm:$0xf]
      %v228 = vld [vmem:[%s206 + $0x14] sm:$0xf]
      %v229 = vld [vmem:[%s206 + $0x18] sm:$0xf]
      %v230 = vld [vmem:[%s206 + $0x1c] sm:$0xf]
      %v231 = vld [vmem:[%s206 + $0x20] sm:$0xf]
      %v232 = vld [vmem:[%s206 + $0x24] sm:$0xf]
      %v233 = vld [vmem:[%s1] sm:$0xff]
      %v234 = vld [vmem:[%s1 + $0x8] sm:$0xff]
      %v235 = vld [vmem:[%s206 + $0x28] sm:$0x1]
      %s236 = scalar_lea.vmem %s1, 16
      %v237 = vld [vmem:[%s236] sm:$0xff]
      %v238 = vld [vmem:[%s236 + $0x8] sm:$0xff]
      %v250 = vunpack.c.l.b16 %v223
      %v251 = vunpack.c.l.b16 %v224
      %v252 = vunpack.c.l.b16 %v225
      %v253 = vunpack.c.l.b16 %v226
      %v254 = vunpack.c.l.b16 %v227
      %v255 = vunpack.c.l.b16 %v228
      %v256 = vunpack.c.l.b16 %v229
      %v257 = vunpack.c.l.b16 %v230
      %v258 = vunpack.c.l.b16 %v231
      %v259 = vunpack.c.l.b16 %v232
      %v260 = vunpack.c.l.b16 %v235
      %v261 = vpack.c.b16 %v251, %v250
      %v262 = vpack.c.b16 %v253, %v252
      %v263 = vpack.c.b16 %v255, %v254
      %v264 = vpack.c.b16 %v257, %v256
      %v265 = vpack.c.b16 %v259, %v258
      %v266 = vpack.c.b16 %v260, %v260
      %vm267 = vsmask.f32 7424
      %v269 = vshrl.u32 %v261, 16
      %v271 = vshll.u32 %v261, 16
      %v273 = vrot.slane %v271, 1
      %v274 = vor.u32 %v269, %v273
      %v276 = vshll.u32 %v262, 16
      %v278 = vrot.slane %v276, 1
      %v279 = vsel %vm267, %v274, %v278
      %v280 = vshrl.u32 %v262, 16
      %v282 = vor.u32 %v280, %v278
      %v284 = vshll.u32 %v263, 16
      %v286 = vrot.slane %v284, 1
      %v287 = vsel %vm267, %v282, %v286
      %v288 = vshrl.u32 %v263, 16
      %v290 = vor.u32 %v288, %v286
      %v292 = vshll.u32 %v264, 16
      %v294 = vrot.slane %v292, 1
      %v295 = vsel %vm267, %v290, %v294
      %v296 = vshrl.u32 %v264, 16
      %v298 = vor.u32 %v296, %v294
      %v300 = vshll.u32 %v265, 16
      %v302 = vrot.slane %v300, 1
      %v303 = vsel %vm267, %v298, %v302
      %v304 = vshrl.u32 %v265, 16
      %v306 = vor.u32 %v304, %v302
      %v308 = vshll.u32 %v266, 16
      %v310 = vrot.slane %v308, 1
      %v311 = vsel %vm267, %v306, %v310
      %v314 = vunpack.c.l.b16 %v237
      %v315 = vunpack.c.h.b16 %v237
      %v316 = vunpack.c.l.b16 %v238
      %v317 = vunpack.c.h.b16 %v238
      %v318 = vpack.c.b16 %v316, %v314
      %v319 = vpack.c.b16 %v317, %v315
      %vm322 = vcmask 130048
      %v324 = vsel %vm322, %v279, 0
      %v327 = vsel %vm322, %v287, 0
      %v330 = vsel %vm322, %v295, 0
      %v333 = vsel %vm322, %v303, 0
      %v336 = vsel %vm322, %v311, 0
      %338 = vmatpush.bf16.msra.mxu0 0
      %339 = vmatpush.bf16.msra.mxu0 0
      %340 = vmatpush.bf16.msra.mxu0 0
      %341 = vmatpush.bf16.msra.mxu0 0
      %342 = vmatpush.bf16.msra.mxu0 0
      %343 = vmatpush.bf16.msra.mxu0 0
      %344 = vmatpush.bf16.msra.mxu0 0
      %345 = vmatpush.bf16.msra.mxu0 %v318
      %346 = vmatmul.bf16.gmra.mxu0 %v324
      %v347 = vpop.f32.mrf.mxu0
      %v348 = vadd.f32 0.0, %v347
      %v349 = vpop.f32.mrf.mxu0
      %v350 = vadd.f32 0.0, %v349
      %351 = vmatmul.bf16.gmra.mxu0 %v327
      %v352 = vpop.f32.mrf.mxu0
      %v353 = vadd.f32 0.0, %v352
      %v354 = vpop.f32.mrf.mxu0
      %v355 = vadd.f32 0.0, %v354
      %356 = vmatmul.bf16.gmra.mxu0 %v330
      %v357 = vpop.f32.mrf.mxu0
      %v358 = vadd.f32 0.0, %v357
      %v359 = vpop.f32.mrf.mxu0
      %v360 = vadd.f32 0.0, %v359
      %361 = vmatmul.bf16.gmra.mxu0 %v333
      %v362 = vpop.f32.mrf.mxu0
      %v363 = vadd.f32 0.0, %v362
      %v364 = vpop.f32.mrf.mxu0
      %v365 = vadd.f32 0.0, %v364
      %366 = vmatmul.bf16.gmra.mxu0 %v336
      %v367 = vpop.f32.mrf.mxu0
      %v368 = vadd.f32 0.0, %v367
      %v369 = vpop.f32.mrf.mxu0
      %v370 = vadd.f32 0.0, %v369
      %371 = vdwg.mxu0
      %372 = vmatpush.bf16.msra.mxu0 0
      %373 = vmatpush.bf16.msra.mxu0 0
      %374 = vmatpush.bf16.msra.mxu0 0
      %375 = vmatpush.bf16.msra.mxu0 0
      %376 = vmatpush.bf16.msra.mxu0 0
      %377 = vmatpush.bf16.msra.mxu0 0
      %378 = vmatpush.bf16.msra.mxu0 0
      %379 = vmatpush.bf16.msra.mxu0 %v319
      %380 = vmatmul.bf16.gmra.mxu0 %v324
      %v381 = vpop.f32.mrf.mxu0
      %v382 = vadd.f32 0.0, %v381
      %v383 = vpop.f32.mrf.mxu0
      %v384 = vadd.f32 0.0, %v383
      %385 = vmatmul.bf16.gmra.mxu0 %v327
      %v386 = vpop.f32.mrf.mxu0
      %v387 = vadd.f32 0.0, %v386
      %v388 = vpop.f32.mrf.mxu0
      %v389 = vadd.f32 0.0, %v388
      %390 = vmatmul.bf16.gmra.mxu0 %v330
      %v391 = vpop.f32.mrf.mxu0
      %v392 = vadd.f32 0.0, %v391
      %v393 = vpop.f32.mrf.mxu0
      %v394 = vadd.f32 0.0, %v393
      %395 = vmatmul.bf16.gmra.mxu0 %v333
      %v396 = vpop.f32.mrf.mxu0
      %v397 = vadd.f32 0.0, %v396
      %v398 = vpop.f32.mrf.mxu0
      %v399 = vadd.f32 0.0, %v398
      %400 = vmatmul.bf16.gmra.mxu0 %v336
      %v401 = vpop.f32.mrf.mxu0
      %v402 = vadd.f32 0.0, %v401
      %v403 = vpop.f32.mrf.mxu0
      %v404 = vadd.f32 0.0, %v403
      %405 = vdwg.mxu0
      %v408 = vunpack.c.l.b16 %v233
      %v409 = vunpack.c.h.b16 %v233
      %v410 = vunpack.c.l.b16 %v234
      %v411 = vunpack.c.h.b16 %v234
      %v412 = vpack.c.b16 %v410, %v408
      %v413 = vpack.c.b16 %v411, %v409
      %v416 = vsel %vm322, %v261, 0
      %v418 = vsel %vm322, %v262, 0
      %v420 = vsel %vm322, %v263, 0
      %v422 = vsel %vm322, %v264, 0
      %v424 = vsel %vm322, %v265, 0
      %426 = vmatpush.bf16.msra.mxu0 0
      %427 = vmatpush.bf16.msra.mxu0 0
      %428 = vmatpush.bf16.msra.mxu0 0
      %429 = vmatpush.bf16.msra.mxu0 0
      %430 = vmatpush.bf16.msra.mxu0 0
      %431 = vmatpush.bf16.msra.mxu0 0
      %432 = vmatpush.bf16.msra.mxu0 0
      %433 = vmatpush.bf16.msra.mxu0 %v412
      %434 = vmatmul.bf16.gmra.mxu0 %v416
      %v435 = vpop.f32.mrf.mxu0
      %v436 = vadd.f32 %v348, %v435
      %v437 = vpop.f32.mrf.mxu0
      %v438 = vadd.f32 %v350, %v437
      %439 = vmatmul.bf16.gmra.mxu0 %v418
      %v440 = vpop.f32.mrf.mxu0
      %v441 = vadd.f32 %v353, %v440
      %v442 = vpop.f32.mrf.mxu0
      %v443 = vadd.f32 %v355, %v442
      %444 = vmatmul.bf16.gmra.mxu0 %v420
      %v445 = vpop.f32.mrf.mxu0
      %v446 = vadd.f32 %v358, %v445
      %v447 = vpop.f32.mrf.mxu0
      %v448 = vadd.f32 %v360, %v447
      %449 = vmatmul.bf16.gmra.mxu0 %v422
      %v450 = vpop.f32.mrf.mxu0
      %v451 = vadd.f32 %v363, %v450
      %v452 = vpop.f32.mrf.mxu0
      %v453 = vadd.f32 %v365, %v452
      %454 = vmatmul.bf16.gmra.mxu0 %v424
      %v455 = vpop.f32.mrf.mxu0
      %v456 = vadd.f32 %v368, %v455
      %v457 = vpop.f32.mrf.mxu0
      %v458 = vadd.f32 %v370, %v457
      %459 = vdwg.mxu0
      %460 = vmatpush.bf16.msra.mxu0 0
      %461 = vmatpush.bf16.msra.mxu0 0
      %462 = vmatpush.bf16.msra.mxu0 0
      %463 = vmatpush.bf16.msra.mxu0 0
      %464 = vmatpush.bf16.msra.mxu0 0
      %465 = vmatpush.bf16.msra.mxu0 0
      %466 = vmatpush.bf16.msra.mxu0 0
      %467 = vmatpush.bf16.msra.mxu0 %v413
      %468 = vmatmul.bf16.gmra.mxu0 %v416
      %v469 = vpop.f32.mrf.mxu0
      %v470 = vadd.f32 %v382, %v469
      %v471 = vpop.f32.mrf.mxu0
      %v472 = vadd.f32 %v384, %v471
      %473 = vmatmul.bf16.gmra.mxu0 %v418
      %v474 = vpop.f32.mrf.mxu0
      %v475 = vadd.f32 %v387, %v474
      %v476 = vpop.f32.mrf.mxu0
      %v477 = vadd.f32 %v389, %v476
      %478 = vmatmul.bf16.gmra.mxu0 %v420
      %v479 = vpop.f32.mrf.mxu0
      %v480 = vadd.f32 %v392, %v479
      %v481 = vpop.f32.mrf.mxu0
      %v482 = vadd.f32 %v394, %v481
      %483 = vmatmul.bf16.gmra.mxu0 %v422
      %v484 = vpop.f32.mrf.mxu0
      %v485 = vadd.f32 %v397, %v484
      %v486 = vpop.f32.mrf.mxu0
      %v487 = vadd.f32 %v399, %v486
      %488 = vmatmul.bf16.gmra.mxu0 %v424
      %v489 = vpop.f32.mrf.mxu0
      %v490 = vadd.f32 %v402, %v489
      %v491 = vpop.f32.mrf.mxu0
      %v492 = vadd.f32 %v404, %v491
      %493 = vdwg.mxu0
      %v494 = vld [vmem:[%s206] sm:$0xe]
      %s495 = scalar_lea.vmem %s1, 32
      %v496 = vld [vmem:[%s495] sm:$0xff]
      %v497 = vld [vmem:[%s495 + $0x8] sm:$0xff]
      %v499 = vunpack.c.l.b16 %v494
      %v500 = vpack.c.b16 %v251, %v499
      %vm501 = vcmask 1046528
      %v502 = vrot.slane %v500, 1
      %v503 = vrot.slane %v262, 1
      %v504 = vsel %vm501, %v502, %v503
      %v505 = vrot.slane %v263, 1
      %v506 = vsel %vm501, %v503, %v505
      %v507 = vrot.slane %v264, 1
      %v508 = vsel %vm501, %v505, %v507
      %v509 = vrot.slane %v265, 1
      %v510 = vsel %vm501, %v507, %v509
      %v511 = vrot.slane %v266, 1
      %v512 = vsel %vm501, %v509, %v511
      %v515 = vunpack.c.l.b16 %v496
      %v516 = vunpack.c.h.b16 %v496
      %v517 = vunpack.c.l.b16 %v497
      %v518 = vunpack.c.h.b16 %v497
      %v519 = vpack.c.b16 %v517, %v515
      %v520 = vpack.c.b16 %v518, %v516
      %v524 = vsel %vm322, %v504, 0
      %v527 = vsel %vm322, %v506, 0
      %v530 = vsel %vm322, %v508, 0
      %v533 = vsel %vm322, %v510, 0
      %v536 = vsel %vm322, %v512, 0
      %538 = vmatpush.bf16.msra.mxu0 0
      %539 = vmatpush.bf16.msra.mxu0 0
      %540 = vmatpush.bf16.msra.mxu0 0
      %541 = vmatpush.bf16.msra.mxu0 0
      %542 = vmatpush.bf16.msra.mxu0 0
      %543 = vmatpush.bf16.msra.mxu0 0
      %544 = vmatpush.bf16.msra.mxu0 0
      %545 = vmatpush.bf16.msra.mxu0 %v519
      %546 = vmatmul.bf16.gmra.mxu0 %v524
      %v547 = vpop.f32.mrf.mxu0
      %v548 = vadd.f32 0.0, %v547
      %v549 = vpop.f32.mrf.mxu0
      %v550 = vadd.f32 0.0, %v549
      %551 = vmatmul.bf16.gmra.mxu0 %v527
      %v552 = vpop.f32.mrf.mxu0
      %v553 = vadd.f32 0.0, %v552
      %v554 = vpop.f32.mrf.mxu0
      %v555 = vadd.f32 0.0, %v554
      %556 = vmatmul.bf16.gmra.mxu0 %v530
      %v557 = vpop.f32.mrf.mxu0
      %v558 = vadd.f32 0.0, %v557
      %v559 = vpop.f32.mrf.mxu0
      %v560 = vadd.f32 0.0, %v559
      %561 = vmatmul.bf16.gmra.mxu0 %v533
      %v562 = vpop.f32.mrf.mxu0
      %v563 = vadd.f32 0.0, %v562
      %v564 = vpop.f32.mrf.mxu0
      %v565 = vadd.f32 0.0, %v564
      %566 = vmatmul.bf16.gmra.mxu0 %v536
      %v567 = vpop.f32.mrf.mxu0
      %v568 = vadd.f32 0.0, %v567
      %v569 = vpop.f32.mrf.mxu0
      %v570 = vadd.f32 0.0, %v569
      %571 = vdwg.mxu0
      %572 = vmatpush.bf16.msra.mxu0 0
      %573 = vmatpush.bf16.msra.mxu0 0
      %574 = vmatpush.bf16.msra.mxu0 0
      %575 = vmatpush.bf16.msra.mxu0 0
      %576 = vmatpush.bf16.msra.mxu0 0
      %577 = vmatpush.bf16.msra.mxu0 0
      %578 = vmatpush.bf16.msra.mxu0 0
      %579 = vmatpush.bf16.msra.mxu0 %v520
      %580 = vmatmul.bf16.gmra.mxu0 %v524
      %v581 = vpop.f32.mrf.mxu0
      %v582 = vadd.f32 0.0, %v581
      %v583 = vpop.f32.mrf.mxu0
      %v584 = vadd.f32 0.0, %v583
      %585 = vmatmul.bf16.gmra.mxu0 %v527
      %v586 = vpop.f32.mrf.mxu0
      %v587 = vadd.f32 0.0, %v586
      %v588 = vpop.f32.mrf.mxu0
      %v589 = vadd.f32 0.0, %v588
      %590 = vmatmul.bf16.gmra.mxu0 %v530
      %v591 = vpop.f32.mrf.mxu0
      %v592 = vadd.f32 0.0, %v591
      %v593 = vpop.f32.mrf.mxu0
      %v594 = vadd.f32 0.0, %v593
      %595 = vmatmul.bf16.gmra.mxu0 %v533
      %v596 = vpop.f32.mrf.mxu0
      %v597 = vadd.f32 0.0, %v596
      %v598 = vpop.f32.mrf.mxu0
      %v599 = vadd.f32 0.0, %v598
      %600 = vmatmul.bf16.gmra.mxu0 %v536
      %v601 = vpop.f32.mrf.mxu0
      %v602 = vadd.f32 0.0, %v601
      %v603 = vpop.f32.mrf.mxu0
      %v604 = vadd.f32 0.0, %v603
      %605 = vdwg.mxu0
      %v606 = vadd.f32 %v436, %v548
      %v607 = vadd.f32 %v470, %v582
      %v608 = vadd.f32 %v438, %v550
      %v609 = vadd.f32 %v472, %v584
      %v610 = vadd.f32 %v441, %v553
      %v611 = vadd.f32 %v475, %v587
      %v612 = vadd.f32 %v443, %v555
      %v613 = vadd.f32 %v477, %v589
      %v614 = vadd.f32 %v446, %v558
      %v615 = vadd.f32 %v480, %v592
      %v616 = vadd.f32 %v448, %v560
      %v617 = vadd.f32 %v482, %v594
      %v618 = vadd.f32 %v451, %v563
      %v619 = vadd.f32 %v485, %v597
      %v620 = vadd.f32 %v453, %v565
      %v621 = vadd.f32 %v487, %v599
      %v622 = vadd.f32 %v456, %v568
      %v623 = vadd.f32 %v490, %v602
      %v624 = vadd.f32 %v458, %v570
      %v625 = vadd.f32 %v492, %v604
      %v626 = vld [vmem:[%s206 + $0x4] sm:$0xe]
      %v627 = vld [vmem:[%s206 + $0x8] sm:$0xf]
      %v628 = vld [vmem:[%s206 + $0xc] sm:$0xf]
      %v629 = vld [vmem:[%s206 + $0x10] sm:$0xf]
      %v630 = vld [vmem:[%s206 + $0x14] sm:$0xf]
      %v631 = vld [vmem:[%s206 + $0x18] sm:$0xf]
      %v632 = vld [vmem:[%s206 + $0x1c] sm:$0xf]
      %v633 = vld [vmem:[%s206 + $0x20] sm:$0xf]
      %v634 = vld [vmem:[%s206 + $0x24] sm:$0xf]
      %v635 = vld [vmem:[%s206 + $0x28] sm:$0xf]
      %v636 = vld [vmem:[%s206 + $0x2c] sm:$0x1]
      %s637 = scalar_lea.vmem %s1, 48
      %v638 = vld [vmem:[%s637] sm:$0xff]
      %v639 = vld [vmem:[%s637 + $0x8] sm:$0xff]
      %v651 = vunpack.c.l.b16 %v626
      %v652 = vunpack.c.l.b16 %v627
      %v653 = vunpack.c.l.b16 %v628
      %v654 = vunpack.c.l.b16 %v629
      %v655 = vunpack.c.l.b16 %v630
      %v656 = vunpack.c.l.b16 %v631
      %v657 = vunpack.c.l.b16 %v632
      %v658 = vunpack.c.l.b16 %v633
      %v659 = vunpack.c.l.b16 %v634
      %v660 = vunpack.c.l.b16 %v635
      %v661 = vunpack.c.l.b16 %v636
      %v662 = vpack.c.b16 %v652, %v651
      %v663 = vpack.c.b16 %v654, %v653
      %v664 = vpack.c.b16 %v656, %v655
      %v665 = vpack.c.b16 %v658, %v657
      %v666 = vpack.c.b16 %v660, %v659
      %v667 = vpack.c.b16 %v661, %v661
      %v668 = vrot.slane %v662, 1
      %v669 = vrot.slane %v663, 1
      %v670 = vsel %vm501, %v668, %v669
      %v671 = vrot.slane %v664, 1
      %v672 = vsel %vm501, %v669, %v671
      %v673 = vrot.slane %v665, 1
      %v674 = vsel %vm501, %v671, %v673
      %v675 = vrot.slane %v666, 1
      %v676 = vsel %vm501, %v673, %v675
      %v677 = vrot.slane %v667, 1
      %v678 = vsel %vm501, %v675, %v677
      %v681 = vunpack.c.l.b16 %v638
      %v682 = vunpack.c.h.b16 %v638
      %v683 = vunpack.c.l.b16 %v639
      %v684 = vunpack.c.h.b16 %v639
      %v685 = vpack.c.b16 %v683, %v681
      %v686 = vpack.c.b16 %v684, %v682
      %v690 = vsel %vm322, %v670, 0
      %v693 = vsel %vm322, %v672, 0
      %v696 = vsel %vm322, %v674, 0
      %v699 = vsel %vm322, %v676, 0
      %v702 = vsel %vm322, %v678, 0
      %704 = vmatpush.bf16.msra.mxu0 0
      %705 = vmatpush.bf16.msra.mxu0 0
      %706 = vmatpush.bf16.msra.mxu0 0
      %707 = vmatpush.bf16.msra.mxu0 0
      %708 = vmatpush.bf16.msra.mxu0 0
      %709 = vmatpush.bf16.msra.mxu0 0
      %710 = vmatpush.bf16.msra.mxu0 0
      %711 = vmatpush.bf16.msra.mxu0 %v685
      %712 = vmatmul.bf16.gmra.mxu0 %v690
      %v713 = vpop.f32.mrf.mxu0
      %v714 = vadd.f32 0.0, %v713
      %v715 = vpop.f32.mrf.mxu0
      %v716 = vadd.f32 0.0, %v715
      %717 = vmatmul.bf16.gmra.mxu0 %v693
      %v718 = vpop.f32.mrf.mxu0
      %v719 = vadd.f32 0.0, %v718
      %v720 = vpop.f32.mrf.mxu0
      %v721 = vadd.f32 0.0, %v720
      %722 = vmatmul.bf16.gmra.mxu0 %v696
      %v723 = vpop.f32.mrf.mxu0
      %v724 = vadd.f32 0.0, %v723
      %v725 = vpop.f32.mrf.mxu0
      %v726 = vadd.f32 0.0, %v725
      %727 = vmatmul.bf16.gmra.mxu0 %v699
      %v728 = vpop.f32.mrf.mxu0
      %v729 = vadd.f32 0.0, %v728
      %v730 = vpop.f32.mrf.mxu0
      %v731 = vadd.f32 0.0, %v730
      %732 = vmatmul.bf16.gmra.mxu0 %v702
      %v733 = vpop.f32.mrf.mxu0
      %v734 = vadd.f32 0.0, %v733
      %v735 = vpop.f32.mrf.mxu0
      %v736 = vadd.f32 0.0, %v735
      %737 = vdwg.mxu0
      %738 = vmatpush.bf16.msra.mxu0 0
      %739 = vmatpush.bf16.msra.mxu0 0
      %740 = vmatpush.bf16.msra.mxu0 0
      %741 = vmatpush.bf16.msra.mxu0 0
      %742 = vmatpush.bf16.msra.mxu0 0
      %743 = vmatpush.bf16.msra.mxu0 0
      %744 = vmatpush.bf16.msra.mxu0 0
      %745 = vmatpush.bf16.msra.mxu0 %v686
      %746 = vmatmul.bf16.gmra.mxu0 %v690
      %v747 = vpop.f32.mrf.mxu0
      %v748 = vadd.f32 0.0, %v747
      %v749 = vpop.f32.mrf.mxu0
      %v750 = vadd.f32 0.0, %v749
      %751 = vmatmul.bf16.gmra.mxu0 %v693
      %v752 = vpop.f32.mrf.mxu0
      %v753 = vadd.f32 0.0, %v752
      %v754 = vpop.f32.mrf.mxu0
      %v755 = vadd.f32 0.0, %v754
      %756 = vmatmul.bf16.gmra.mxu0 %v696
      %v757 = vpop.f32.mrf.mxu0
      %v758 = vadd.f32 0.0, %v757
      %v759 = vpop.f32.mrf.mxu0
      %v760 = vadd.f32 0.0, %v759
      %761 = vmatmul.bf16.gmra.mxu0 %v699
      %v762 = vpop.f32.mrf.mxu0
      %v763 = vadd.f32 0.0, %v762
      %v764 = vpop.f32.mrf.mxu0
      %v765 = vadd.f32 0.0, %v764
      %766 = vmatmul.bf16.gmra.mxu0 %v702
      %v767 = vpop.f32.mrf.mxu0
      %v768 = vadd.f32 0.0, %v767
      %v769 = vpop.f32.mrf.mxu0
      %v770 = vadd.f32 0.0, %v769
      %771 = vdwg.mxu0
      %v772 = vadd.f32 %v606, %v714
      %v773 = vadd.f32 %v607, %v748
      %v774 = vadd.f32 %v608, %v716
      %v775 = vadd.f32 %v609, %v750
      %v776 = vadd.f32 %v610, %v719
      %v777 = vadd.f32 %v611, %v753
      %v778 = vadd.f32 %v612, %v721
      %v779 = vadd.f32 %v613, %v755
      %v780 = vadd.f32 %v614, %v724
      %v781 = vadd.f32 %v615, %v758
      %v782 = vadd.f32 %v616, %v726
      %v783 = vadd.f32 %v617, %v760
      %v784 = vadd.f32 %v618, %v729
      %v785 = vadd.f32 %v619, %v763
      %v786 = vadd.f32 %v620, %v731
      %v787 = vadd.f32 %v621, %v765
      %v788 = vadd.f32 %v622, %v734
      %v789 = vadd.f32 %v623, %v768
      %v790 = vadd.f32 %v624, %v736
      %v791 = vadd.f32 %v625, %v770
      %v792 = vld [vmem:[%s206 + $0x2c] sm:$0x3]
      %s793 = scalar_lea.vmem %s1, 64
      %v794 = vld [vmem:[%s793] sm:$0xff]
      %v795 = vld [vmem:[%s793 + $0x8] sm:$0xff]
      %v797 = vunpack.c.l.b16 %v792
      %v798 = vpack.c.b16 %v797, %v797
      %vm799 = vsmask.f32 6400
      %v801 = vshrl.u32 %v662, 16
      %v803 = vrot.slane %v801, 1
      %v804 = vshll.u32 %v662, 16
      %v806 = vrot.slane %v804, 2
      %v807 = vor.u32 %v803, %v806
      %v809 = vshrl.u32 %v663, 16
      %v811 = vrot.slane %v809, 1
      %v812 = vshll.u32 %v663, 16
      %v814 = vrot.slane %v812, 2
      %v815 = vor.u32 %v811, %v814
      %v816 = vsel %vm799, %v807, %v815
      %v818 = vshrl.u32 %v664, 16
      %v820 = vrot.slane %v818, 1
      %v821 = vshll.u32 %v664, 16
      %v823 = vrot.slane %v821, 2
      %v824 = vor.u32 %v820, %v823
      %v825 = vsel %vm799, %v815, %v824
      %v827 = vshrl.u32 %v665, 16
      %v829 = vrot.slane %v827, 1
      %v830 = vshll.u32 %v665, 16
      %v832 = vrot.slane %v830, 2
      %v833 = vor.u32 %v829, %v832
      %v834 = vsel %vm799, %v824, %v833
      %v836 = vshrl.u32 %v666, 16
      %v838 = vrot.slane %v836, 1
      %v839 = vshll.u32 %v666, 16
      %v841 = vrot.slane %v839, 2
      %v842 = vor.u32 %v838, %v841
      %v843 = vsel %vm799, %v833, %v842
      %v845 = vshrl.u32 %v798, 16
      %v847 = vrot.slane %v845, 1
      %v848 = vshll.u32 %v798, 16
      %v850 = vrot.slane %v848, 2
      %v851 = vor.u32 %v847, %v850
      %v852 = vsel %vm799, %v842, %v851
      %v855 = vunpack.c.l.b16 %v794
      %v856 = vunpack.c.h.b16 %v794
      %v857 = vunpack.c.l.b16 %v795
      %v858 = vunpack.c.h.b16 %v795
      %v859 = vpack.c.b16 %v857, %v855
      %v860 = vpack.c.b16 %v858, %v856
      %v864 = vsel %vm322, %v816, 0
      %v867 = vsel %vm322, %v825, 0
      %v870 = vsel %vm322, %v834, 0
      %v873 = vsel %vm322, %v843, 0
      %v876 = vsel %vm322, %v852, 0
      %878 = vmatpush.bf16.msra.mxu0 0
      %879 = vmatpush.bf16.msra.mxu0 0
      %880 = vmatpush.bf16.msra.mxu0 0
      %881 = vmatpush.bf16.msra.mxu0 0
      %882 = vmatpush.bf16.msra.mxu0 0
      %883 = vmatpush.bf16.msra.mxu0 0
      %884 = vmatpush.bf16.msra.mxu0 0
      %885 = vmatpush.bf16.msra.mxu0 %v859
      %886 = vmatmul.bf16.gmra.mxu0 %v864
      %v887 = vpop.f32.mrf.mxu0
      %v888 = vadd.f32 0.0, %v887
      %v889 = vpop.f32.mrf.mxu0
      %v890 = vadd.f32 0.0, %v889
      %891 = vmatmul.bf16.gmra.mxu0 %v867
      %v892 = vpop.f32.mrf.mxu0
      %v893 = vadd.f32 0.0, %v892
      %v894 = vpop.f32.mrf.mxu0
      %v895 = vadd.f32 0.0, %v894
      %896 = vmatmul.bf16.gmra.mxu0 %v870
      %v897 = vpop.f32.mrf.mxu0
      %v898 = vadd.f32 0.0, %v897
      %v899 = vpop.f32.mrf.mxu0
      %v900 = vadd.f32 0.0, %v899
      %901 = vmatmul.bf16.gmra.mxu0 %v873
      %v902 = vpop.f32.mrf.mxu0
      %v903 = vadd.f32 0.0, %v902
      %v904 = vpop.f32.mrf.mxu0
      %v905 = vadd.f32 0.0, %v904
      %906 = vmatmul.bf16.gmra.mxu0 %v876
      %v907 = vpop.f32.mrf.mxu0
      %v908 = vadd.f32 0.0, %v907
      %v909 = vpop.f32.mrf.mxu0
      %v910 = vadd.f32 0.0, %v909
      %911 = vdwg.mxu0
      %912 = vmatpush.bf16.msra.mxu0 0
      %913 = vmatpush.bf16.msra.mxu0 0
      %914 = vmatpush.bf16.msra.mxu0 0
      %915 = vmatpush.bf16.msra.mxu0 0
      %916 = vmatpush.bf16.msra.mxu0 0
      %917 = vmatpush.bf16.msra.mxu0 0
      %918 = vmatpush.bf16.msra.mxu0 0
      %919 = vmatpush.bf16.msra.mxu0 %v860
      %920 = vmatmul.bf16.gmra.mxu0 %v864
      %v921 = vpop.f32.mrf.mxu0
      %v922 = vadd.f32 0.0, %v921
      %v923 = vpop.f32.mrf.mxu0
      %v924 = vadd.f32 0.0, %v923
      %925 = vmatmul.bf16.gmra.mxu0 %v867
      %v926 = vpop.f32.mrf.mxu0
      %v927 = vadd.f32 0.0, %v926
      %v928 = vpop.f32.mrf.mxu0
      %v929 = vadd.f32 0.0, %v928
      %930 = vmatmul.bf16.gmra.mxu0 %v870
      %v931 = vpop.f32.mrf.mxu0
      %v932 = vadd.f32 0.0, %v931
      %v933 = vpop.f32.mrf.mxu0
      %v934 = vadd.f32 0.0, %v933
      %935 = vmatmul.bf16.gmra.mxu0 %v873
      %v936 = vpop.f32.mrf.mxu0
      %v937 = vadd.f32 0.0, %v936
      %v938 = vpop.f32.mrf.mxu0
      %v939 = vadd.f32 0.0, %v938
      %940 = vmatmul.bf16.gmra.mxu0 %v876
      %v941 = vpop.f32.mrf.mxu0
      %v942 = vadd.f32 0.0, %v941
      %v943 = vpop.f32.mrf.mxu0
      %v944 = vadd.f32 0.0, %v943
      %945 = vdwg.mxu0
      %v946 = vadd.f32 %v772, %v888
      %v947 = vadd.f32 %v773, %v922
      %v948 = vadd.f32 %v774, %v890
      %v949 = vadd.f32 %v775, %v924
      %v950 = vadd.f32 %v776, %v893
      %v951 = vadd.f32 %v777, %v927
      %v952 = vadd.f32 %v778, %v895
      %v953 = vadd.f32 %v779, %v929
      %v954 = vadd.f32 %v780, %v898
      %v955 = vadd.f32 %v781, %v932
      %v956 = vadd.f32 %v782, %v900
      %v957 = vadd.f32 %v783, %v934
      %v958 = vadd.f32 %v784, %v903
      %v959 = vadd.f32 %v785, %v937
      %v960 = vadd.f32 %v786, %v905
      %v961 = vadd.f32 %v787, %v939
      %v962 = vadd.f32 %v788, %v908
      %v963 = vadd.f32 %v789, %v942
      %v964 = vadd.f32 %v790, %v910
      %v965 = vadd.f32 %v791, %v944
      %v966 = vld [vmem:[%s206 + $0x4] sm:$0xc]
      %s967 = scalar_lea.vmem %s1, 80
      %v968 = vld [vmem:[%s967] sm:$0xff]
      %v969 = vld [vmem:[%s967 + $0x8] sm:$0xff]
      %v971 = vunpack.c.l.b16 %v966
      %v972 = vpack.c.b16 %v652, %v971
      %vm973 = vcmask 1045504
      %v974 = vrot.slane %v972, 2
      %v975 = vrot.slane %v663, 2
      %v976 = vsel %vm973, %v974, %v975
      %v977 = vrot.slane %v664, 2
      %v978 = vsel %vm973, %v975, %v977
      %v979 = vrot.slane %v665, 2
      %v980 = vsel %vm973, %v977, %v979
      %v981 = vrot.slane %v666, 2
      %v982 = vsel %vm973, %v979, %v981
      %v983 = vrot.slane %v798, 2
      %v984 = vsel %vm973, %v981, %v983
      %v987 = vunpack.c.l.b16 %v968
      %v988 = vunpack.c.h.b16 %v968
      %v989 = vunpack.c.l.b16 %v969
      %v990 = vunpack.c.h.b16 %v969
      %v991 = vpack.c.b16 %v989, %v987
      %v992 = vpack.c.b16 %v990, %v988
      %v996 = vsel %vm322, %v976, 0
      %v999 = vsel %vm322, %v978, 0
      %v1002 = vsel %vm322, %v980, 0
      %v1005 = vsel %vm322, %v982, 0
      %v1008 = vsel %vm322, %v984, 0
      %1010 = vmatpush.bf16.msra.mxu0 0
      %1011 = vmatpush.bf16.msra.mxu0 0
      %1012 = vmatpush.bf16.msra.mxu0 0
      %1013 = vmatpush.bf16.msra.mxu0 0
      %1014 = vmatpush.bf16.msra.mxu0 0
      %1015 = vmatpush.bf16.msra.mxu0 0
      %1016 = vmatpush.bf16.msra.mxu0 0
      %1017 = vmatpush.bf16.msra.mxu0 %v991
      %1018 = vmatmul.bf16.gmra.mxu0 %v996
      %v1019 = vpop.f32.mrf.mxu0
      %v1020 = vadd.f32 0.0, %v1019
      %v1021 = vpop.f32.mrf.mxu0
      %v1022 = vadd.f32 0.0, %v1021
      %1023 = vmatmul.bf16.gmra.mxu0 %v999
      %v1024 = vpop.f32.mrf.mxu0
      %v1025 = vadd.f32 0.0, %v1024
      %v1026 = vpop.f32.mrf.mxu0
      %v1027 = vadd.f32 0.0, %v1026
      %1028 = vmatmul.bf16.gmra.mxu0 %v1002
      %v1029 = vpop.f32.mrf.mxu0
      %v1030 = vadd.f32 0.0, %v1029
      %v1031 = vpop.f32.mrf.mxu0
      %v1032 = vadd.f32 0.0, %v1031
      %1033 = vmatmul.bf16.gmra.mxu0 %v1005
      %v1034 = vpop.f32.mrf.mxu0
      %v1035 = vadd.f32 0.0, %v1034
      %v1036 = vpop.f32.mrf.mxu0
      %v1037 = vadd.f32 0.0, %v1036
      %1038 = vmatmul.bf16.gmra.mxu0 %v1008
      %v1039 = vpop.f32.mrf.mxu0
      %v1040 = vadd.f32 0.0, %v1039
      %v1041 = vpop.f32.mrf.mxu0
      %v1042 = vadd.f32 0.0, %v1041
      %1043 = vdwg.mxu0
      %1044 = vmatpush.bf16.msra.mxu0 0
      %1045 = vmatpush.bf16.msra.mxu0 0
      %1046 = vmatpush.bf16.msra.mxu0 0
      %1047 = vmatpush.bf16.msra.mxu0 0
      %1048 = vmatpush.bf16.msra.mxu0 0
      %1049 = vmatpush.bf16.msra.mxu0 0
      %1050 = vmatpush.bf16.msra.mxu0 0
      %1051 = vmatpush.bf16.msra.mxu0 %v992
      %1052 = vmatmul.bf16.gmra.mxu0 %v996
      %v1053 = vpop.f32.mrf.mxu0
      %v1054 = vadd.f32 0.0, %v1053
      %v1055 = vpop.f32.mrf.mxu0
      %v1056 = vadd.f32 0.0, %v1055
      %1057 = vmatmul.bf16.gmra.mxu0 %v999
      %v1058 = vpop.f32.mrf.mxu0
      %v1059 = vadd.f32 0.0, %v1058
      %v1060 = vpop.f32.mrf.mxu0
      %v1061 = vadd.f32 0.0, %v1060
      %1062 = vmatmul.bf16.gmra.mxu0 %v1002
      %v1063 = vpop.f32.mrf.mxu0
      %v1064 = vadd.f32 0.0, %v1063
      %v1065 = vpop.f32.mrf.mxu0
      %v1066 = vadd.f32 0.0, %v1065
      %1067 = vmatmul.bf16.gmra.mxu0 %v1005
      %v1068 = vpop.f32.mrf.mxu0
      %v1069 = vadd.f32 0.0, %v1068
      %v1070 = vpop.f32.mrf.mxu0
      %v1071 = vadd.f32 0.0, %v1070
      %1072 = vmatmul.bf16.gmra.mxu0 %v1008
      %v1073 = vpop.f32.mrf.mxu0
      %v1074 = vadd.f32 0.0, %v1073
      %v1075 = vpop.f32.mrf.mxu0
      %v1076 = vadd.f32 0.0, %v1075
      %1077 = vdwg.mxu0
      %v1078 = vadd.f32 %v946, %v1020
      %v1079 = vadd.f32 %v947, %v1054
      %v1080 = vadd.f32 %v948, %v1022
      %v1081 = vadd.f32 %v949, %v1056
      %v1082 = vadd.f32 %v950, %v1025
      %v1083 = vadd.f32 %v951, %v1059
      %v1084 = vadd.f32 %v952, %v1027
      %v1085 = vadd.f32 %v953, %v1061
      %v1086 = vadd.f32 %v954, %v1030
      %v1087 = vadd.f32 %v955, %v1064
      %v1088 = vadd.f32 %v956, %v1032
      %v1089 = vadd.f32 %v957, %v1066
      %v1090 = vadd.f32 %v958, %v1035
      %v1091 = vadd.f32 %v959, %v1069
      %v1092 = vadd.f32 %v960, %v1037
      %v1093 = vadd.f32 %v961, %v1071
      %v1094 = vadd.f32 %v962, %v1040
      %v1095 = vadd.f32 %v963, %v1074
      %v1096 = vadd.f32 %v964, %v1042
      %v1097 = vadd.f32 %v965, %v1076
      %v1098 = vld [vmem:[%s206 + $0x8] sm:$0xc]
      %v1099 = vld [vmem:[%s206 + $0xc] sm:$0xf]
      %v1100 = vld [vmem:[%s206 + $0x10] sm:$0xf]
      %v1101 = vld [vmem:[%s206 + $0x14] sm:$0xf]
      %v1102 = vld [vmem:[%s206 + $0x18] sm:$0xf]
      %v1103 = vld [vmem:[%s206 + $0x1c] sm:$0xf]
      %v1104 = vld [vmem:[%s206 + $0x20] sm:$0xf]
      %v1105 = vld [vmem:[%s206 + $0x24] sm:$0xf]
      %v1106 = vld [vmem:[%s206 + $0x28] sm:$0xf]
      %v1107 = vld [vmem:[%s206 + $0x2c] sm:$0xf]
      %v1108 = vld [vmem:[%s206 + $0x30] sm:$0x3]
      %s1109 = scalar_lea.vmem %s1, 96
      %v1110 = vld [vmem:[%s1109] sm:$0xff]
      %v1111 = vld [vmem:[%s1109 + $0x8] sm:$0xff]
      %v1123 = vunpack.c.l.b16 %v1098
      %v1124 = vunpack.c.l.b16 %v1099
      %v1125 = vunpack.c.l.b16 %v1100
      %v1126 = vunpack.c.l.b16 %v1101
      %v1127 = vunpack.c.l.b16 %v1102
      %v1128 = vunpack.c.l.b16 %v1103
      %v1129 = vunpack.c.l.b16 %v1104
      %v1130 = vunpack.c.l.b16 %v1105
      %v1131 = vunpack.c.l.b16 %v1106
      %v1132 = vunpack.c.l.b16 %v1107
      %v1133 = vunpack.c.l.b16 %v1108
      %v1134 = vpack.c.b16 %v1124, %v1123
      %v1135 = vpack.c.b16 %v1126, %v1125
      %v1136 = vpack.c.b16 %v1128, %v1127
      %v1137 = vpack.c.b16 %v1130, %v1129
      %v1138 = vpack.c.b16 %v1132, %v1131
      %v1139 = vpack.c.b16 %v1133, %v1133
      %v1140 = vrot.slane %v1134, 2
      %v1141 = vrot.slane %v1135, 2
      %v1142 = vsel %vm973, %v1140, %v1141
      %v1143 = vrot.slane %v1136, 2
      %v1144 = vsel %vm973, %v1141, %v1143
      %v1145 = vrot.slane %v1137, 2
      %v1146 = vsel %vm973, %v1143, %v1145
      %v1147 = vrot.slane %v1138, 2
      %v1148 = vsel %vm973, %v1145, %v1147
      %v1149 = vrot.slane %v1139, 2
      %v1150 = vsel %vm973, %v1147, %v1149
      %v1153 = vunpack.c.l.b16 %v1110
      %v1154 = vunpack.c.h.b16 %v1110
      %v1155 = vunpack.c.l.b16 %v1111
      %v1156 = vunpack.c.h.b16 %v1111
      %v1157 = vpack.c.b16 %v1155, %v1153
      %v1158 = vpack.c.b16 %v1156, %v1154
      %v1162 = vsel %vm322, %v1142, 0
      %v1165 = vsel %vm322, %v1144, 0
      %v1168 = vsel %vm322, %v1146, 0
      %v1171 = vsel %vm322, %v1148, 0
      %v1174 = vsel %vm322, %v1150, 0
      %1176 = vmatpush.bf16.msra.mxu0 0
      %1177 = vmatpush.bf16.msra.mxu0 0
      %1178 = vmatpush.bf16.msra.mxu0 0
      %1179 = vmatpush.bf16.msra.mxu0 0
      %1180 = vmatpush.bf16.msra.mxu0 0
      %1181 = vmatpush.bf16.msra.mxu0 0
      %1182 = vmatpush.bf16.msra.mxu0 0
      %1183 = vmatpush.bf16.msra.mxu0 %v1157
      %1184 = vmatmul.bf16.gmra.mxu0 %v1162
      %v1185 = vpop.f32.mrf.mxu0
      %v1186 = vadd.f32 0.0, %v1185
      %v1187 = vpop.f32.mrf.mxu0
      %v1188 = vadd.f32 0.0, %v1187
      %1189 = vmatmul.bf16.gmra.mxu0 %v1165
      %v1190 = vpop.f32.mrf.mxu0
      %v1191 = vadd.f32 0.0, %v1190
      %v1192 = vpop.f32.mrf.mxu0
      %v1193 = vadd.f32 0.0, %v1192
      %1194 = vmatmul.bf16.gmra.mxu0 %v1168
      %v1195 = vpop.f32.mrf.mxu0
      %v1196 = vadd.f32 0.0, %v1195
      %v1197 = vpop.f32.mrf.mxu0
      %v1198 = vadd.f32 0.0, %v1197
      %1199 = vmatmul.bf16.gmra.mxu0 %v1171
      %v1200 = vpop.f32.mrf.mxu0
      %v1201 = vadd.f32 0.0, %v1200
      %v1202 = vpop.f32.mrf.mxu0
      %v1203 = vadd.f32 0.0, %v1202
      %1204 = vmatmul.bf16.gmra.mxu0 %v1174
      %v1205 = vpop.f32.mrf.mxu0
      %v1206 = vadd.f32 0.0, %v1205
      %v1207 = vpop.f32.mrf.mxu0
      %v1208 = vadd.f32 0.0, %v1207
      %1209 = vdwg.mxu0
      %1210 = vmatpush.bf16.msra.mxu0 0
      %1211 = vmatpush.bf16.msra.mxu0 0
      %1212 = vmatpush.bf16.msra.mxu0 0
      %1213 = vmatpush.bf16.msra.mxu0 0
      %1214 = vmatpush.bf16.msra.mxu0 0
      %1215 = vmatpush.bf16.msra.mxu0 0
      %1216 = vmatpush.bf16.msra.mxu0 0
      %1217 = vmatpush.bf16.msra.mxu0 %v1158
      %1218 = vmatmul.bf16.gmra.mxu0 %v1162
      %v1219 = vpop.f32.mrf.mxu0
      %v1220 = vadd.f32 0.0, %v1219
      %v1221 = vpop.f32.mrf.mxu0
      %v1222 = vadd.f32 0.0, %v1221
      %1223 = vmatmul.bf16.gmra.mxu0 %v1165
      %v1224 = vpop.f32.mrf.mxu0
      %v1225 = vadd.f32 0.0, %v1224
      %v1226 = vpop.f32.mrf.mxu0
      %v1227 = vadd.f32 0.0, %v1226
      %1228 = vmatmul.bf16.gmra.mxu0 %v1168
      %v1229 = vpop.f32.mrf.mxu0
      %v1230 = vadd.f32 0.0, %v1229
      %v1231 = vpop.f32.mrf.mxu0
      %v1232 = vadd.f32 0.0, %v1231
      %1233 = vmatmul.bf16.gmra.mxu0 %v1171
      %v1234 = vpop.f32.mrf.mxu0
      %v1235 = vadd.f32 0.0, %v1234
      %v1236 = vpop.f32.mrf.mxu0
      %v1237 = vadd.f32 0.0, %v1236
      %1238 = vmatmul.bf16.gmra.mxu0 %v1174
      %v1239 = vpop.f32.mrf.mxu0
      %v1240 = vadd.f32 0.0, %v1239
      %v1241 = vpop.f32.mrf.mxu0
      %v1242 = vadd.f32 0.0, %v1241
      %1243 = vdwg.mxu0
      %v1244 = vadd.f32 %v1078, %v1186
      %v1245 = vadd.f32 %v1079, %v1220
      %v1246 = vadd.f32 %v1080, %v1188
      %v1247 = vadd.f32 %v1081, %v1222
      %v1248 = vadd.f32 %v1082, %v1191
      %v1249 = vadd.f32 %v1083, %v1225
      %v1250 = vadd.f32 %v1084, %v1193
      %v1251 = vadd.f32 %v1085, %v1227
      %v1252 = vadd.f32 %v1086, %v1196
      %v1253 = vadd.f32 %v1087, %v1230
      %v1254 = vadd.f32 %v1088, %v1198
      %v1255 = vadd.f32 %v1089, %v1232
      %v1256 = vadd.f32 %v1090, %v1201
      %v1257 = vadd.f32 %v1091, %v1235
      %v1258 = vadd.f32 %v1092, %v1203
      %v1259 = vadd.f32 %v1093, %v1237
      %v1260 = vadd.f32 %v1094, %v1206
      %v1261 = vadd.f32 %v1095, %v1240
      %v1262 = vadd.f32 %v1096, %v1208
      %v1263 = vadd.f32 %v1097, %v1242
      %v1264 = vld [vmem:[%s206 + $0x30] sm:$0x7]
      %s1265 = scalar_lea.vmem %s1, 112
      %v1266 = vld [vmem:[%s1265] sm:$0xff]
      %v1267 = vld [vmem:[%s1265 + $0x8] sm:$0xff]
      %v1269 = vunpack.c.l.b16 %v1264
      %v1270 = vpack.c.b16 %v1269, %v1269
      %vm1271 = vsmask.f32 5376
      %v1273 = vshrl.u32 %v1134, 16
      %v1275 = vrot.slane %v1273, 2
      %v1276 = vshll.u32 %v1134, 16
      %v1278 = vrot.slane %v1276, 3
      %v1279 = vor.u32 %v1275, %v1278
      %v1281 = vshrl.u32 %v1135, 16
      %v1283 = vrot.slane %v1281, 2
      %v1284 = vshll.u32 %v1135, 16
      %v1286 = vrot.slane %v1284, 3
      %v1287 = vor.u32 %v1283, %v1286
      %v1288 = vsel %vm1271, %v1279, %v1287
      %v1290 = vshrl.u32 %v1136, 16
      %v1292 = vrot.slane %v1290, 2
      %v1293 = vshll.u32 %v1136, 16
      %v1295 = vrot.slane %v1293, 3
      %v1296 = vor.u32 %v1292, %v1295
      %v1297 = vsel %vm1271, %v1287, %v1296
      %v1299 = vshrl.u32 %v1137, 16
      %v1301 = vrot.slane %v1299, 2
      %v1302 = vshll.u32 %v1137, 16
      %v1304 = vrot.slane %v1302, 3
      %v1305 = vor.u32 %v1301, %v1304
      %v1306 = vsel %vm1271, %v1296, %v1305
      %v1308 = vshrl.u32 %v1138, 16
      %v1310 = vrot.slane %v1308, 2
      %v1311 = vshll.u32 %v1138, 16
      %v1313 = vrot.slane %v1311, 3
      %v1314 = vor.u32 %v1310, %v1313
      %v1315 = vsel %vm1271, %v1305, %v1314
      %v1317 = vshrl.u32 %v1270, 16
      %v1319 = vrot.slane %v1317, 2
      %v1320 = vshll.u32 %v1270, 16
      %v1322 = vrot.slane %v1320, 3
      %v1323 = vor.u32 %v1319, %v1322
      %v1324 = vsel %vm1271, %v1314, %v1323
      %v1327 = vunpack.c.l.b16 %v1266
      %v1328 = vunpack.c.h.b16 %v1266
      %v1329 = vunpack.c.l.b16 %v1267
      %v1330 = vunpack.c.h.b16 %v1267
      %v1331 = vpack.c.b16 %v1329, %v1327
      %v1332 = vpack.c.b16 %v1330, %v1328
      %v1336 = vsel %vm322, %v1288, 0
      %v1339 = vsel %vm322, %v1297, 0
      %v1342 = vsel %vm322, %v1306, 0
      %v1345 = vsel %vm322, %v1315, 0
      %v1348 = vsel %vm322, %v1324, 0
      %1350 = vmatpush.bf16.msra.mxu0 0
      %1351 = vmatpush.bf16.msra.mxu0 0
      %1352 = vmatpush.bf16.msra.mxu0 0
      %1353 = vmatpush.bf16.msra.mxu0 0
      %1354 = vmatpush.bf16.msra.mxu0 0
      %1355 = vmatpush.bf16.msra.mxu0 0
      %1356 = vmatpush.bf16.msra.mxu0 0
      %1357 = vmatpush.bf16.msra.mxu0 %v1331
      %1358 = vmatmul.bf16.gmra.mxu0 %v1336
      %v1359 = vpop.f32.mrf.mxu0
      %v1360 = vadd.f32 0.0, %v1359
      %v1361 = vpop.f32.mrf.mxu0
      %v1362 = vadd.f32 0.0, %v1361
      %1363 = vmatmul.bf16.gmra.mxu0 %v1339
      %v1364 = vpop.f32.mrf.mxu0
      %v1365 = vadd.f32 0.0, %v1364
      %v1366 = vpop.f32.mrf.mxu0
      %v1367 = vadd.f32 0.0, %v1366
      %1368 = vmatmul.bf16.gmra.mxu0 %v1342
      %v1369 = vpop.f32.mrf.mxu0
      %v1370 = vadd.f32 0.0, %v1369
      %v1371 = vpop.f32.mrf.mxu0
      %v1372 = vadd.f32 0.0, %v1371
      %1373 = vmatmul.bf16.gmra.mxu0 %v1345
      %v1374 = vpop.f32.mrf.mxu0
      %v1375 = vadd.f32 0.0, %v1374
      %v1376 = vpop.f32.mrf.mxu0
      %v1377 = vadd.f32 0.0, %v1376
      %1378 = vmatmul.bf16.gmra.mxu0 %v1348
      %v1379 = vpop.f32.mrf.mxu0
      %v1380 = vadd.f32 0.0, %v1379
      %v1381 = vpop.f32.mrf.mxu0
      %v1382 = vadd.f32 0.0, %v1381
      %1383 = vdwg.mxu0
      %1384 = vmatpush.bf16.msra.mxu0 0
      %1385 = vmatpush.bf16.msra.mxu0 0
      %1386 = vmatpush.bf16.msra.mxu0 0
      %1387 = vmatpush.bf16.msra.mxu0 0
      %1388 = vmatpush.bf16.msra.mxu0 0
      %1389 = vmatpush.bf16.msra.mxu0 0
      %1390 = vmatpush.bf16.msra.mxu0 0
      %1391 = vmatpush.bf16.msra.mxu0 %v1332
      %1392 = vmatmul.bf16.gmra.mxu0 %v1336
      %v1393 = vpop.f32.mrf.mxu0
      %v1394 = vadd.f32 0.0, %v1393
      %v1395 = vpop.f32.mrf.mxu0
      %v1396 = vadd.f32 0.0, %v1395
      %1397 = vmatmul.bf16.gmra.mxu0 %v1339
      %v1398 = vpop.f32.mrf.mxu0
      %v1399 = vadd.f32 0.0, %v1398
      %v1400 = vpop.f32.mrf.mxu0
      %v1401 = vadd.f32 0.0, %v1400
      %1402 = vmatmul.bf16.gmra.mxu0 %v1342
      %v1403 = vpop.f32.mrf.mxu0
      %v1404 = vadd.f32 0.0, %v1403
      %v1405 = vpop.f32.mrf.mxu0
      %v1406 = vadd.f32 0.0, %v1405
      %1407 = vmatmul.bf16.gmra.mxu0 %v1345
      %v1408 = vpop.f32.mrf.mxu0
      %v1409 = vadd.f32 0.0, %v1408
      %v1410 = vpop.f32.mrf.mxu0
      %v1411 = vadd.f32 0.0, %v1410
      %1412 = vmatmul.bf16.gmra.mxu0 %v1348
      %v1413 = vpop.f32.mrf.mxu0
      %v1414 = vadd.f32 0.0, %v1413
      %v1415 = vpop.f32.mrf.mxu0
      %v1416 = vadd.f32 0.0, %v1415
      %1417 = vdwg.mxu0
      %v1418 = vadd.f32 %v1244, %v1360
      %v1419 = vadd.f32 %v1245, %v1394
      %v1420 = vadd.f32 %v1246, %v1362
      %v1421 = vadd.f32 %v1247, %v1396
      %v1422 = vadd.f32 %v1248, %v1365
      %v1423 = vadd.f32 %v1249, %v1399
      %v1424 = vadd.f32 %v1250, %v1367
      %v1425 = vadd.f32 %v1251, %v1401
      %v1426 = vadd.f32 %v1252, %v1370
      %v1427 = vadd.f32 %v1253, %v1404
      %v1428 = vadd.f32 %v1254, %v1372
      %v1429 = vadd.f32 %v1255, %v1406
      %v1430 = vadd.f32 %v1256, %v1375
      %v1431 = vadd.f32 %v1257, %v1409
      %v1432 = vadd.f32 %v1258, %v1377
      %v1433 = vadd.f32 %v1259, %v1411
      %v1434 = vadd.f32 %v1260, %v1380
      %v1435 = vadd.f32 %v1261, %v1414
      %v1436 = vadd.f32 %v1262, %v1382
      %v1437 = vadd.f32 %v1263, %v1416
      %v1438 = vld [vmem:[%s206 + $0x8] sm:$0x8]
      %s1439 = scalar_lea.vmem %s1, 128
      %v1440 = vld [vmem:[%s1439] sm:$0xff]
      %v1441 = vld [vmem:[%s1439 + $0x8] sm:$0xff]
      %v1443 = vunpack.c.l.b16 %v1438
      %v1444 = vpack.c.b16 %v1124, %v1443
      %vm1445 = vcmask 1044480
      %v1446 = vrot.slane %v1444, 3
      %v1447 = vrot.slane %v1135, 3
      %v1448 = vsel %vm1445, %v1446, %v1447
      %v1449 = vrot.slane %v1136, 3
      %v1450 = vsel %vm1445, %v1447, %v1449
      %v1451 = vrot.slane %v1137, 3
      %v1452 = vsel %vm1445, %v1449, %v1451
      %v1453 = vrot.slane %v1138, 3
      %v1454 = vsel %vm1445, %v1451, %v1453
      %v1455 = vrot.slane %v1270, 3
      %v1456 = vsel %vm1445, %v1453, %v1455
      %v1459 = vunpack.c.l.b16 %v1440
      %v1460 = vunpack.c.h.b16 %v1440
      %v1461 = vunpack.c.l.b16 %v1441
      %v1462 = vunpack.c.h.b16 %v1441
      %v1463 = vpack.c.b16 %v1461, %v1459
      %v1464 = vpack.c.b16 %v1462, %v1460
      %v1468 = vsel %vm322, %v1448, 0
      %v1471 = vsel %vm322, %v1450, 0
      %v1474 = vsel %vm322, %v1452, 0
      %v1477 = vsel %vm322, %v1454, 0
      %v1480 = vsel %vm322, %v1456, 0
      %1482 = vmatpush.bf16.msra.mxu0 0
      %1483 = vmatpush.bf16.msra.mxu0 0
      %1484 = vmatpush.bf16.msra.mxu0 0
      %1485 = vmatpush.bf16.msra.mxu0 0
      %1486 = vmatpush.bf16.msra.mxu0 0
      %1487 = vmatpush.bf16.msra.mxu0 0
      %1488 = vmatpush.bf16.msra.mxu0 0
      %1489 = vmatpush.bf16.msra.mxu0 %v1463
      %1490 = vmatmul.bf16.gmra.mxu0 %v1468
      %v1491 = vpop.f32.mrf.mxu0
      %v1492 = vadd.f32 0.0, %v1491
      %v1493 = vpop.f32.mrf.mxu0
      %v1494 = vadd.f32 0.0, %v1493
      %1495 = vmatmul.bf16.gmra.mxu0 %v1471
      %v1496 = vpop.f32.mrf.mxu0
      %v1497 = vadd.f32 0.0, %v1496
      %v1498 = vpop.f32.mrf.mxu0
      %v1499 = vadd.f32 0.0, %v1498
      %1500 = vmatmul.bf16.gmra.mxu0 %v1474
      %v1501 = vpop.f32.mrf.mxu0
      %v1502 = vadd.f32 0.0, %v1501
      %v1503 = vpop.f32.mrf.mxu0
      %v1504 = vadd.f32 0.0, %v1503
      %1505 = vmatmul.bf16.gmra.mxu0 %v1477
      %v1506 = vpop.f32.mrf.mxu0
      %v1507 = vadd.f32 0.0, %v1506
      %v1508 = vpop.f32.mrf.mxu0
      %v1509 = vadd.f32 0.0, %v1508
      %1510 = vmatmul.bf16.gmra.mxu0 %v1480
      %v1511 = vpop.f32.mrf.mxu0
      %v1512 = vadd.f32 0.0, %v1511
      %v1513 = vpop.f32.mrf.mxu0
      %v1514 = vadd.f32 0.0, %v1513
      %1515 = vdwg.mxu0
      %1516 = vmatpush.bf16.msra.mxu0 0
      %1517 = vmatpush.bf16.msra.mxu0 0
      %1518 = vmatpush.bf16.msra.mxu0 0
      %1519 = vmatpush.bf16.msra.mxu0 0
      %1520 = vmatpush.bf16.msra.mxu0 0
      %1521 = vmatpush.bf16.msra.mxu0 0
      %1522 = vmatpush.bf16.msra.mxu0 0
      %1523 = vmatpush.bf16.msra.mxu0 %v1464
      %1524 = vmatmul.bf16.gmra.mxu0 %v1468
      %v1525 = vpop.f32.mrf.mxu0
      %v1526 = vadd.f32 0.0, %v1525
      %v1527 = vpop.f32.mrf.mxu0
      %v1528 = vadd.f32 0.0, %v1527
      %1529 = vmatmul.bf16.gmra.mxu0 %v1471
      %v1530 = vpop.f32.mrf.mxu0
      %v1531 = vadd.f32 0.0, %v1530
      %v1532 = vpop.f32.mrf.mxu0
      %v1533 = vadd.f32 0.0, %v1532
      %1534 = vmatmul.bf16.gmra.mxu0 %v1474
      %v1535 = vpop.f32.mrf.mxu0
      %v1536 = vadd.f32 0.0, %v1535
      %v1537 = vpop.f32.mrf.mxu0
      %v1538 = vadd.f32 0.0, %v1537
      %1539 = vmatmul.bf16.gmra.mxu0 %v1477
      %v1540 = vpop.f32.mrf.mxu0
      %v1541 = vadd.f32 0.0, %v1540
      %v1542 = vpop.f32.mrf.mxu0
      %v1543 = vadd.f32 0.0, %v1542
      %1544 = vmatmul.bf16.gmra.mxu0 %v1480
      %v1545 = vpop.f32.mrf.mxu0
      %v1546 = vadd.f32 0.0, %v1545
      %v1547 = vpop.f32.mrf.mxu0
      %v1548 = vadd.f32 0.0, %v1547
      %1549 = vdwg.mxu0
      %v1550 = vadd.f32 %v1418, %v1492
      %v1551 = vadd.f32 %v1419, %v1526
      %v1552 = vadd.f32 %v1420, %v1494
      %v1553 = vadd.f32 %v1421, %v1528
      %v1554 = vadd.f32 %v1422, %v1497
      %v1555 = vadd.f32 %v1423, %v1531
      %v1556 = vadd.f32 %v1424, %v1499
      %v1557 = vadd.f32 %v1425, %v1533
      %v1558 = vadd.f32 %v1426, %v1502
      %v1559 = vadd.f32 %v1427, %v1536
      %v1560 = vadd.f32 %v1428, %v1504
      %v1561 = vadd.f32 %v1429, %v1538
      %v1562 = vadd.f32 %v1430, %v1507
      %v1563 = vadd.f32 %v1431, %v1541
      %v1564 = vadd.f32 %v1432, %v1509
      %v1565 = vadd.f32 %v1433, %v1543
      %v1566 = vadd.f32 %v1434, %v1512
      %v1567 = vadd.f32 %v1435, %v1546
      %v1568 = vadd.f32 %v1436, %v1514
      %v1569 = vadd.f32 %v1437, %v1548
      %v1570 = vpack.c.bf16 %v1551, %v1550
      %v1571 = vpack.c.bf16 %v1553, %v1552
      %v1572 = vpack.c.bf16 %v1555, %v1554
      %v1573 = vpack.c.bf16 %v1557, %v1556
      %v1574 = vpack.c.bf16 %v1559, %v1558
      %v1575 = vpack.c.bf16 %v1561, %v1560
      %v1576 = vpack.c.bf16 %v1563, %v1562
      %v1577 = vpack.c.bf16 %v1565, %v1564
      %v1578 = vpack.c.bf16 %v1567, %v1566
      %v1579 = vpack.c.bf16 %v1569, %v1568
      %1580 = vst [vmem:[%s212] sm:$0xff] %v1570
      %1581 = vst [vmem:[%s212 + $0x8] sm:$0xff] %v1571
      %1582 = vst [vmem:[%s212 + $0x10] sm:$0xff] %v1572
      %1583 = vst [vmem:[%s212 + $0x18] sm:$0xff] %v1573
      %1584 = vst [vmem:[%s212 + $0x20] sm:$0xff] %v1574
      %1585 = vst [vmem:[%s212 + $0x28] sm:$0xff] %v1575
      %1586 = vst [vmem:[%s212 + $0x30] sm:$0xff] %v1576
      %1587 = vst [vmem:[%s212 + $0x38] sm:$0xff] %v1577
      %1588 = vst [vmem:[%s212 + $0x40] sm:$0xff] %v1578
      %1589 = vst [vmem:[%s212 + $0x48] sm:$0xff] %v1579
      %v1590 = vlaneseq
      %v1591 = vshrl.u32 %v1590, 7
      %v1592 = vadd.s32 %v1591, 8
      %v1593 = vadd.s32 %v1591, 16
      %v1594 = vadd.s32 %v1591, 24
      %v1595 = vadd.s32 %v1591, 32
      %v1596 = vadd.s32 %v1591, 40
      %v1597 = vadd.s32 %v1591, 48
      %v1598 = vadd.s32 %v1591, 56
      %v1599 = vadd.s32 %v1591, 64
      %v1600 = vadd.s32 %v1591, 72
      %vm1601 = vcmp.lt.s32.totalorder %v1591, 0
      %v1602 = vsub.s32 0, %v1591
      %v1603 = vsel %vm1601, %v1602, %v1591
      %v1604 = vand.u32 %v1603, 65535
      %v1605 = vshrl.u32 %v1603, 16
      %v1607 = vmul.u32 %v1604, 52429
      %v1608 = vmul.u32 %v1604, 52428
      %v1609 = vmul.u32 %v1605, 52429
      %v1610 = vmul.u32 %v1605, 52428
      %v1611 = vshll.u32 %v1608, 16
      %v1612 = vshrl.u32 %v1608, 16
      %v1613 = vshll.u32 %v1609, 16
      %v1614 = vshrl.u32 %v1609, 16
      %vm1615 = vc.u32 %v1607, %v1611
      %v1616 = vsel %vm1615, 1, 0
      %v1617 = vadd.s32 %v1607, %v1611
      %v1618 = vadd.s32 %v1610, %v1616
      %vm1619 = vc.u32 %v1617, %v1613
      %v1620 = vsel %vm1619, 1, 0
      %v1621 = vadd.s32 %v1617, %v1613
      %v1622 = vadd.s32 %v1618, %v1620
      %v1623 = vadd.s32 %v1622, %v1612
      %v1624 = vadd.s32 %v1623, %v1614
      %v1625 = vshrl.u32 %v1624, 3
      %v1626 = vmul.u32 %v1625, 10
      %v1627 = vsub.s32 %v1603, %v1626
      %v1628 = vsub.s32 0, %v1627
      %v1629 = vsel %vm1601, %v1628, %v1627
      %vm1630 = vcmp.lt.s32.totalorder %v1592, 0
      %v1631 = vsub.s32 0, %v1592
      %v1632 = vsel %vm1630, %v1631, %v1592
      %v1633 = vand.u32 %v1632, 65535
      %v1634 = vshrl.u32 %v1632, 16
      %v1636 = vmul.u32 %v1633, 52429
      %v1637 = vmul.u32 %v1633, 52428
      %v1638 = vmul.u32 %v1634, 52429
      %v1639 = vmul.u32 %v1634, 52428
      %v1640 = vshll.u32 %v1637, 16
      %v1641 = vshrl.u32 %v1637, 16
      %v1642 = vshll.u32 %v1638, 16
      %v1643 = vshrl.u32 %v1638, 16
      %vm1644 = vc.u32 %v1636, %v1640
      %v1645 = vsel %vm1644, 1, 0
      %v1646 = vadd.s32 %v1636, %v1640
      %v1647 = vadd.s32 %v1639, %v1645
      %vm1648 = vc.u32 %v1646, %v1642
      %v1649 = vsel %vm1648, 1, 0
      %v1650 = vadd.s32 %v1646, %v1642
      %v1651 = vadd.s32 %v1647, %v1649
      %v1652 = vadd.s32 %v1651, %v1641
      %v1653 = vadd.s32 %v1652, %v1643
      %v1654 = vshrl.u32 %v1653, 3
      %v1655 = vmul.u32 %v1654, 10
      %v1656 = vsub.s32 %v1632, %v1655
      %v1657 = vsub.s32 0, %v1656
      %v1658 = vsel %vm1630, %v1657, %v1656
      %vm1659 = vcmp.lt.s32.totalorder %v1593, 0
      %v1660 = vsub.s32 0, %v1593
      %v1661 = vsel %vm1659, %v1660, %v1593
      %v1662 = vand.u32 %v1661, 65535
      %v1663 = vshrl.u32 %v1661, 16
      %v1665 = vmul.u32 %v1662, 52429
      %v1666 = vmul.u32 %v1662, 52428
      %v1667 = vmul.u32 %v1663, 52429
      %v1668 = vmul.u32 %v1663, 52428
      %v1669 = vshll.u32 %v1666, 16
      %v1670 = vshrl.u32 %v1666, 16
      %v1671 = vshll.u32 %v1667, 16
      %v1672 = vshrl.u32 %v1667, 16
      %vm1673 = vc.u32 %v1665, %v1669
      %v1674 = vsel %vm1673, 1, 0
      %v1675 = vadd.s32 %v1665, %v1669
      %v1676 = vadd.s32 %v1668, %v1674
      %vm1677 = vc.u32 %v1675, %v1671
      %v1678 = vsel %vm1677, 1, 0
      %v1679 = vadd.s32 %v1675, %v1671
      %v1680 = vadd.s32 %v1676, %v1678
      %v1681 = vadd.s32 %v1680, %v1670
      %v1682 = vadd.s32 %v1681, %v1672
      %v1683 = vshrl.u32 %v1682, 3
      %v1684 = vmul.u32 %v1683, 10
      %v1685 = vsub.s32 %v1661, %v1684
      %v1686 = vsub.s32 0, %v1685
      %v1687 = vsel %vm1659, %v1686, %v1685
      %vm1688 = vcmp.lt.s32.totalorder %v1594, 0
      %v1689 = vsub.s32 0, %v1594
      %v1690 = vsel %vm1688, %v1689, %v1594
      %v1691 = vand.u32 %v1690, 65535
      %v1692 = vshrl.u32 %v1690, 16
      %v1694 = vmul.u32 %v1691, 52429
      %v1695 = vmul.u32 %v1691, 52428
      %v1696 = vmul.u32 %v1692, 52429
      %v1697 = vmul.u32 %v1692, 52428
      %v1698 = vshll.u32 %v1695, 16
      %v1699 = vshrl.u32 %v1695, 16
      %v1700 = vshll.u32 %v1696, 16
      %v1701 = vshrl.u32 %v1696, 16
      %vm1702 = vc.u32 %v1694, %v1698
      %v1703 = vsel %vm1702, 1, 0
      %v1704 = vadd.s32 %v1694, %v1698
      %v1705 = vadd.s32 %v1697, %v1703
      %vm1706 = vc.u32 %v1704, %v1700
      %v1707 = vsel %vm1706, 1, 0
      %v1708 = vadd.s32 %v1704, %v1700
      %v1709 = vadd.s32 %v1705, %v1707
      %v1710 = vadd.s32 %v1709, %v1699
      %v1711 = vadd.s32 %v1710, %v1701
      %v1712 = vshrl.u32 %v1711, 3
      %v1713 = vmul.u32 %v1712, 10
      %v1714 = vsub.s32 %v1690, %v1713
      %v1715 = vsub.s32 0, %v1714
      %v1716 = vsel %vm1688, %v1715, %v1714
      %vm1717 = vcmp.lt.s32.totalorder %v1595, 0
      %v1718 = vsub.s32 0, %v1595
      %v1719 = vsel %vm1717, %v1718, %v1595
      %v1720 = vand.u32 %v1719, 65535
      %v1721 = vshrl.u32 %v1719, 16
      %v1723 = vmul.u32 %v1720, 52429
      %v1724 = vmul.u32 %v1720, 52428
      %v1725 = vmul.u32 %v1721, 52429
      %v1726 = vmul.u32 %v1721, 52428
      %v1727 = vshll.u32 %v1724, 16
      %v1728 = vshrl.u32 %v1724, 16
      %v1729 = vshll.u32 %v1725, 16
      %v1730 = vshrl.u32 %v1725, 16
      %vm1731 = vc.u32 %v1723, %v1727
      %v1732 = vsel %vm1731, 1, 0
      %v1733 = vadd.s32 %v1723, %v1727
      %v1734 = vadd.s32 %v1726, %v1732
      %vm1735 = vc.u32 %v1733, %v1729
      %v1736 = vsel %vm1735, 1, 0
      %v1737 = vadd.s32 %v1733, %v1729
      %v1738 = vadd.s32 %v1734, %v1736
      %v1739 = vadd.s32 %v1738, %v1728
      %v1740 = vadd.s32 %v1739, %v1730
      %v1741 = vshrl.u32 %v1740, 3
      %v1742 = vmul.u32 %v1741, 10
      %v1743 = vsub.s32 %v1719, %v1742
      %v1744 = vsub.s32 0, %v1743
      %v1745 = vsel %vm1717, %v1744, %v1743
      %vm1746 = vcmp.lt.s32.totalorder %v1596, 0
      %v1747 = vsub.s32 0, %v1596
      %v1748 = vsel %vm1746, %v1747, %v1596
      %v1749 = vand.u32 %v1748, 65535
      %v1750 = vshrl.u32 %v1748, 16
      %v1752 = vmul.u32 %v1749, 52429
      %v1753 = vmul.u32 %v1749, 52428
      %v1754 = vmul.u32 %v1750, 52429
      %v1755 = vmul.u32 %v1750, 52428
      %v1756 = vshll.u32 %v1753, 16
      %v1757 = vshrl.u32 %v1753, 16
      %v1758 = vshll.u32 %v1754, 16
      %v1759 = vshrl.u32 %v1754, 16
      %vm1760 = vc.u32 %v1752, %v1756
      %v1761 = vsel %vm1760, 1, 0
      %v1762 = vadd.s32 %v1752, %v1756
      %v1763 = vadd.s32 %v1755, %v1761
      %vm1764 = vc.u32 %v1762, %v1758
      %v1765 = vsel %vm1764, 1, 0
      %v1766 = vadd.s32 %v1762, %v1758
      %v1767 = vadd.s32 %v1763, %v1765
      %v1768 = vadd.s32 %v1767, %v1757
      %v1769 = vadd.s32 %v1768, %v1759
      %v1770 = vshrl.u32 %v1769, 3
      %v1771 = vmul.u32 %v1770, 10
      %v1772 = vsub.s32 %v1748, %v1771
      %v1773 = vsub.s32 0, %v1772
      %v1774 = vsel %vm1746, %v1773, %v1772
      %vm1775 = vcmp.lt.s32.totalorder %v1597, 0
      %v1776 = vsub.s32 0, %v1597
      %v1777 = vsel %vm1775, %v1776, %v1597
      %v1778 = vand.u32 %v1777, 65535
      %v1779 = vshrl.u32 %v1777, 16
      %v1781 = vmul.u32 %v1778, 52429
      %v1782 = vmul.u32 %v1778, 52428
      %v1783 = vmul.u32 %v1779, 52429
      %v1784 = vmul.u32 %v1779, 52428
      %v1785 = vshll.u32 %v1782, 16
      %v1786 = vshrl.u32 %v1782, 16
      %v1787 = vshll.u32 %v1783, 16
      %v1788 = vshrl.u32 %v1783, 16
      %vm1789 = vc.u32 %v1781, %v1785
      %v1790 = vsel %vm1789, 1, 0
      %v1791 = vadd.s32 %v1781, %v1785
      %v1792 = vadd.s32 %v1784, %v1790
      %vm1793 = vc.u32 %v1791, %v1787
      %v1794 = vsel %vm1793, 1, 0
      %v1795 = vadd.s32 %v1791, %v1787
      %v1796 = vadd.s32 %v1792, %v1794
      %v1797 = vadd.s32 %v1796, %v1786
      %v1798 = vadd.s32 %v1797, %v1788
      %v1799 = vshrl.u32 %v1798, 3
      %v1800 = vmul.u32 %v1799, 10
      %v1801 = vsub.s32 %v1777, %v1800
      %v1802 = vsub.s32 0, %v1801
      %v1803 = vsel %vm1775, %v1802, %v1801
      %vm1804 = vcmp.lt.s32.totalorder %v1598, 0
      %v1805 = vsub.s32 0, %v1598
      %v1806 = vsel %vm1804, %v1805, %v1598
      %v1807 = vand.u32 %v1806, 65535
      %v1808 = vshrl.u32 %v1806, 16
      %v1810 = vmul.u32 %v1807, 52429
      %v1811 = vmul.u32 %v1807, 52428
      %v1812 = vmul.u32 %v1808, 52429
      %v1813 = vmul.u32 %v1808, 52428
      %v1814 = vshll.u32 %v1811, 16
      %v1815 = vshrl.u32 %v1811, 16
      %v1816 = vshll.u32 %v1812, 16
      %v1817 = vshrl.u32 %v1812, 16
      %vm1818 = vc.u32 %v1810, %v1814
      %v1819 = vsel %vm1818, 1, 0
      %v1820 = vadd.s32 %v1810, %v1814
      %v1821 = vadd.s32 %v1813, %v1819
      %vm1822 = vc.u32 %v1820, %v1816
      %v1823 = vsel %vm1822, 1, 0
      %v1824 = vadd.s32 %v1820, %v1816
      %v1825 = vadd.s32 %v1821, %v1823
      %v1826 = vadd.s32 %v1825, %v1815
      %v1827 = vadd.s32 %v1826, %v1817
      %v1828 = vshrl.u32 %v1827, 3
      %v1829 = vmul.u32 %v1828, 10
      %v1830 = vsub.s32 %v1806, %v1829
      %v1831 = vsub.s32 0, %v1830
      %v1832 = vsel %vm1804, %v1831, %v1830
      %vm1833 = vcmp.lt.s32.totalorder %v1599, 0
      %v1834 = vsub.s32 0, %v1599
      %v1835 = vsel %vm1833, %v1834, %v1599
      %v1836 = vand.u32 %v1835, 65535
      %v1837 = vshrl.u32 %v1835, 16
      %v1839 = vmul.u32 %v1836, 52429
      %v1840 = vmul.u32 %v1836, 52428
      %v1841 = vmul.u32 %v1837, 52429
      %v1842 = vmul.u32 %v1837, 52428
      %v1843 = vshll.u32 %v1840, 16
      %v1844 = vshrl.u32 %v1840, 16
      %v1845 = vshll.u32 %v1841, 16
      %v1846 = vshrl.u32 %v1841, 16
      %vm1847 = vc.u32 %v1839, %v1843
      %v1848 = vsel %vm1847, 1, 0
      %v1849 = vadd.s32 %v1839, %v1843
      %v1850 = vadd.s32 %v1842, %v1848
      %vm1851 = vc.u32 %v1849, %v1845
      %v1852 = vsel %vm1851, 1, 0
      %v1853 = vadd.s32 %v1849, %v1845
      %v1854 = vadd.s32 %v1850, %v1852
      %v1855 = vadd.s32 %v1854, %v1844
      %v1856 = vadd.s32 %v1855, %v1846
      %v1857 = vshrl.u32 %v1856, 3
      %v1858 = vmul.u32 %v1857, 10
      %v1859 = vsub.s32 %v1835, %v1858
      %v1860 = vsub.s32 0, %v1859
      %v1861 = vsel %vm1833, %v1860, %v1859
      %vm1862 = vcmp.lt.s32.totalorder %v1600, 0
      %v1863 = vsub.s32 0, %v1600
      %v1864 = vsel %vm1862, %v1863, %v1600
      %v1865 = vand.u32 %v1864, 65535
      %v1866 = vshrl.u32 %v1864, 16
      %v1868 = vmul.u32 %v1865, 52429
      %v1869 = vmul.u32 %v1865, 52428
      %v1870 = vmul.u32 %v1866, 52429
      %v1871 = vmul.u32 %v1866, 52428
      %v1872 = vshll.u32 %v1869, 16
      %v1873 = vshrl.u32 %v1869, 16
      %v1874 = vshll.u32 %v1870, 16
      %v1875 = vshrl.u32 %v1870, 16
      %vm1876 = vc.u32 %v1868, %v1872
      %v1877 = vsel %vm1876, 1, 0
      %v1878 = vadd.s32 %v1868, %v1872
      %v1879 = vadd.s32 %v1871, %v1877
      %vm1880 = vc.u32 %v1878, %v1874
      %v1881 = vsel %vm1880, 1, 0
      %v1882 = vadd.s32 %v1878, %v1874
      %v1883 = vadd.s32 %v1879, %v1881
      %v1884 = vadd.s32 %v1883, %v1873
      %v1885 = vadd.s32 %v1884, %v1875
      %v1886 = vshrl.u32 %v1885, 3
      %v1887 = vmul.u32 %v1886, 10
      %v1888 = vsub.s32 %v1864, %v1887
      %v1889 = vsub.s32 0, %v1888
      %v1890 = vsel %vm1862, %v1889, %v1888
      %vm1891 = vcmp.ne.s32.totalorder %v1629, 0
      %vm1892 = vcmp.ne.s32.totalorder %v1658, 0
      %vm1893 = vcmp.ne.s32.totalorder %v1687, 0
      %vm1894 = vcmp.ne.s32.totalorder %v1716, 0
      %vm1895 = vcmp.ne.s32.totalorder %v1745, 0
      %vm1896 = vcmp.ne.s32.totalorder %v1774, 0
      %vm1897 = vcmp.ne.s32.totalorder %v1803, 0
      %vm1898 = vcmp.ne.s32.totalorder %v1832, 0
      %vm1899 = vcmp.ne.s32.totalorder %v1861, 0
      %vm1900 = vcmp.ne.s32.totalorder %v1890, 0
      %vm1901 = vcmp.lt.s32.totalorder %v1629, 0
      %vm1902 = vcmp.lt.s32.totalorder %v1658, 0
      %vm1903 = vcmp.lt.s32.totalorder %v1687, 0
      %vm1904 = vcmp.lt.s32.totalorder %v1716, 0
      %vm1905 = vcmp.lt.s32.totalorder %v1745, 0
      %vm1906 = vcmp.lt.s32.totalorder %v1774, 0
      %vm1907 = vcmp.lt.s32.totalorder %v1803, 0
      %vm1908 = vcmp.lt.s32.totalorder %v1832, 0
      %vm1909 = vcmp.lt.s32.totalorder %v1861, 0
      %vm1910 = vcmp.lt.s32.totalorder %v1890, 0
      %vm1911 = vmand %vm1901, %vm1891
      %vm1912 = vmand %vm1902, %vm1892
      %vm1913 = vmand %vm1903, %vm1893
      %vm1914 = vmand %vm1904, %vm1894
      %vm1915 = vmand %vm1905, %vm1895
      %vm1916 = vmand %vm1906, %vm1896
      %vm1917 = vmand %vm1907, %vm1897
      %vm1918 = vmand %vm1908, %vm1898
      %vm1919 = vmand %vm1909, %vm1899
      %vm1920 = vmand %vm1910, %vm1900
      %v1921 = vadd.s32 %v1629, 10
      %v1922 = vadd.s32 %v1658, 10
      %v1923 = vadd.s32 %v1687, 10
      %v1924 = vadd.s32 %v1716, 10
      %v1925 = vadd.s32 %v1745, 10
      %v1926 = vadd.s32 %v1774, 10
      %v1927 = vadd.s32 %v1803, 10
      %v1928 = vadd.s32 %v1832, 10
      %v1929 = vadd.s32 %v1861, 10
      %v1930 = vadd.s32 %v1890, 10
      %v1931 = vsel %vm1911, %v1921, %v1629
      %v1932 = vsel %vm1912, %v1922, %v1658
      %v1933 = vsel %vm1913, %v1923, %v1687
      %v1934 = vsel %vm1914, %v1924, %v1716
      %v1935 = vsel %vm1915, %v1925, %v1745
      %v1936 = vsel %vm1916, %v1926, %v1774
      %v1937 = vsel %vm1917, %v1927, %v1803
      %v1938 = vsel %vm1918, %v1928, %v1832
      %v1939 = vsel %vm1919, %v1929, %v1861
      %v1940 = vsel %vm1920, %v1930, %v1890
      %vm1941 = vcmp.lt.s32.totalorder %v1931, 8
      %vm1942 = vcmp.lt.s32.totalorder %v1932, 8
      %vm1943 = vcmp.lt.s32.totalorder %v1933, 8
      %vm1944 = vcmp.lt.s32.totalorder %v1934, 8
      %vm1945 = vcmp.lt.s32.totalorder %v1935, 8
      %vm1946 = vcmp.lt.s32.totalorder %v1936, 8
      %vm1947 = vcmp.lt.s32.totalorder %v1937, 8
      %vm1948 = vcmp.lt.s32.totalorder %v1938, 8
      %vm1949 = vcmp.lt.s32.totalorder %v1939, 8
      %vm1950 = vcmp.lt.s32.totalorder %v1940, 8
      %v1951 = vsel %vm1941, 1, 0
      %v1952 = vsel %vm1942, 1, 0
      %v1953 = vsel %vm1943, 1, 0
      %v1954 = vsel %vm1944, 1, 0
      %v1955 = vsel %vm1945, 1, 0
      %v1956 = vsel %vm1946, 1, 0
      %v1957 = vsel %vm1947, 1, 0
      %v1958 = vsel %vm1948, 1, 0
      %v1959 = vsel %vm1949, 1, 0
      %v1960 = vsel %vm1950, 1, 0
      %vm1961 = vcmp.eq.s32.totalorder %v1951, 1
      %vm1962 = vcmp.eq.s32.totalorder %v1952, 1
      %vm1963 = vcmp.eq.s32.totalorder %v1953, 1
      %vm1964 = vcmp.eq.s32.totalorder %v1954, 1
      %vm1965 = vcmp.eq.s32.totalorder %v1955, 1
      %vm1966 = vcmp.eq.s32.totalorder %v1956, 1
      %vm1967 = vcmp.eq.s32.totalorder %v1957, 1
      %vm1968 = vcmp.eq.s32.totalorder %v1958, 1
      %vm1969 = vcmp.eq.s32.totalorder %v1959, 1
      %vm1970 = vcmp.eq.s32.totalorder %v1960, 1
      %v1971 = vsel %vm1961, %v1550, 0.0
      %v1972 = vsel %vm1961, %v1551, 0.0
      %v1973 = vsel %vm1962, %v1552, 0.0
      %v1974 = vsel %vm1962, %v1553, 0.0
      %v1975 = vsel %vm1963, %v1554, 0.0
      %v1976 = vsel %vm1963, %v1555, 0.0
      %v1977 = vsel %vm1964, %v1556, 0.0
      %v1978 = vsel %vm1964, %v1557, 0.0
      %v1979 = vsel %vm1965, %v1558, 0.0
      %v1980 = vsel %vm1965, %v1559, 0.0
      %v1981 = vsel %vm1966, %v1560, 0.0
      %v1982 = vsel %vm1966, %v1561, 0.0
      %v1983 = vsel %vm1967, %v1562, 0.0
      %v1984 = vsel %vm1967, %v1563, 0.0
      %v1985 = vsel %vm1968, %v1564, 0.0
      %v1986 = vsel %vm1968, %v1565, 0.0
      %v1987 = vsel %vm1969, %v1566, 0.0
      %v1988 = vsel %vm1969, %v1567, 0.0
      %v1989 = vsel %vm1970, %v1568, 0.0
      %v1990 = vsel %vm1970, %v1569, 0.0
      %v1991 = vadd.f32 %v1971, %v1973
      %v1992 = vadd.f32 %v1991, %v1975
      %v1993 = vadd.f32 %v1992, %v1977
      %v1994 = vadd.f32 %v1993, %v1979
      %v1995 = vadd.f32 %v1994, %v1981
      %v1996 = vadd.f32 %v1995, %v1983
      %v1997 = vadd.f32 %v1996, %v1985
      %v1998 = vadd.f32 %v1997, %v1987
      %v1999 = vadd.f32 %v1998, %v1989
      %v2000 = vrot.slane %v1999, 4
      %v2001 = vadd.f32 %v1999, %v2000
      %v2002 = vrot.slane %v2001, 2
      %v2003 = vadd.f32 %v2001, %v2002
      %v2004 = vrot.slane %v2003, 1
      %v2005 = vadd.f32 %v2003, %v2004
      %v2006 = vadd.f32 %v1972, %v1974
      %v2007 = vadd.f32 %v2006, %v1976
      %v2008 = vadd.f32 %v2007, %v1978
      %v2009 = vadd.f32 %v2008, %v1980
      %v2010 = vadd.f32 %v2009, %v1982
      %v2011 = vadd.f32 %v2010, %v1984
      %v2012 = vadd.f32 %v2011, %v1986
      %v2013 = vadd.f32 %v2012, %v1988
      %v2014 = vadd.f32 %v2013, %v1990
      %v2015 = vrot.slane %v2014, 4
      %v2016 = vadd.f32 %v2014, %v2015
      %v2017 = vrot.slane %v2016, 2
      %v2018 = vadd.f32 %v2016, %v2017
      %v2019 = vrot.slane %v2018, 1
      %v2020 = vadd.f32 %v2018, %v2019
      %v2021 = vadd.f32 %v2005, 0.0
      %v2022 = vadd.f32 %v2020, 0.0
      %v2023 = vmul.f32 %v1971, %v1971
      %v2024 = vmul.f32 %v1972, %v1972
      %v2025 = vmul.f32 %v1973, %v1973
      %v2026 = vmul.f32 %v1974, %v1974
      %v2027 = vmul.f32 %v1975, %v1975
      %v2028 = vmul.f32 %v1976, %v1976
      %v2029 = vmul.f32 %v1977, %v1977
      %v2030 = vmul.f32 %v1978, %v1978
      %v2031 = vmul.f32 %v1979, %v1979
      %v2032 = vmul.f32 %v1980, %v1980
      %v2033 = vmul.f32 %v1981, %v1981
      %v2034 = vmul.f32 %v1982, %v1982
      %v2035 = vmul.f32 %v1983, %v1983
      %v2036 = vmul.f32 %v1984, %v1984
      %v2037 = vmul.f32 %v1985, %v1985
      %v2038 = vmul.f32 %v1986, %v1986
      %v2039 = vmul.f32 %v1987, %v1987
      %v2040 = vmul.f32 %v1988, %v1988
      %v2041 = vmul.f32 %v1989, %v1989
      %v2042 = vmul.f32 %v1990, %v1990
      %v2043 = vadd.f32 %v2023, %v2025
      %v2044 = vadd.f32 %v2043, %v2027
      %v2045 = vadd.f32 %v2044, %v2029
      %v2046 = vadd.f32 %v2045, %v2031
      %v2047 = vadd.f32 %v2046, %v2033
      %v2048 = vadd.f32 %v2047, %v2035
      %v2049 = vadd.f32 %v2048, %v2037
      %v2050 = vadd.f32 %v2049, %v2039
      %v2051 = vadd.f32 %v2050, %v2041
      %v2052 = vrot.slane %v2051, 4
      %v2053 = vadd.f32 %v2051, %v2052
      %v2054 = vrot.slane %v2053, 2
      %v2055 = vadd.f32 %v2053, %v2054
      %v2056 = vrot.slane %v2055, 1
      %v2057 = vadd.f32 %v2055, %v2056
      %v2058 = vadd.f32 %v2024, %v2026
      %v2059 = vadd.f32 %v2058, %v2028
      %v2060 = vadd.f32 %v2059, %v2030
      %v2061 = vadd.f32 %v2060, %v2032
      %v2062 = vadd.f32 %v2061, %v2034
      %v2063 = vadd.f32 %v2062, %v2036
      %v2064 = vadd.f32 %v2063, %v2038
      %v2065 = vadd.f32 %v2064, %v2040
      %v2066 = vadd.f32 %v2065, %v2042
      %v2067 = vrot.slane %v2066, 4
      %v2068 = vadd.f32 %v2066, %v2067
      %v2069 = vrot.slane %v2068, 2
      %v2070 = vadd.f32 %v2068, %v2069
      %v2071 = vrot.slane %v2070, 1
      %v2072 = vadd.f32 %v2070, %v2071
      %v2073 = vadd.f32 %v2057, 0.0
      %v2074 = vadd.f32 %v2072, 0.0
      %v2077 = vrot.slane %v2022, 7
      %vm2078 = vcmask 1040384
      %v2079 = vsel %vm2078, %v2021, %v2077
      %v2081 = vlaneseq
      %vm2082 = vcmp.ge.s32.totalorder %v2081, 0
      %vm2083 = vcmp.lt.s32.totalorder %v2081, 256
      %vm2084 = vmand %vm2082, %vm2083
      %2085 = vst.msk [vmem:[%s217] sm:$0x3] %vm2084, %v2079
      %v2088 = vrot.slane %v2074, 7
      %v2089 = vsel %vm2078, %v2073, %v2088
      %2091 = vst.msk [vmem:[%s221] sm:$0x3] %vm2084, %v2089
      %s2092 = smul.u32 10, %s16
      %p2093 = scmp.lt.s32.totalorder %s2092, 19
      %s2094 = scalar_select %p2093, %s2092, 19
      %s2095 = smul.addr %s2094, 2
      %s2096 = smul.addr %s2095, 4
      %s2097 = scalar_lea.vmem %s2, %s2096
      %p2098 = scmp.lt.s32.totalorder %s16, 1
      %s2099 = scalar_select %p2098, %s16, 1
      %s2100 = smul.addr %s2099, 2
      %s2101 = scalar_lea.vmem %s3, %s2100
      %p2102 = scmp.lt.s32.totalorder %s16, 1
      %s2103 = scalar_select %p2102, %s16, 1
      %s2104 = smul.addr %s2103, 2
      %s2105 = scalar_lea.vmem %s4, %s2104
      // Predicated region
      $region29: #{down_forward.6} parent=27 // pred_check
        %p2106 = pneg %p81
      $region30: #{down_forward.6} parent=27 // pred_check_branch
        %2108 = sbr.rel (%p2106) target = $region32
      $region31: #{down_forward.6} parent=27 // pred_region
        %s2109 = smul.u32 10, %s16
      $region32: #{down_forward.6} parent=27 // pred_fallthru
        _
      // Predicated region
      $region33: #{down_forward.6} parent=27 // pred_check
        %p2110 = pneg %p107
      $region34: #{down_forward.6} parent=27 // pred_check_branch
        %2112 = sbr.rel (%p2110) target = $region36
      $region35: #{down_forward.6} parent=27 // pred_region
        _
      $region36: #{down_forward.6} parent=27 // pred_fallthru
        _
      // Predicated region
      $region37: #{down_forward.6} parent=27 // pred_check
        %p2113 = pneg %p133
      $region38: #{down_forward.6} parent=27 // pred_check_branch
        %2115 = sbr.rel (%p2113) target = $region40
      $region39: #{down_forward.6} parent=27 // pred_region
        _
      $region40: #{down_forward.6} parent=27 // pred_fallthru
        _
    $region28: #{down_forward.6} parent=5 // pred_fallthru
      _
    %p2116 = scmp.le.s32.totalorder 2, %s11
    // Predicated region
    $region41: #{down_forward.6} parent=5 // pred_check
      %p2117 = pneg %p2116
    $region42: #{down_forward.6} parent=5 // pred_check_branch
      %2119 = sbr.rel (%p2117) target = $region44
    $region43: #{down_forward.6} parent=5 // pred_region
      %s2120 = ssub.s32 %s11, 2
      // Predicated region
      $region45: #{down_forward.6} parent=43 // pred_check
        %p2121 = pneg %p87
      $region46: #{down_forward.6} parent=43 // pred_check_branch
        %2123 = sbr.rel (%p2121) target = $region48
      $region47: #{down_forward.6} parent=43 // pred_region
        %s2124 = smul.u32 10, %s17
        %p2125 = scmp.lt.s32.totalorder %s2124, 19
        %s2126 = scalar_select %p2125, %s2124, 19
        %s2127 = smul.addr %s2126, 2
        %s2128 = smul.addr %s2127, 4
        %s2129 = scalar_lea.vmem %s2, %s2128
      $region48: #{down_forward.6} parent=43 // pred_fallthru
        _
      // Predicated region
      $region49: #{down_forward.6} parent=43 // pred_check
        %p2130 = pneg %p113
      $region50: #{down_forward.6} parent=43 // pred_check_branch
        %2132 = sbr.rel (%p2130) target = $region52
      $region51: #{down_forward.6} parent=43 // pred_region
        %p2133 = scmp.lt.s32.totalorder %s17, 1
        %s2134 = scalar_select %p2133, %s17, 1
        %s2135 = smul.addr %s2134, 2
        %s2136 = scalar_lea.vmem %s3, %s2135
      $region52: #{down_forward.6} parent=43 // pred_fallthru
        _
      // Predicated region
      $region53: #{down_forward.6} parent=43 // pred_check
        %p2137 = pneg %p139
      $region54: #{down_forward.6} parent=43 // pred_check_branch
        %2139 = sbr.rel (%p2137) target = $region56
      $region55: #{down_forward.6} parent=43 // pred_region
        %p2140 = scmp.lt.s32.totalorder %s17, 1
        %s2141 = scalar_select %p2140, %s17, 1
        %s2142 = smul.addr %s2141, 2
        %s2143 = scalar_lea.vmem %s4, %s2142
      $region56: #{down_forward.6} parent=43 // pred_fallthru
        _
    $region44: #{down_forward.6} parent=5 // pred_fallthru
      _
  $region6: #{down_forward.6} parent=0 // loop_footer
    %s15 = sadd.s32 1, %s11
  $region7: #{down_forward.6} parent=0 // loop_footer_branch
    %10 = sbr.rel target = $region3
  $region8: #{down_forward.6} parent=0 // loop_exit
    _

</llo_original>
